<compile_context>
chip_gen: v7x
topology: tpu7x:2x2x1
jax: 0.10.0
libtpu: 0.0.40
codegen_flags: <defaults>
</compile_context>

<pallas_src>
import functools

import jax
import jax.numpy as jnp
from jax.experimental import pallas as pl
from jax.experimental.pallas import tpu as pltpu

EPS = 1e-5
LANES = 128
BF16_SUBLANES = 16                 # bf16 packs 16 sublanes per vreg

# Per-grid-step VMEM budget used to size the spatial row tile.  Conservative
# for v7x (64 MiB physical VMEM); on v5e/v6e (128 MiB) sweep this and
# VMEM_LIMIT_BYTES upward (~100 MiB) for larger tiles / fewer grid steps.
VMEM_STEP_BUDGET_BYTES = 12 << 20
VMEM_LIMIT_BYTES = 48 << 20        # <= ~56 MiB so it stays legal on v7x


def _round_up(x, m):
    return (x + m - 1) // m * m


def _pick_row_tile(H, W, bytes_per_pixel, budget=VMEM_STEP_BUDGET_BYTES):
    """Largest TH dividing H with (TH*W) % 8 == 0 whose per-step footprint
    fits the budget.  Prefer >= 2 tiles per image so the DMA pipeline has
    depth and a single image still shards across both v7x TensorCores."""
    cands = [th for th in range(1, H + 1)
             if H % th == 0 and (th * W) % 8 == 0
             and th * W * bytes_per_pixel <= budget]
    if not cands:
        return H
    halved = [th for th in cands if th <= max(H // 2, 1)]
    return max(halved) if halved else max(cands)


# ---------------------------------------------------------------------------
# in-kernel helpers
# ---------------------------------------------------------------------------
def _bn_relu_bf16(x, scale, shift):
    """Folded BN (f32) + ReLU, result cast to bf16 for the MXU."""
    y = x.astype(jnp.float32) * scale + shift
    return jnp.maximum(y, 0.0).astype(jnp.bfloat16)


def _fill_src(src_ref, main, top, bot, *, t, n_tiles, W, PAD):
    """Flat row buffer: [zeros | top halo row | tile rows | bottom halo | zeros].

    Interior store starts at row PAD (multiple of 16 -> packed-sublane
    aligned dense store).  Halo rows are valid only for interior tiles; at
    the image top/bottom they are the conv's zero padding.
    """
    n, C = main.shape
    src_ref[0:PAD, :] = jnp.zeros((PAD, C), src_ref.dtype)
    src_ref[PAD + n:PAD + n + PAD, :] = jnp.zeros((PAD, C), src_ref.dtype)
    src_ref[PAD - W:PAD, :] = jnp.where(t > 0, top, 0.0).astype(src_ref.dtype)
    src_ref[PAD + n:PAD + n + W, :] = jnp.where(
        t < n_tiles - 1, bot, 0.0).astype(src_ref.dtype)
    src_ref[PAD:PAD + n, :] = main.astype(src_ref.dtype)


def _conv3x3(src_ref, col_ref, w_ref, *, n, W, C, PAD):
    """3x3 'same' conv on the flat row buffer as THREE accumulating bf16 MXU
    matmuls with K = 3*C (per-dy im2col block), f32 accumulation.  No full
    (n, 9C) im2col slab is materialized.  w-boundary taps are masked with a
    cheap iota mask; top/bottom boundaries come from the zeroed halo rows.
    """
    w_idx = jax.lax.broadcasted_iota(jnp.int32, (n, 1), 0) % W
    keep_left = w_idx >= 1          # dx == 0 tap invalid at w == 0
    keep_right = w_idx <= W - 2     # dx == 2 tap invalid at w == W-1
    acc = None
    for dy in range(3):
        for dx in range(3):
            off = PAD + (dy - 1) * W + (dx - 1)          # static offset
            tap = src_ref[off:off + n, :]
            if dx == 0:
                tap = jnp.where(keep_left, tap, jnp.zeros_like(tap))
            elif dx == 2:
                tap = jnp.where(keep_right, tap, jnp.zeros_like(tap))
            col_ref[:, dx * C:(dx + 1) * C] = tap
        part = jnp.dot(col_ref[...], w_ref[dy],
                       preferred_element_type=jnp.float32)
        acc = part if acc is None else acc + part
    return acc


def _conv_tail(src_ref, col_ref, w_ref, y_ref, st_ref, st_acc,
               *, n, W, C, PAD):
    """Per-dy accumulating conv, bf16 store of y, one-pass stats accumulated
    in VMEM across the row-tile axis and emitted once per image."""
    t = pl.program_id(1)
    n_tiles = pl.num_programs(1)

    acc = _conv3x3(src_ref, col_ref, w_ref, n=n, W=W, C=C, PAD=PAD)
    y_ref[0] = acc.astype(y_ref.dtype)                   # bf16 lane-dense store

    @pl.when(t == 0)
    def _():
        st_acc[...] = jnp.zeros_like(st_acc)

    st_acc[0:1, :] += jnp.sum(acc, axis=0, keepdims=True)
    st_acc[1:2, :] += jnp.sum(acc * acc, axis=0, keepdims=True)

    @pl.when(t == n_tiles - 1)
    def _():
        st_ref[0] = st_acc[...]


# ---------------------------------------------------------------------------
# kernels
# ---------------------------------------------------------------------------
def _conv1_kernel(x_ref, top_ref, bot_ref, w_ref, y_ref, st_ref,
                  src_ref, col_ref, st_acc, *, W, C, PAD):
    t = pl.program_id(1)
    n_tiles = pl.num_programs(1)
    n = x_ref.shape[1]
    _fill_src(src_ref, x_ref[0], top_ref[0], bot_ref[0],
              t=t, n_tiles=n_tiles, W=W, PAD=PAD)
    _conv_tail(src_ref, col_ref, w_ref, y_ref, st_ref, st_acc,
               n=n, W=W, C=C, PAD=PAD)


def _bn_relu_conv2_kernel(x_ref, top_ref, bot_ref, scale_ref, shift_ref,
                          w_ref, y_ref, st_ref, src_ref, col_ref, st_acc,
                          *, W, C, PAD):
    t = pl.program_id(1)
    n_tiles = pl.num_programs(1)
    n = x_ref.shape[1]
    scale = scale_ref[...]
    shift = shift_ref[...]
    # BN1 (folded scale/shift, f32) + ReLU on the tile AND its halo rows,
    # drop lane padding, cast to bf16 for the MXU.
    main = _bn_relu_bf16(x_ref[0][:, :C], scale, shift)
    top = _bn_relu_bf16(top_ref[0][:, :C], scale, shift)
    bot = _bn_relu_bf16(bot_ref[0][:, :C], scale, shift)
    _fill_src(src_ref, main, top, bot, t=t, n_tiles=n_tiles, W=W, PAD=PAD)
    _conv_tail(src_ref, col_ref, w_ref, y_ref, st_ref, st_acc,
               n=n, W=W, C=C, PAD=PAD)


def _bn_relu_kernel(x_ref, scale_ref, shift_ref, o_ref):
    y = x_ref[0].astype(jnp.float32) * scale_ref[...] + shift_ref[...]
    o_ref[0] = jnp.maximum(y, 0.0).astype(o_ref.dtype)


# ---------------------------------------------------------------------------
# wrapper
# ---------------------------------------------------------------------------
def _fold_bn(st, gamma, beta, count):
    """Fold per-image (sum, sumsq) partials into per-channel scale/shift."""
    c = gamma.shape[0]
    s = jnp.sum(st[:, 0, :c], axis=0)
    sq = jnp.sum(st[:, 1, :c], axis=0)
    mean = s / count
    var = jnp.maximum(sq / count - mean * mean, 0.0)   # clamp vs. cancellation
    scale = gamma * jax.lax.rsqrt(var + EPS)
    shift = beta - mean * scale
    return scale, shift


@jax.jit
def double_conv(x_nchw, w1_oihw, g1, b1, w2_oihw, g2, b2):
    """Fused DoubleConv forward. x_nchw: (B, Cin, H, W) float32."""
    B, Cin, H, W = x_nchw.shape
    Cmid = w1_oihw.shape[0]
    Cout = w2_oihw.shape[0]
    n = H * W
    Cp1 = _round_up(Cmid, LANES)              # lane-padded conv output widths
    Cp2 = _round_up(Cout, LANES)
    PAD = _round_up(W + 1, BF16_SUBLANES)     # halo rows, packed-sublane aligned

    assert W % 8 == 0, "W must be a multiple of 8 (halo-row block constraint)"

    # rough per-pixel VMEM footprint (double-buffered bf16 in/out, scratch,
    # f32 accumulator) -> row-tile size
    bpp = 4 * Cp1 + 4 * Cp2 + 2 * Cmid + 6 * Cmid + 4 * Cp2 + 4 * Cin
    TH = _pick_row_tile(H, W, bpp)
    T = H // TH
    tn = TH * W

    # ---- glue: layout + dtype conversion (cheap XLA ops) ----
    x_rows = (jnp.transpose(x_nchw, (0, 2, 3, 1))
              .reshape(B, n, Cin).astype(jnp.bfloat16))

    def prep_w(w_oihw, cpad):
        co, ci, kh, kw = w_oihw.shape
        w = jnp.transpose(w_oihw, (2, 3, 1, 0)).reshape(kh, kw * ci, co)
        return jnp.pad(w, ((0, 0), (0, 0), (0, cpad - co))).astype(jnp.bfloat16)

    w1p = prep_w(w1_oihw, Cp1)                # (3, 3*Cin,  Cp1)
    w2p = prep_w(w2_oihw, Cp2)                # (3, 3*Cmid, Cp2)

    cparams = pltpu.CompilerParams(
        dimension_semantics=("parallel", "arbitrary"),
        vmem_limit_bytes=VMEM_LIMIT_BYTES)

    def tile_spec(cp):
        return pl.BlockSpec((1, tn, cp), lambda b, t: (b, t, 0))

    def halo_specs(cp):
        # one image row above / below the tile (block unit along n is W,
        # i.e. one image row); clamped at the image edges and zeroed in-kernel
        top = pl.BlockSpec((1, W, cp),
                           lambda b, t: (b, jnp.maximum(t * TH - 1, 0), 0))
        bot = pl.BlockSpec((1, W, cp),
                           lambda b, t: (b, jnp.minimum((t + 1) * TH, H - 1), 0))
        return top, bot

    # ---- pass 1: conv1 + per-image sum / sumsq (bf16 y1, f32 stats) ----
    top1, bot1 = halo_specs(Cin)
    y1, st1 = pl.pallas_call(
        functools.partial(_conv1_kernel, W=W, C=Cin, PAD=PAD),
        grid=(B, T),
        in_specs=[
            tile_spec(Cin), top1, bot1,
            pl.BlockSpec((3, 3 * Cin, Cp1), lambda b, t: (0, 0, 0)),
        ],
        out_specs=(
            tile_spec(Cp1),
            pl.BlockSpec((1, 2, Cp1), lambda b, t: (b, 0, 0)),
        ),
        out_shape=(
            jax.ShapeDtypeStruct((B, n, Cp1), jnp.bfloat16),
            jax.ShapeDtypeStruct((B, 2, Cp1), jnp.float32),
        ),
        scratch_shapes=[
            pltpu.VMEM((tn + 2 * PAD, Cin), jnp.bfloat16),   # flat row buffer
            pltpu.VMEM((tn, 3 * Cin), jnp.bfloat16),         # per-dy im2col
            pltpu.VMEM((2, Cp1), jnp.float32),               # stats accumulator
        ],
        compiler_params=cparams,
    )(x_rows, x_rows, x_rows, w1p)

    scale1, shift1 = _fold_bn(st1, g1, b1, float(B * n))
    scale1 = scale1.reshape(1, Cmid)
    shift1 = shift1.reshape(1, Cmid)

    # ---- pass 2: bn1 + relu + conv2 + per-image sum / sumsq ----
    top2, bot2 = halo_specs(Cp1)
    vec1 = pl.BlockSpec((1, Cmid), lambda b, t: (0, 0))
    y2, st2 = pl.pallas_call(
        functools.partial(_bn_relu_conv2_kernel, W=W, C=Cmid, PAD=PAD),
        grid=(B, T),
        in_specs=[
            tile_spec(Cp1), top2, bot2, vec1, vec1,
            pl.BlockSpec((3, 3 * Cmid, Cp2), lambda b, t: (0, 0, 0)),
        ],
        out_specs=(
            tile_spec(Cp2),
            pl.BlockSpec((1, 2, Cp2), lambda b, t: (b, 0, 0)),
        ),
        out_shape=(
            jax.ShapeDtypeStruct((B, n, Cp2), jnp.bfloat16),
            jax.ShapeDtypeStruct((B, 2, Cp2), jnp.float32),
        ),
        scratch_shapes=[
            pltpu.VMEM((tn + 2 * PAD, Cmid), jnp.bfloat16),
            pltpu.VMEM((tn, 3 * Cmid), jnp.bfloat16),
            pltpu.VMEM((2, Cp2), jnp.float32),
        ],
        compiler_params=cparams,
    )(y1, y1, y1, scale1, shift1, w2p)

    scale2, shift2 = _fold_bn(st2, g2, b2, float(B * n))
    scale2p = jnp.pad(scale2, (0, Cp2 - Cout)).reshape(1, Cp2)
    shift2p = jnp.pad(shift2, (0, Cp2 - Cout)).reshape(1, Cp2)

    # ---- pass 3: bn2 + relu (slim: bf16 in/out, aliased onto y2) ----
    vec2 = pl.BlockSpec((1, Cp2), lambda b, t: (0, 0))
    out_slab = pl.pallas_call(
        _bn_relu_kernel,
        grid=(B, T),
        in_specs=[tile_spec(Cp2), vec2, vec2],
        out_specs=tile_spec(Cp2),
        out_shape=jax.ShapeDtypeStruct((B, n, Cp2), jnp.bfloat16),
        input_output_aliases={0: 0},          # reuse y2's HBM buffer
        compiler_params=pltpu.CompilerParams(
            dimension_semantics=("parallel", "parallel"),
            vmem_limit_bytes=VMEM_LIMIT_BYTES),
    )(y2, scale2p, shift2p)

    # glue: drop lane padding, cast, back to NCHW
    # TODO(synk): for UNet stages with <128 channels, row-pack several spatial
    # rows per 128 lanes instead of zero-padding channels (halves HBM traffic).
    out = out_slab[:, :, :Cout].astype(jnp.float32).reshape(B, H, W, Cout)
    return jnp.transpose(out, (0, 3, 1, 2))


# ---------------------------------------------------------------------------
# f32 reference
# ---------------------------------------------------------------------------
def _reference(x, w1, g1, b1, w2, g2, b2):
    def conv(x, w):
        return jax.lax.conv_general_dilated(
            x, w, (1, 1), 'SAME', dimension_numbers=('NCHW', 'OIHW', 'NCHW'))

    def bn_relu(y, g, b):
        mean = y.mean(axis=(0, 2, 3), keepdims=True)
        var = ((y - mean) ** 2).mean(axis=(0, 2, 3), keepdims=True)
        y = (y - mean) / jnp.sqrt(var + EPS)
        y = y * g.reshape(1, -1, 1, 1) + b.reshape(1, -1, 1, 1)
        return jnp.maximum(y, 0.0)

    y = bn_relu(conv(x, w1), g1, b1)
    return bn_relu(conv(y, w2), g2, b2)


if __name__ == "__main__":
    B, Cin, Cmid, Cout, H, W = 2, 4, 8, 8, 16, 16

    key = jax.random.PRNGKey(0)
    kx, kw1, kw2, kg1, kb1, kg2, kb2 = jax.random.split(key, 7)

    x = jax.random.normal(kx, (B, Cin, H, W), dtype=jnp.float32)
    # Conv2d weights: (out, in, kh, kw), bias=False
    w1 = jax.random.normal(kw1, (Cmid, Cin, 3, 3), jnp.float32) * 0.2
    w2 = jax.random.normal(kw2, (Cout, Cmid, 3, 3), jnp.float32) * 0.2
    # BatchNorm affine params
    g1 = 1.0 + 0.1 * jax.random.normal(kg1, (Cmid,), jnp.float32)
    b1 = 0.1 * jax.random.normal(kb1, (Cmid,), jnp.float32)
    g2 = 1.0 + 0.1 * jax.random.normal(kg2, (Cout,), jnp.float32)
    b2 = 0.1 * jax.random.normal(kb2, (Cout,), jnp.float32)

    out = jax.block_until_ready(double_conv(x, w1, g1, b1, w2, g2, b2))

    ref = _reference(x, w1, g1, b1, w2, g2, b2)
    assert out.shape == (B, Cout, H, W)
    # bf16 MXU path + bf16 intermediates (f32 accumulation / BN stats)
    # -> loosened tolerance vs f32 reference.
    assert jnp.allclose(out, ref, atol=1e-1, rtol=1e-1), \
        float(jnp.max(jnp.abs(out - ref)))

    print("KERNEL_OK")
</pallas_src>

<mosaic_0001>
module attributes {stable_mosaic.version = 11 : i64} {
  func.func @_conv1_kernel(%arg0: i32, %arg1: i32, %arg2: memref<1x128x4xbf16, #tpu.memory_space<vmem>>, %arg3: memref<1x16x4xbf16, #tpu.memory_space<vmem>>, %arg4: memref<1x16x4xbf16, #tpu.memory_space<vmem>>, %arg5: memref<3x12x128xbf16, #tpu.memory_space<vmem>>, %arg6: memref<1x128x128xbf16, #tpu.memory_space<vmem>>, %arg7: memref<1x2x128xf32, #tpu.memory_space<vmem>>, %arg8: memref<192x4xbf16, #tpu.memory_space<vmem>>, %arg9: memref<128x12xbf16, #tpu.memory_space<vmem>>, %arg10: memref<2x128xf32, #tpu.memory_space<vmem>>) attributes {dimension_semantics = [#tpu.dimension_semantics<parallel>, #tpu.dimension_semantics<arbitrary>], iteration_bounds = array<i64: 2, 2>, scalar_prefetch = 0 : i64, scratch_operands = 3 : i64, tpu.core_type = #tpu.core_type<tc>, window_params = [{transform_indices = @transform_0, window_bounds = array<i64: 1, 128, 4>}, {transform_indices = @transform_1, window_bounds = array<i64: 1, 16, 4>}, {transform_indices = @transform_2, window_bounds = array<i64: 1, 16, 4>}, {pipeline_mode = #tpu.pipeline_mode<synchronous>, transform_indices = @transform_3, window_bounds = array<i64: 3, 12, 128>}, {transform_indices = @transform_4, window_bounds = array<i64: 1, 128, 128>}, {transform_indices = @transform_5, window_bounds = array<i64: 1, 2, 128>}]} {
    %c0 = arith.constant 0 : index
    %c0_0 = arith.constant 0 : index
    %c0_1 = arith.constant 0 : index
    %0 = vector.load %arg2[%c0, %c0_0, %c0_1] : memref<1x128x4xbf16, #tpu.memory_space<vmem>>, vector<1x128x4xbf16>
    %1 = vector.shape_cast %0 : vector<1x128x4xbf16> to vector<128x4xbf16>
    %c0_2 = arith.constant 0 : index
    %c0_3 = arith.constant 0 : index
    %c0_4 = arith.constant 0 : index
    %2 = vector.load %arg3[%c0_2, %c0_3, %c0_4] : memref<1x16x4xbf16, #tpu.memory_space<vmem>>, vector<1x16x4xbf16>
    %3 = vector.shape_cast %2 : vector<1x16x4xbf16> to vector<16x4xbf16>
    %c0_5 = arith.constant 0 : index
    %c0_6 = arith.constant 0 : index
    %c0_7 = arith.constant 0 : index
    %4 = vector.load %arg4[%c0_5, %c0_6, %c0_7] : memref<1x16x4xbf16, #tpu.memory_space<vmem>>, vector<1x16x4xbf16>
    %5 = vector.shape_cast %4 : vector<1x16x4xbf16> to vector<16x4xbf16>
    %cst = arith.constant 0.000000e+00 : bf16
    %6 = vector.broadcast %cst : bf16 to vector<32x4xbf16>
    %c0_8 = arith.constant 0 : index
    %c0_9 = arith.constant 0 : index
    %7 = vector.load %arg8[%c0_8, %c0_9] : memref<192x4xbf16, #tpu.memory_space<vmem>>, vector<32x4xbf16>
    tpu.vector_store %arg8[%c0_8, %c0_9], %6 {strides = array<i32>} : memref<192x4xbf16, #tpu.memory_space<vmem>>, vector<32x4xbf16>,
    %cst_10 = arith.constant 0.000000e+00 : bf16
    %8 = vector.broadcast %cst_10 : bf16 to vector<32x4xbf16>
    %c160 = arith.constant 160 : index
    %c0_11 = arith.constant 0 : index
    %9 = vector.load %arg8[%c160, %c0_11] : memref<192x4xbf16, #tpu.memory_space<vmem>>, vector<32x4xbf16>
    tpu.vector_store %arg8[%c160, %c0_11], %8 {strides = array<i32>} : memref<192x4xbf16, #tpu.memory_space<vmem>>, vector<32x4xbf16>,
    %c0_i32 = arith.constant 0 : i32
    %10 = arith.cmpi sgt, %arg1, %c0_i32 : i32
    %cst_12 = arith.constant 0.000000e+00 : f32
    %11 = arith.truncf %cst_12 : f32 to bf16
    %12 = vector.broadcast %11 : bf16 to vector<16x4xbf16>
    %13 = arith.select %10, %3, %12 : vector<16x4xbf16>
    %c16 = arith.constant 16 : index
    %c0_13 = arith.constant 0 : index
    %14 = vector.load %arg8[%c16, %c0_13] : memref<192x4xbf16, #tpu.memory_space<vmem>>, vector<16x4xbf16>
    tpu.vector_store %arg8[%c16, %c0_13], %13 {strides = array<i32>} : memref<192x4xbf16, #tpu.memory_space<vmem>>, vector<16x4xbf16>,
    %c1_i32 = arith.constant 1 : i32
    %15 = arith.cmpi slt, %arg1, %c1_i32 : i32
    %cst_14 = arith.constant 0.000000e+00 : f32
    %16 = arith.truncf %cst_14 : f32 to bf16
    %17 = vector.broadcast %16 : bf16 to vector<16x4xbf16>
    %18 = arith.select %15, %5, %17 : vector<16x4xbf16>
    %c160_15 = arith.constant 160 : index
    %c0_16 = arith.constant 0 : index
    %19 = vector.load %arg8[%c160_15, %c0_16] : memref<192x4xbf16, #tpu.memory_space<vmem>>, vector<16x4xbf16>
    tpu.vector_store %arg8[%c160_15, %c0_16], %18 {strides = array<i32>} : memref<192x4xbf16, #tpu.memory_space<vmem>>, vector<16x4xbf16>,
    %c32 = arith.constant 32 : index
    %c0_17 = arith.constant 0 : index
    %20 = vector.load %arg8[%c32, %c0_17] : memref<192x4xbf16, #tpu.memory_space<vmem>>, vector<128x4xbf16>
    tpu.vector_store %arg8[%c32, %c0_17], %1 {strides = array<i32>} : memref<192x4xbf16, #tpu.memory_space<vmem>>, vector<128x4xbf16>,
    %21 = tpu.iota {dimensions = array<i32: 0>} : vector<128x1xi32>
    %c16_i32 = arith.constant 16 : i32
    %c0_i32_18 = arith.constant 0 : i32
    %22 = arith.cmpi eq, %c16_i32, %c0_i32_18 : i32
    %c1_i32_19 = arith.constant 1 : i32
    %23 = arith.select %22, %c1_i32_19, %c16_i32 : i32
    %24 = vector.broadcast %23 : i32 to vector<128x1xi32>
    %25 = arith.remsi %21, %24 : vector<128x1xi32>
    %c0_i32_20 = arith.constant 0 : i32
    %26 = vector.broadcast %c0_i32_20 : i32 to vector<128x1xi32>
    %27 = arith.cmpi ne, %25, %26 : vector<128x1xi32>
    %c0_i32_21 = arith.constant 0 : i32
    %28 = vector.broadcast %c0_i32_21 : i32 to vector<128x1xi32>
    %29 = arith.cmpi slt, %25, %28 : vector<128x1xi32>
    %c0_i32_22 = arith.constant 0 : i32
    %30 = arith.cmpi slt, %23, %c0_i32_22 : i32
    %31 = vector.broadcast %30 : i1 to vector<128x1xi1>
    %32 = vector.broadcast %31 : vector<128x1xi1> to vector<128x1xi1>
    %33 = arith.xori %29, %32 : vector<128x1xi1>
    %34 = arith.andi %33, %27 : vector<128x1xi1>
    %35 = vector.broadcast %23 : i32 to vector<128x1xi32>
    %36 = arith.addi %25, %35 : vector<128x1xi32>
    %37 = arith.select %34, %36, %25 : vector<128x1xi1>, vector<128x1xi32>
    %c1_i32_23 = arith.constant 1 : i32
    %38 = vector.broadcast %c1_i32_23 : i32 to vector<128x1xi32>
    %39 = arith.cmpi sge, %37, %38 : vector<128x1xi32>
    %c14_i32 = arith.constant 14 : i32
    %40 = vector.broadcast %c14_i32 : i32 to vector<128x1xi32>
    %41 = arith.cmpi sle, %37, %40 : vector<128x1xi32>
    %c15 = arith.constant 15 : index
    %c0_24 = arith.constant 0 : index
    %42 = vector.load %arg8[%c15, %c0_24] : memref<192x4xbf16, #tpu.memory_space<vmem>>, vector<128x4xbf16>
    %cst_25 = arith.constant 0.000000e+00 : bf16
    %43 = vector.broadcast %cst_25 : bf16 to vector<128x4xbf16>
    %44 = vector.shape_cast %39 : vector<128x1xi1> to vector<128x1xi1>
    %45 = vector.broadcast %44 : vector<128x1xi1> to vector<128x4xi1>
    %46 = arith.select %45, %42, %43 : vector<128x4xi1>, vector<128x4xbf16>
    %c0_26 = arith.constant 0 : index
    %c0_27 = arith.constant 0 : index
    %47 = vector.load %arg9[%c0_26, %c0_27] : memref<128x12xbf16, #tpu.memory_space<vmem>>, vector<128x4xbf16>
    tpu.vector_store %arg9[%c0_26, %c0_27], %46 {strides = array<i32>} : memref<128x12xbf16, #tpu.memory_space<vmem>>, vector<128x4xbf16>,
    %c16_28 = arith.constant 16 : index
    %c0_29 = arith.constant 0 : index
    %48 = vector.load %arg8[%c16_28, %c0_29] : memref<192x4xbf16, #tpu.memory_space<vmem>>, vector<128x4xbf16>
    %c0_30 = arith.constant 0 : index
    %c4 = arith.constant 4 : index
    %49 = vector.load %arg9[%c0_30, %c4] : memref<128x12xbf16, #tpu.memory_space<vmem>>, vector<128x4xbf16>
    tpu.vector_store %arg9[%c0_30, %c4], %48 {strides = array<i32>} : memref<128x12xbf16, #tpu.memory_space<vmem>>, vector<128x4xbf16>,
    %c17 = arith.constant 17 : index
    %c0_31 = arith.constant 0 : index
    %50 = vector.load %arg8[%c17, %c0_31] : memref<192x4xbf16, #tpu.memory_space<vmem>>, vector<128x4xbf16>
    %cst_32 = arith.constant 0.000000e+00 : bf16
    %51 = vector.broadcast %cst_32 : bf16 to vector<128x4xbf16>
    %52 = vector.shape_cast %41 : vector<128x1xi1> to vector<128x1xi1>
    %53 = vector.broadcast %52 : vector<128x1xi1> to vector<128x4xi1>
    %54 = arith.select %53, %50, %51 : vector<128x4xi1>, vector<128x4xbf16>
    %c0_33 = arith.constant 0 : index
    %c8 = arith.constant 8 : index
    %55 = vector.load %arg9[%c0_33, %c8] : memref<128x12xbf16, #tpu.memory_space<vmem>>, vector<128x4xbf16>
    tpu.vector_store %arg9[%c0_33, %c8], %54 {strides = array<i32>} : memref<128x12xbf16, #tpu.memory_space<vmem>>, vector<128x4xbf16>,
    %c0_34 = arith.constant 0 : index
    %c0_35 = arith.constant 0 : index
    %56 = vector.load %arg9[%c0_34, %c0_35] : memref<128x12xbf16, #tpu.memory_space<vmem>>, vector<128x12xbf16>
    %c0_36 = arith.constant 0 : index
    %c0_37 = arith.constant 0 : index
    %c0_38 = arith.constant 0 : index
    %57 = vector.load %arg5[%c0_36, %c0_37, %c0_38] : memref<3x12x128xbf16, #tpu.memory_space<vmem>>, vector<1x12x128xbf16>
    %58 = vector.shape_cast %57 : vector<1x12x128xbf16> to vector<12x128xbf16>
    %cst_39 = arith.constant dense<0.000000e+00> : vector<128x128xf32>
    %59 = tpu.matmul %56, %58, %cst_39 {dimension_numbers = #tpu.dot_dimension_numbers<[1], [0], [0], [1], [0, 0, 1, 1], [], []>} : vector<128x12xbf16>, vector<12x128xbf16>, vector<128x128xf32> -> vector<128x128xf32>
    %c31 = arith.constant 31 : index
    %c0_40 = arith.constant 0 : index
    %60 = vector.load %arg8[%c31, %c0_40] : memref<192x4xbf16, #tpu.memory_space<vmem>>, vector<128x4xbf16>
    %cst_41 = arith.constant 0.000000e+00 : bf16
    %61 = vector.broadcast %cst_41 : bf16 to vector<128x4xbf16>
    %62 = vector.shape_cast %39 : vector<128x1xi1> to vector<128x1xi1>
    %63 = vector.broadcast %62 : vector<128x1xi1> to vector<128x4xi1>
    %64 = arith.select %63, %60, %61 : vector<128x4xi1>, vector<128x4xbf16>
    %c0_42 = arith.constant 0 : index
    %c0_43 = arith.constant 0 : index
    %65 = vector.load %arg9[%c0_42, %c0_43] : memref<128x12xbf16, #tpu.memory_space<vmem>>, vector<128x4xbf16>
    tpu.vector_store %arg9[%c0_42, %c0_43], %64 {strides = array<i32>} : memref<128x12xbf16, #tpu.memory_space<vmem>>, vector<128x4xbf16>,
    %c32_44 = arith.constant 32 : index
    %c0_45 = arith.constant 0 : index
    %66 = vector.load %arg8[%c32_44, %c0_45] : memref<192x4xbf16, #tpu.memory_space<vmem>>, vector<128x4xbf16>
    %c0_46 = arith.constant 0 : index
    %c4_47 = arith.constant 4 : index
    %67 = vector.load %arg9[%c0_46, %c4_47] : memref<128x12xbf16, #tpu.memory_space<vmem>>, vector<128x4xbf16>
    tpu.vector_store %arg9[%c0_46, %c4_47], %66 {strides = array<i32>} : memref<128x12xbf16, #tpu.memory_space<vmem>>, vector<128x4xbf16>,
    %c33 = arith.constant 33 : index
    %c0_48 = arith.constant 0 : index
    %68 = vector.load %arg8[%c33, %c0_48] : memref<192x4xbf16, #tpu.memory_space<vmem>>, vector<128x4xbf16>
    %cst_49 = arith.constant 0.000000e+00 : bf16
    %69 = vector.broadcast %cst_49 : bf16 to vector<128x4xbf16>
    %70 = vector.shape_cast %41 : vector<128x1xi1> to vector<128x1xi1>
    %71 = vector.broadcast %70 : vector<128x1xi1> to vector<128x4xi1>
    %72 = arith.select %71, %68, %69 : vector<128x4xi1>, vector<128x4xbf16>
    %c0_50 = arith.constant 0 : index
    %c8_51 = arith.constant 8 : index
    %73 = vector.load %arg9[%c0_50, %c8_51] : memref<128x12xbf16, #tpu.memory_space<vmem>>, vector<128x4xbf16>
    tpu.vector_store %arg9[%c0_50, %c8_51], %72 {strides = array<i32>} : memref<128x12xbf16, #tpu.memory_space<vmem>>, vector<128x4xbf16>,
    %c0_52 = arith.constant 0 : index
    %c0_53 = arith.constant 0 : index
    %74 = vector.load %arg9[%c0_52, %c0_53] : memref<128x12xbf16, #tpu.memory_space<vmem>>, vector<128x12xbf16>
    %c1 = arith.constant 1 : index
    %c0_54 = arith.constant 0 : index
    %c0_55 = arith.constant 0 : index
    %75 = vector.load %arg5[%c1, %c0_54, %c0_55] : memref<3x12x128xbf16, #tpu.memory_space<vmem>>, vector<1x12x128xbf16>
    %76 = vector.shape_cast %75 : vector<1x12x128xbf16> to vector<12x128xbf16>
    %cst_56 = arith.constant dense<0.000000e+00> : vector<128x128xf32>
    %77 = tpu.matmul %74, %76, %cst_56 {dimension_numbers = #tpu.dot_dimension_numbers<[1], [0], [0], [1], [0, 0, 1, 1], [], []>} : vector<128x12xbf16>, vector<12x128xbf16>, vector<128x128xf32> -> vector<128x128xf32>
    %78 = arith.addf %59, %77 : vector<128x128xf32>
    %c47 = arith.constant 47 : index
    %c0_57 = arith.constant 0 : index
    %79 = vector.load %arg8[%c47, %c0_57] : memref<192x4xbf16, #tpu.memory_space<vmem>>, vector<128x4xbf16>
    %cst_58 = arith.constant 0.000000e+00 : bf16
    %80 = vector.broadcast %cst_58 : bf16 to vector<128x4xbf16>
    %81 = vector.shape_cast %39 : vector<128x1xi1> to vector<128x1xi1>
    %82 = vector.broadcast %81 : vector<128x1xi1> to vector<128x4xi1>
    %83 = arith.select %82, %79, %80 : vector<128x4xi1>, vector<128x4xbf16>
    %c0_59 = arith.constant 0 : index
    %c0_60 = arith.constant 0 : index
    %84 = vector.load %arg9[%c0_59, %c0_60] : memref<128x12xbf16, #tpu.memory_space<vmem>>, vector<128x4xbf16>
    tpu.vector_store %arg9[%c0_59, %c0_60], %83 {strides = array<i32>} : memref<128x12xbf16, #tpu.memory_space<vmem>>, vector<128x4xbf16>,
    %c48 = arith.constant 48 : index
    %c0_61 = arith.constant 0 : index
    %85 = vector.load %arg8[%c48, %c0_61] : memref<192x4xbf16, #tpu.memory_space<vmem>>, vector<128x4xbf16>
    %c0_62 = arith.constant 0 : index
    %c4_63 = arith.constant 4 : index
    %86 = vector.load %arg9[%c0_62, %c4_63] : memref<128x12xbf16, #tpu.memory_space<vmem>>, vector<128x4xbf16>
    tpu.vector_store %arg9[%c0_62, %c4_63], %85 {strides = array<i32>} : memref<128x12xbf16, #tpu.memory_space<vmem>>, vector<128x4xbf16>,
    %c49 = arith.constant 49 : index
    %c0_64 = arith.constant 0 : index
    %87 = vector.load %arg8[%c49, %c0_64] : memref<192x4xbf16, #tpu.memory_space<vmem>>, vector<128x4xbf16>
    %cst_65 = arith.constant 0.000000e+00 : bf16
    %88 = vector.broadcast %cst_65 : bf16 to vector<128x4xbf16>
    %89 = vector.shape_cast %41 : vector<128x1xi1> to vector<128x1xi1>
    %90 = vector.broadcast %89 : vector<128x1xi1> to vector<128x4xi1>
    %91 = arith.select %90, %87, %88 : vector<128x4xi1>, vector<128x4xbf16>
    %c0_66 = arith.constant 0 : index
    %c8_67 = arith.constant 8 : index
    %92 = vector.load %arg9[%c0_66, %c8_67] : memref<128x12xbf16, #tpu.memory_space<vmem>>, vector<128x4xbf16>
    tpu.vector_store %arg9[%c0_66, %c8_67], %91 {strides = array<i32>} : memref<128x12xbf16, #tpu.memory_space<vmem>>, vector<128x4xbf16>,
    %c0_68 = arith.constant 0 : index
    %c0_69 = arith.constant 0 : index
    %93 = vector.load %arg9[%c0_68, %c0_69] : memref<128x12xbf16, #tpu.memory_space<vmem>>, vector<128x12xbf16>
    %c2 = arith.constant 2 : index
    %c0_70 = arith.constant 0 : index
    %c0_71 = arith.constant 0 : index
    %94 = vector.load %arg5[%c2, %c0_70, %c0_71] : memref<3x12x128xbf16, #tpu.memory_space<vmem>>, vector<1x12x128xbf16>
    %95 = vector.shape_cast %94 : vector<1x12x128xbf16> to vector<12x128xbf16>
    %cst_72 = arith.constant dense<0.000000e+00> : vector<128x128xf32>
    %96 = tpu.matmul %93, %95, %cst_72 {dimension_numbers = #tpu.dot_dimension_numbers<[1], [0], [0], [1], [0, 0, 1, 1], [], []>} : vector<128x12xbf16>, vector<12x128xbf16>, vector<128x128xf32> -> vector<128x128xf32>
    %97 = arith.addf %78, %96 : vector<128x128xf32>
    %98 = arith.truncf %97 : vector<128x128xf32> to vector<128x128xbf16>
    %c0_73 = arith.constant 0 : index
    %c0_74 = arith.constant 0 : index
    %c0_75 = arith.constant 0 : index
    %99 = vector.load %arg6[%c0_73, %c0_74, %c0_75] : memref<1x128x128xbf16, #tpu.memory_space<vmem>>, vector<1x128x128xbf16>
    %100 = vector.shape_cast %99 : vector<1x128x128xbf16> to vector<128x128xbf16>
    %101 = vector.shape_cast %98 : vector<128x128xbf16> to vector<1x128x128xbf16>
    tpu.vector_store %arg6[%c0_73, %c0_74, %c0_75], %101 {strides = array<i32>} : memref<1x128x128xbf16, #tpu.memory_space<vmem>>, vector<1x128x128xbf16>,
    %c0_i32_76 = arith.constant 0 : i32
    %102 = arith.cmpi eq, %arg1, %c0_i32_76 : i32
    %103 = arith.extui %102 : i1 to i32
    %c0_i32_77 = arith.constant 0 : i32
    %104 = arith.cmpi ne, %103, %c0_i32_77 : i32
    scf.if %104 {
      %cst_90 = arith.constant 0.000000e+00 : f32
      %119 = vector.broadcast %cst_90 : f32 to vector<2x128xf32>
      %c0_91 = arith.constant 0 : index
      %c0_92 = arith.constant 0 : index
      %120 = vector.load %arg10[%c0_91, %c0_92] : memref<2x128xf32, #tpu.memory_space<vmem>>, vector<2x128xf32>
      tpu.vector_store %arg10[%c0_91, %c0_92], %119 {strides = array<i32>} : memref<2x128xf32, #tpu.memory_space<vmem>>, vector<2x128xf32>,
    } else {
    }
    %c0_78 = arith.constant 0 : index
    %c0_79 = arith.constant 0 : index
    %105 = vector.load %arg10[%c0_78, %c0_79] : memref<2x128xf32, #tpu.memory_space<vmem>>, vector<1x128xf32>
    %cst_80 = arith.constant dense<0.000000e+00> : vector<128xf32>
    %106 = vector.multi_reduction <add>, %97, %cst_80 [0] : vector<128x128xf32> to vector<128xf32>
    %107 = vector.shape_cast %106 : vector<128xf32> to vector<1x128xf32>
    %108 = arith.addf %105, %107 : vector<1x128xf32>
    %c0_81 = arith.constant 0 : index
    %c0_82 = arith.constant 0 : index
    %109 = vector.load %arg10[%c0_81, %c0_82] : memref<2x128xf32, #tpu.memory_space<vmem>>, vector<1x128xf32>
    tpu.vector_store %arg10[%c0_81, %c0_82], %108 {strides = array<i32>} : memref<2x128xf32, #tpu.memory_space<vmem>>, vector<1x128xf32>,
    %c1_83 = arith.constant 1 : index
    %c0_84 = arith.constant 0 : index
    %110 = vector.load %arg10[%c1_83, %c0_84] : memref<2x128xf32, #tpu.memory_space<vmem>>, vector<1x128xf32>
    %111 = arith.mulf %97, %97 : vector<128x128xf32>
    %cst_85 = arith.constant dense<0.000000e+00> : vector<128xf32>
    %112 = vector.multi_reduction <add>, %111, %cst_85 [0] : vector<128x128xf32> to vector<128xf32>
    %113 = vector.shape_cast %112 : vector<128xf32> to vector<1x128xf32>
    %114 = arith.addf %110, %113 : vector<1x128xf32>
    %c1_86 = arith.constant 1 : index
    %c0_87 = arith.constant 0 : index
    %115 = vector.load %arg10[%c1_86, %c0_87] : memref<2x128xf32, #tpu.memory_space<vmem>>, vector<1x128xf32>
    tpu.vector_store %arg10[%c1_86, %c0_87], %114 {strides = array<i32>} : memref<2x128xf32, #tpu.memory_space<vmem>>, vector<1x128xf32>,
    %c1_i32_88 = arith.constant 1 : i32
    %116 = arith.cmpi eq, %arg1, %c1_i32_88 : i32
    %117 = arith.extui %116 : i1 to i32
    %c0_i32_89 = arith.constant 0 : i32
    %118 = arith.cmpi ne, %117, %c0_i32_89 : i32
    scf.if %118 {
      %c0_90 = arith.constant 0 : index
      %c0_91 = arith.constant 0 : index
      %119 = vector.load %arg10[%c0_90, %c0_91] : memref<2x128xf32, #tpu.memory_space<vmem>>, vector<2x128xf32>
      %c0_92 = arith.constant 0 : index
      %c0_93 = arith.constant 0 : index
      %c0_94 = arith.constant 0 : index
      %120 = vector.load %arg7[%c0_92, %c0_93, %c0_94] : memref<1x2x128xf32, #tpu.memory_space<vmem>>, vector<1x2x128xf32>
      %121 = vector.shape_cast %120 : vector<1x2x128xf32> to vector<2x128xf32>
      %122 = vector.shape_cast %119 : vector<2x128xf32> to vector<1x2x128xf32>
      tpu.vector_store %arg7[%c0_92, %c0_93, %c0_94], %122 {strides = array<i32>} : memref<1x2x128xf32, #tpu.memory_space<vmem>>, vector<1x2x128xf32>,
    } else {
    }
    return
  }
  func.func @transform_0(%arg0: i32, %arg1: i32) -> (i32, i32, i32) {
    %c0_i32 = arith.constant 0 : i32
    %c0_i32_0 = arith.constant 0 : i32
    return %arg0, %arg1, %c0_i32 : i32, i32, i32
  }
  func.func @transform_1(%arg0: i32, %arg1: i32) -> (i32, i32, i32) {
    %c8_i32 = arith.constant 8 : i32
    %0 = arith.muli %arg1, %c8_i32 : i32
    %c1_i32 = arith.constant 1 : i32
    %1 = arith.subi %0, %c1_i32 : i32
    %c0_i32 = arith.constant 0 : i32
    %2 = arith.maxsi %1, %c0_i32 : i32
    %c0_i32_0 = arith.constant 0 : i32
    %c0_i32_1 = arith.constant 0 : i32
    return %arg0, %2, %c0_i32_0 : i32, i32, i32
  }
  func.func @transform_2(%arg0: i32, %arg1: i32) -> (i32, i32, i32) {
    %c1_i32 = arith.constant 1 : i32
    %0 = arith.addi %arg1, %c1_i32 : i32
    %c8_i32 = arith.constant 8 : i32
    %1 = arith.muli %0, %c8_i32 : i32
    %c15_i32 = arith.constant 15 : i32
    %2 = arith.minsi %1, %c15_i32 : i32
    %c0_i32 = arith.constant 0 : i32
    %c0_i32_0 = arith.constant 0 : i32
    return %arg0, %2, %c0_i32 : i32, i32, i32
  }
  func.func @transform_3(%arg0: i32, %arg1: i32) -> (i32, i32, i32) {
    %c0_i32 = arith.constant 0 : i32
    %c0_i32_0 = arith.constant 0 : i32
    %c0_i32_1 = arith.constant 0 : i32
    %c0_i32_2 = arith.constant 0 : i32
    return %c0_i32, %c0_i32_0, %c0_i32_1 : i32, i32, i32
  }
  func.func @transform_4(%arg0: i32, %arg1: i32) -> (i32, i32, i32) {
    %c0_i32 = arith.constant 0 : i32
    %c0_i32_0 = arith.constant 0 : i32
    return %arg0, %arg1, %c0_i32 : i32, i32, i32
  }
  func.func @transform_5(%arg0: i32, %arg1: i32) -> (i32, i32, i32) {
    %c0_i32 = arith.constant 0 : i32
    %c0_i32_0 = arith.constant 0 : i32
    %c0_i32_1 = arith.constant 0 : i32
    return %arg0, %c0_i32, %c0_i32_0 : i32, i32, i32
  }
}

module attributes {stable_mosaic.version = 11 : i64} {
  func.func @_bn_relu_kernel(%arg0: i32, %arg1: i32, %arg2: memref<1x128x128xbf16, #tpu.memory_space<vmem>>, %arg3: memref<1x128xf32, #tpu.memory_space<vmem>>, %arg4: memref<1x128xf32, #tpu.memory_space<vmem>>, %arg5: memref<1x128x128xbf16, #tpu.memory_space<vmem>>) attributes {dimension_semantics = [#tpu.dimension_semantics<parallel>, #tpu.dimension_semantics<parallel>], iteration_bounds = array<i64: 2, 2>, scalar_prefetch = 0 : i64, scratch_operands = 0 : i64, tpu.core_type = #tpu.core_type<tc>, window_params = [{transform_indices = @transform_0, window_bounds = array<i64: 1, 128, 128>}, {pipeline_mode = #tpu.pipeline_mode<synchronous>, transform_indices = @transform_1, window_bounds = array<i64: 1, 128>}, {pipeline_mode = #tpu.pipeline_mode<synchronous>, transform_indices = @transform_2, window_bounds = array<i64: 1, 128>}, {transform_indices = @transform_3, window_bounds = array<i64: 1, 128, 128>}]} {
    %c0 = arith.constant 0 : index
    %c0_0 = arith.constant 0 : index
    %c0_1 = arith.constant 0 : index
    %0 = vector.load %arg2[%c0, %c0_0, %c0_1] : memref<1x128x128xbf16, #tpu.memory_space<vmem>>, vector<1x128x128xbf16>
    %1 = vector.shape_cast %0 : vector<1x128x128xbf16> to vector<128x128xbf16>
    %2 = arith.extf %1 : vector<128x128xbf16> to vector<128x128xf32>
    %c0_2 = arith.constant 0 : index
    %c0_3 = arith.constant 0 : index
    %3 = vector.load %arg3[%c0_2, %c0_3] : memref<1x128xf32, #tpu.memory_space<vmem>>, vector<1x128xf32>
    %4 = vector.broadcast %3 : vector<1x128xf32> to vector<128x128xf32>
    %5 = arith.mulf %2, %4 : vector<128x128xf32>
    %c0_4 = arith.constant 0 : index
    %c0_5 = arith.constant 0 : index
    %6 = vector.load %arg4[%c0_4, %c0_5] : memref<1x128xf32, #tpu.memory_space<vmem>>, vector<1x128xf32>
    %7 = vector.broadcast %6 : vector<1x128xf32> to vector<128x128xf32>
    %8 = arith.addf %5, %7 : vector<128x128xf32>
    %cst = arith.constant 0.000000e+00 : f32
    %9 = vector.broadcast %cst : f32 to vector<128x128xf32>
    %10 = arith.maximumf %8, %9 : vector<128x128xf32>
    %11 = arith.truncf %10 : vector<128x128xf32> to vector<128x128xbf16>
    %c0_6 = arith.constant 0 : index
    %c0_7 = arith.constant 0 : index
    %c0_8 = arith.constant 0 : index
    %12 = vector.load %arg5[%c0_6, %c0_7, %c0_8] : memref<1x128x128xbf16, #tpu.memory_space<vmem>>, vector<1x128x128xbf16>
    %13 = vector.shape_cast %12 : vector<1x128x128xbf16> to vector<128x128xbf16>
    %14 = vector.shape_cast %11 : vector<128x128xbf16> to vector<1x128x128xbf16>
    tpu.vector_store %arg5[%c0_6, %c0_7, %c0_8], %14 {strides = array<i32>} : memref<1x128x128xbf16, #tpu.memory_space<vmem>>, vector<1x128x128xbf16>,
    return
  }
  func.func @transform_0(%arg0: i32, %arg1: i32) -> (i32, i32, i32) {
    %c0_i32 = arith.constant 0 : i32
    %c0_i32_0 = arith.constant 0 : i32
    return %arg0, %arg1, %c0_i32 : i32, i32, i32
  }
  func.func @transform_1(%arg0: i32, %arg1: i32) -> (i32, i32) {
    %c0_i32 = arith.constant 0 : i32
    %c0_i32_0 = arith.constant 0 : i32
    %c0_i32_1 = arith.constant 0 : i32
    return %c0_i32, %c0_i32_0 : i32, i32
  }
  func.func @transform_2(%arg0: i32, %arg1: i32) -> (i32, i32) {
    %c0_i32 = arith.constant 0 : i32
    %c0_i32_0 = arith.constant 0 : i32
    %c0_i32_1 = arith.constant 0 : i32
    return %c0_i32, %c0_i32_0 : i32, i32
  }
  func.func @transform_3(%arg0: i32, %arg1: i32) -> (i32, i32, i32) {
    %c0_i32 = arith.constant 0 : i32
    %c0_i32_0 = arith.constant 0 : i32
    return %arg0, %arg1, %c0_i32 : i32, i32, i32
  }
}

module attributes {stable_mosaic.version = 11 : i64} {
  func.func @_bn_relu_conv2_kernel(%arg0: i32, %arg1: i32, %arg2: memref<1x128x128xbf16, #tpu.memory_space<vmem>>, %arg3: memref<1x16x128xbf16, #tpu.memory_space<vmem>>, %arg4: memref<1x16x128xbf16, #tpu.memory_space<vmem>>, %arg5: memref<1x8xf32, #tpu.memory_space<vmem>>, %arg6: memref<1x8xf32, #tpu.memory_space<vmem>>, %arg7: memref<3x24x128xbf16, #tpu.memory_space<vmem>>, %arg8: memref<1x128x128xbf16, #tpu.memory_space<vmem>>, %arg9: memref<1x2x128xf32, #tpu.memory_space<vmem>>, %arg10: memref<192x8xbf16, #tpu.memory_space<vmem>>, %arg11: memref<128x24xbf16, #tpu.memory_space<vmem>>, %arg12: memref<2x128xf32, #tpu.memory_space<vmem>>) attributes {dimension_semantics = [#tpu.dimension_semantics<parallel>, #tpu.dimension_semantics<arbitrary>], iteration_bounds = array<i64: 2, 2>, scalar_prefetch = 0 : i64, scratch_operands = 3 : i64, tpu.core_type = #tpu.core_type<tc>, window_params = [{transform_indices = @transform_0, window_bounds = array<i64: 1, 128, 128>}, {transform_indices = @transform_1, window_bounds = array<i64: 1, 16, 128>}, {transform_indices = @transform_2, window_bounds = array<i64: 1, 16, 128>}, {pipeline_mode = #tpu.pipeline_mode<synchronous>, transform_indices = @transform_3, window_bounds = array<i64: 1, 8>}, {pipeline_mode = #tpu.pipeline_mode<synchronous>, transform_indices = @transform_4, window_bounds = array<i64: 1, 8>}, {pipeline_mode = #tpu.pipeline_mode<synchronous>, transform_indices = @transform_5, window_bounds = array<i64: 3, 24, 128>}, {transform_indices = @transform_6, window_bounds = array<i64: 1, 128, 128>}, {transform_indices = @transform_7, window_bounds = array<i64: 1, 2, 128>}]} {
    %c0 = arith.constant 0 : index
    %c0_0 = arith.constant 0 : index
    %0 = vector.load %arg5[%c0, %c0_0] : memref<1x8xf32, #tpu.memory_space<vmem>>, vector<1x8xf32>
    %c0_1 = arith.constant 0 : index
    %c0_2 = arith.constant 0 : index
    %1 = vector.load %arg6[%c0_1, %c0_2] : memref<1x8xf32, #tpu.memory_space<vmem>>, vector<1x8xf32>
    %c0_3 = arith.constant 0 : index
    %c0_4 = arith.constant 0 : index
    %c0_5 = arith.constant 0 : index
    %2 = vector.load %arg2[%c0_3, %c0_4, %c0_5] : memref<1x128x128xbf16, #tpu.memory_space<vmem>>, vector<1x128x128xbf16>
    %3 = vector.shape_cast %2 : vector<1x128x128xbf16> to vector<128x128xbf16>
    %4 = vector.extract_strided_slice %3 {offsets = [0, 0], sizes = [128, 8], strides = [1, 1]} : vector<128x128xbf16> to vector<128x8xbf16>
    %5 = arith.extf %4 : vector<128x8xbf16> to vector<128x8xf32>
    %6 = vector.broadcast %0 : vector<1x8xf32> to vector<128x8xf32>
    %7 = arith.mulf %5, %6 : vector<128x8xf32>
    %8 = vector.broadcast %1 : vector<1x8xf32> to vector<128x8xf32>
    %9 = arith.addf %7, %8 : vector<128x8xf32>
    %cst = arith.constant 0.000000e+00 : f32
    %10 = vector.broadcast %cst : f32 to vector<128x8xf32>
    %11 = arith.maximumf %9, %10 : vector<128x8xf32>
    %12 = arith.truncf %11 : vector<128x8xf32> to vector<128x8xbf16>
    %c0_6 = arith.constant 0 : index
    %c0_7 = arith.constant 0 : index
    %c0_8 = arith.constant 0 : index
    %13 = vector.load %arg3[%c0_6, %c0_7, %c0_8] : memref<1x16x128xbf16, #tpu.memory_space<vmem>>, vector<1x16x128xbf16>
    %14 = vector.shape_cast %13 : vector<1x16x128xbf16> to vector<16x128xbf16>
    %15 = vector.extract_strided_slice %14 {offsets = [0, 0], sizes = [16, 8], strides = [1, 1]} : vector<16x128xbf16> to vector<16x8xbf16>
    %16 = arith.extf %15 : vector<16x8xbf16> to vector<16x8xf32>
    %17 = vector.broadcast %0 : vector<1x8xf32> to vector<16x8xf32>
    %18 = arith.mulf %16, %17 : vector<16x8xf32>
    %19 = vector.broadcast %1 : vector<1x8xf32> to vector<16x8xf32>
    %20 = arith.addf %18, %19 : vector<16x8xf32>
    %cst_9 = arith.constant 0.000000e+00 : f32
    %21 = vector.broadcast %cst_9 : f32 to vector<16x8xf32>
    %22 = arith.maximumf %20, %21 : vector<16x8xf32>
    %23 = arith.truncf %22 : vector<16x8xf32> to vector<16x8xbf16>
    %c0_10 = arith.constant 0 : index
    %c0_11 = arith.constant 0 : index
    %c0_12 = arith.constant 0 : index
    %24 = vector.load %arg4[%c0_10, %c0_11, %c0_12] : memref<1x16x128xbf16, #tpu.memory_space<vmem>>, vector<1x16x128xbf16>
    %25 = vector.shape_cast %24 : vector<1x16x128xbf16> to vector<16x128xbf16>
    %26 = vector.extract_strided_slice %25 {offsets = [0, 0], sizes = [16, 8], strides = [1, 1]} : vector<16x128xbf16> to vector<16x8xbf16>
    %27 = arith.extf %26 : vector<16x8xbf16> to vector<16x8xf32>
    %28 = vector.broadcast %0 : vector<1x8xf32> to vector<16x8xf32>
    %29 = arith.mulf %27, %28 : vector<16x8xf32>
    %30 = vector.broadcast %1 : vector<1x8xf32> to vector<16x8xf32>
    %31 = arith.addf %29, %30 : vector<16x8xf32>
    %cst_13 = arith.constant 0.000000e+00 : f32
    %32 = vector.broadcast %cst_13 : f32 to vector<16x8xf32>
    %33 = arith.maximumf %31, %32 : vector<16x8xf32>
    %34 = arith.truncf %33 : vector<16x8xf32> to vector<16x8xbf16>
    %cst_14 = arith.constant 0.000000e+00 : bf16
    %35 = vector.broadcast %cst_14 : bf16 to vector<32x8xbf16>
    %c0_15 = arith.constant 0 : index
    %c0_16 = arith.constant 0 : index
    %36 = vector.load %arg10[%c0_15, %c0_16] : memref<192x8xbf16, #tpu.memory_space<vmem>>, vector<32x8xbf16>
    tpu.vector_store %arg10[%c0_15, %c0_16], %35 {strides = array<i32>} : memref<192x8xbf16, #tpu.memory_space<vmem>>, vector<32x8xbf16>,
    %cst_17 = arith.constant 0.000000e+00 : bf16
    %37 = vector.broadcast %cst_17 : bf16 to vector<32x8xbf16>
    %c160 = arith.constant 160 : index
    %c0_18 = arith.constant 0 : index
    %38 = vector.load %arg10[%c160, %c0_18] : memref<192x8xbf16, #tpu.memory_space<vmem>>, vector<32x8xbf16>
    tpu.vector_store %arg10[%c160, %c0_18], %37 {strides = array<i32>} : memref<192x8xbf16, #tpu.memory_space<vmem>>, vector<32x8xbf16>,
    %c0_i32 = arith.constant 0 : i32
    %39 = arith.cmpi sgt, %arg1, %c0_i32 : i32
    %cst_19 = arith.constant 0.000000e+00 : f32
    %40 = arith.truncf %cst_19 : f32 to bf16
    %41 = vector.broadcast %40 : bf16 to vector<16x8xbf16>
    %42 = arith.select %39, %23, %41 : vector<16x8xbf16>
    %c16 = arith.constant 16 : index
    %c0_20 = arith.constant 0 : index
    %43 = vector.load %arg10[%c16, %c0_20] : memref<192x8xbf16, #tpu.memory_space<vmem>>, vector<16x8xbf16>
    tpu.vector_store %arg10[%c16, %c0_20], %42 {strides = array<i32>} : memref<192x8xbf16, #tpu.memory_space<vmem>>, vector<16x8xbf16>,
    %c1_i32 = arith.constant 1 : i32
    %44 = arith.cmpi slt, %arg1, %c1_i32 : i32
    %cst_21 = arith.constant 0.000000e+00 : f32
    %45 = arith.truncf %cst_21 : f32 to bf16
    %46 = vector.broadcast %45 : bf16 to vector<16x8xbf16>
    %47 = arith.select %44, %34, %46 : vector<16x8xbf16>
    %c160_22 = arith.constant 160 : index
    %c0_23 = arith.constant 0 : index
    %48 = vector.load %arg10[%c160_22, %c0_23] : memref<192x8xbf16, #tpu.memory_space<vmem>>, vector<16x8xbf16>
    tpu.vector_store %arg10[%c160_22, %c0_23], %47 {strides = array<i32>} : memref<192x8xbf16, #tpu.memory_space<vmem>>, vector<16x8xbf16>,
    %c32 = arith.constant 32 : index
    %c0_24 = arith.constant 0 : index
    %49 = vector.load %arg10[%c32, %c0_24] : memref<192x8xbf16, #tpu.memory_space<vmem>>, vector<128x8xbf16>
    tpu.vector_store %arg10[%c32, %c0_24], %12 {strides = array<i32>} : memref<192x8xbf16, #tpu.memory_space<vmem>>, vector<128x8xbf16>,
    %50 = tpu.iota {dimensions = array<i32: 0>} : vector<128x1xi32>
    %c16_i32 = arith.constant 16 : i32
    %c0_i32_25 = arith.constant 0 : i32
    %51 = arith.cmpi eq, %c16_i32, %c0_i32_25 : i32
    %c1_i32_26 = arith.constant 1 : i32
    %52 = arith.select %51, %c1_i32_26, %c16_i32 : i32
    %53 = vector.broadcast %52 : i32 to vector<128x1xi32>
    %54 = arith.remsi %50, %53 : vector<128x1xi32>
    %c0_i32_27 = arith.constant 0 : i32
    %55 = vector.broadcast %c0_i32_27 : i32 to vector<128x1xi32>
    %56 = arith.cmpi ne, %54, %55 : vector<128x1xi32>
    %c0_i32_28 = arith.constant 0 : i32
    %57 = vector.broadcast %c0_i32_28 : i32 to vector<128x1xi32>
    %58 = arith.cmpi slt, %54, %57 : vector<128x1xi32>
    %c0_i32_29 = arith.constant 0 : i32
    %59 = arith.cmpi slt, %52, %c0_i32_29 : i32
    %60 = vector.broadcast %59 : i1 to vector<128x1xi1>
    %61 = vector.broadcast %60 : vector<128x1xi1> to vector<128x1xi1>
    %62 = arith.xori %58, %61 : vector<128x1xi1>
    %63 = arith.andi %62, %56 : vector<128x1xi1>
    %64 = vector.broadcast %52 : i32 to vector<128x1xi32>
    %65 = arith.addi %54, %64 : vector<128x1xi32>
    %66 = arith.select %63, %65, %54 : vector<128x1xi1>, vector<128x1xi32>
    %c1_i32_30 = arith.constant 1 : i32
    %67 = vector.broadcast %c1_i32_30 : i32 to vector<128x1xi32>
    %68 = arith.cmpi sge, %66, %67 : vector<128x1xi32>
    %c14_i32 = arith.constant 14 : i32
    %69 = vector.broadcast %c14_i32 : i32 to vector<128x1xi32>
    %70 = arith.cmpi sle, %66, %69 : vector<128x1xi32>
    %c15 = arith.constant 15 : index
    %c0_31 = arith.constant 0 : index
    %71 = vector.load %arg10[%c15, %c0_31] : memref<192x8xbf16, #tpu.memory_space<vmem>>, vector<128x8xbf16>
    %cst_32 = arith.constant 0.000000e+00 : bf16
    %72 = vector.broadcast %cst_32 : bf16 to vector<128x8xbf16>
    %73 = vector.shape_cast %68 : vector<128x1xi1> to vector<128x1xi1>
    %74 = vector.broadcast %73 : vector<128x1xi1> to vector<128x8xi1>
    %75 = arith.select %74, %71, %72 : vector<128x8xi1>, vector<128x8xbf16>
    %c0_33 = arith.constant 0 : index
    %c0_34 = arith.constant 0 : index
    %76 = vector.load %arg11[%c0_33, %c0_34] : memref<128x24xbf16, #tpu.memory_space<vmem>>, vector<128x8xbf16>
    tpu.vector_store %arg11[%c0_33, %c0_34], %75 {strides = array<i32>} : memref<128x24xbf16, #tpu.memory_space<vmem>>, vector<128x8xbf16>,
    %c16_35 = arith.constant 16 : index
    %c0_36 = arith.constant 0 : index
    %77 = vector.load %arg10[%c16_35, %c0_36] : memref<192x8xbf16, #tpu.memory_space<vmem>>, vector<128x8xbf16>
    %c0_37 = arith.constant 0 : index
    %c8 = arith.constant 8 : index
    %78 = vector.load %arg11[%c0_37, %c8] : memref<128x24xbf16, #tpu.memory_space<vmem>>, vector<128x8xbf16>
    tpu.vector_store %arg11[%c0_37, %c8], %77 {strides = array<i32>} : memref<128x24xbf16, #tpu.memory_space<vmem>>, vector<128x8xbf16>,
    %c17 = arith.constant 17 : index
    %c0_38 = arith.constant 0 : index
    %79 = vector.load %arg10[%c17, %c0_38] : memref<192x8xbf16, #tpu.memory_space<vmem>>, vector<128x8xbf16>
    %cst_39 = arith.constant 0.000000e+00 : bf16
    %80 = vector.broadcast %cst_39 : bf16 to vector<128x8xbf16>
    %81 = vector.shape_cast %70 : vector<128x1xi1> to vector<128x1xi1>
    %82 = vector.broadcast %81 : vector<128x1xi1> to vector<128x8xi1>
    %83 = arith.select %82, %79, %80 : vector<128x8xi1>, vector<128x8xbf16>
    %c0_40 = arith.constant 0 : index
    %c16_41 = arith.constant 16 : index
    %84 = vector.load %arg11[%c0_40, %c16_41] : memref<128x24xbf16, #tpu.memory_space<vmem>>, vector<128x8xbf16>
    tpu.vector_store %arg11[%c0_40, %c16_41], %83 {strides = array<i32>} : memref<128x24xbf16, #tpu.memory_space<vmem>>, vector<128x8xbf16>,
    %c0_42 = arith.constant 0 : index
    %c0_43 = arith.constant 0 : index
    %85 = vector.load %arg11[%c0_42, %c0_43] : memref<128x24xbf16, #tpu.memory_space<vmem>>, vector<128x24xbf16>
    %c0_44 = arith.constant 0 : index
    %c0_45 = arith.constant 0 : index
    %c0_46 = arith.constant 0 : index
    %86 = vector.load %arg7[%c0_44, %c0_45, %c0_46] : memref<3x24x128xbf16, #tpu.memory_space<vmem>>, vector<1x24x128xbf16>
    %87 = vector.shape_cast %86 : vector<1x24x128xbf16> to vector<24x128xbf16>
    %cst_47 = arith.constant dense<0.000000e+00> : vector<128x128xf32>
    %88 = tpu.matmul %85, %87, %cst_47 {dimension_numbers = #tpu.dot_dimension_numbers<[1], [0], [0], [1], [0, 0, 1, 1], [], []>} : vector<128x24xbf16>, vector<24x128xbf16>, vector<128x128xf32> -> vector<128x128xf32>
    %c31 = arith.constant 31 : index
    %c0_48 = arith.constant 0 : index
    %89 = vector.load %arg10[%c31, %c0_48] : memref<192x8xbf16, #tpu.memory_space<vmem>>, vector<128x8xbf16>
    %cst_49 = arith.constant 0.000000e+00 : bf16
    %90 = vector.broadcast %cst_49 : bf16 to vector<128x8xbf16>
    %91 = vector.shape_cast %68 : vector<128x1xi1> to vector<128x1xi1>
    %92 = vector.broadcast %91 : vector<128x1xi1> to vector<128x8xi1>
    %93 = arith.select %92, %89, %90 : vector<128x8xi1>, vector<128x8xbf16>
    %c0_50 = arith.constant 0 : index
    %c0_51 = arith.constant 0 : index
    %94 = vector.load %arg11[%c0_50, %c0_51] : memref<128x24xbf16, #tpu.memory_space<vmem>>, vector<128x8xbf16>
    tpu.vector_store %arg11[%c0_50, %c0_51], %93 {strides = array<i32>} : memref<128x24xbf16, #tpu.memory_space<vmem>>, vector<128x8xbf16>,
    %c32_52 = arith.constant 32 : index
    %c0_53 = arith.constant 0 : index
    %95 = vector.load %arg10[%c32_52, %c0_53] : memref<192x8xbf16, #tpu.memory_space<vmem>>, vector<128x8xbf16>
    %c0_54 = arith.constant 0 : index
    %c8_55 = arith.constant 8 : index
    %96 = vector.load %arg11[%c0_54, %c8_55] : memref<128x24xbf16, #tpu.memory_space<vmem>>, vector<128x8xbf16>
    tpu.vector_store %arg11[%c0_54, %c8_55], %95 {strides = array<i32>} : memref<128x24xbf16, #tpu.memory_space<vmem>>, vector<128x8xbf16>,
    %c33 = arith.constant 33 : index
    %c0_56 = arith.constant 0 : index
    %97 = vector.load %arg10[%c33, %c0_56] : memref<192x8xbf16, #tpu.memory_space<vmem>>, vector<128x8xbf16>
    %cst_57 = arith.constant 0.000000e+00 : bf16
    %98 = vector.broadcast %cst_57 : bf16 to vector<128x8xbf16>
    %99 = vector.shape_cast %70 : vector<128x1xi1> to vector<128x1xi1>
    %100 = vector.broadcast %99 : vector<128x1xi1> to vector<128x8xi1>
    %101 = arith.select %100, %97, %98 : vector<128x8xi1>, vector<128x8xbf16>
    %c0_58 = arith.constant 0 : index
    %c16_59 = arith.constant 16 : index
    %102 = vector.load %arg11[%c0_58, %c16_59] : memref<128x24xbf16, #tpu.memory_space<vmem>>, vector<128x8xbf16>
    tpu.vector_store %arg11[%c0_58, %c16_59], %101 {strides = array<i32>} : memref<128x24xbf16, #tpu.memory_space<vmem>>, vector<128x8xbf16>,
    %c0_60 = arith.constant 0 : index
    %c0_61 = arith.constant 0 : index
    %103 = vector.load %arg11[%c0_60, %c0_61] : memref<128x24xbf16, #tpu.memory_space<vmem>>, vector<128x24xbf16>
    %c1 = arith.constant 1 : index
    %c0_62 = arith.constant 0 : index
    %c0_63 = arith.constant 0 : index
    %104 = vector.load %arg7[%c1, %c0_62, %c0_63] : memref<3x24x128xbf16, #tpu.memory_space<vmem>>, vector<1x24x128xbf16>
    %105 = vector.shape_cast %104 : vector<1x24x128xbf16> to vector<24x128xbf16>
    %cst_64 = arith.constant dense<0.000000e+00> : vector<128x128xf32>
    %106 = tpu.matmul %103, %105, %cst_64 {dimension_numbers = #tpu.dot_dimension_numbers<[1], [0], [0], [1], [0, 0, 1, 1], [], []>} : vector<128x24xbf16>, vector<24x128xbf16>, vector<128x128xf32> -> vector<128x128xf32>
    %107 = arith.addf %88, %106 : vector<128x128xf32>
    %c47 = arith.constant 47 : index
    %c0_65 = arith.constant 0 : index
    %108 = vector.load %arg10[%c47, %c0_65] : memref<192x8xbf16, #tpu.memory_space<vmem>>, vector<128x8xbf16>
    %cst_66 = arith.constant 0.000000e+00 : bf16
    %109 = vector.broadcast %cst_66 : bf16 to vector<128x8xbf16>
    %110 = vector.shape_cast %68 : vector<128x1xi1> to vector<128x1xi1>
    %111 = vector.broadcast %110 : vector<128x1xi1> to vector<128x8xi1>
    %112 = arith.select %111, %108, %109 : vector<128x8xi1>, vector<128x8xbf16>
    %c0_67 = arith.constant 0 : index
    %c0_68 = arith.constant 0 : index
    %113 = vector.load %arg11[%c0_67, %c0_68] : memref<128x24xbf16, #tpu.memory_space<vmem>>, vector<128x8xbf16>
    tpu.vector_store %arg11[%c0_67, %c0_68], %112 {strides = array<i32>} : memref<128x24xbf16, #tpu.memory_space<vmem>>, vector<128x8xbf16>,
    %c48 = arith.constant 48 : index
    %c0_69 = arith.constant 0 : index
    %114 = vector.load %arg10[%c48, %c0_69] : memref<192x8xbf16, #tpu.memory_space<vmem>>, vector<128x8xbf16>
    %c0_70 = arith.constant 0 : index
    %c8_71 = arith.constant 8 : index
    %115 = vector.load %arg11[%c0_70, %c8_71] : memref<128x24xbf16, #tpu.memory_space<vmem>>, vector<128x8xbf16>
    tpu.vector_store %arg11[%c0_70, %c8_71], %114 {strides = array<i32>} : memref<128x24xbf16, #tpu.memory_space<vmem>>, vector<128x8xbf16>,
    %c49 = arith.constant 49 : index
    %c0_72 = arith.constant 0 : index
    %116 = vector.load %arg10[%c49, %c0_72] : memref<192x8xbf16, #tpu.memory_space<vmem>>, vector<128x8xbf16>
    %cst_73 = arith.constant 0.000000e+00 : bf16
    %117 = vector.broadcast %cst_73 : bf16 to vector<128x8xbf16>
    %118 = vector.shape_cast %70 : vector<128x1xi1> to vector<128x1xi1>
    %119 = vector.broadcast %118 : vector<128x1xi1> to vector<128x8xi1>
    %120 = arith.select %119, %116, %117 : vector<128x8xi1>, vector<128x8xbf16>
    %c0_74 = arith.constant 0 : index
    %c16_75 = arith.constant 16 : index
    %121 = vector.load %arg11[%c0_74, %c16_75] : memref<128x24xbf16, #tpu.memory_space<vmem>>, vector<128x8xbf16>
    tpu.vector_store %arg11[%c0_74, %c16_75], %120 {strides = array<i32>} : memref<128x24xbf16, #tpu.memory_space<vmem>>, vector<128x8xbf16>,
    %c0_76 = arith.constant 0 : index
    %c0_77 = arith.constant 0 : index
    %122 = vector.load %arg11[%c0_76, %c0_77] : memref<128x24xbf16, #tpu.memory_space<vmem>>, vector<128x24xbf16>
    %c2 = arith.constant 2 : index
    %c0_78 = arith.constant 0 : index
    %c0_79 = arith.constant 0 : index
    %123 = vector.load %arg7[%c2, %c0_78, %c0_79] : memref<3x24x128xbf16, #tpu.memory_space<vmem>>, vector<1x24x128xbf16>
    %124 = vector.shape_cast %123 : vector<1x24x128xbf16> to vector<24x128xbf16>
    %cst_80 = arith.constant dense<0.000000e+00> : vector<128x128xf32>
    %125 = tpu.matmul %122, %124, %cst_80 {dimension_numbers = #tpu.dot_dimension_numbers<[1], [0], [0], [1], [0, 0, 1, 1], [], []>} : vector<128x24xbf16>, vector<24x128xbf16>, vector<128x128xf32> -> vector<128x128xf32>
    %126 = arith.addf %107, %125 : vector<128x128xf32>
    %127 = arith.truncf %126 : vector<128x128xf32> to vector<128x128xbf16>
    %c0_81 = arith.constant 0 : index
    %c0_82 = arith.constant 0 : index
    %c0_83 = arith.constant 0 : index
    %128 = vector.load %arg8[%c0_81, %c0_82, %c0_83] : memref<1x128x128xbf16, #tpu.memory_space<vmem>>, vector<1x128x128xbf16>
    %129 = vector.shape_cast %128 : vector<1x128x128xbf16> to vector<128x128xbf16>
    %130 = vector.shape_cast %127 : vector<128x128xbf16> to vector<1x128x128xbf16>
    tpu.vector_store %arg8[%c0_81, %c0_82, %c0_83], %130 {strides = array<i32>} : memref<1x128x128xbf16, #tpu.memory_space<vmem>>, vector<1x128x128xbf16>,
    %c0_i32_84 = arith.constant 0 : i32
    %131 = arith.cmpi eq, %arg1, %c0_i32_84 : i32
    %132 = arith.extui %131 : i1 to i32
    %c0_i32_85 = arith.constant 0 : i32
    %133 = arith.cmpi ne, %132, %c0_i32_85 : i32
    scf.if %133 {
      %cst_98 = arith.constant 0.000000e+00 : f32
      %148 = vector.broadcast %cst_98 : f32 to vector<2x128xf32>
      %c0_99 = arith.constant 0 : index
      %c0_100 = arith.constant 0 : index
      %149 = vector.load %arg12[%c0_99, %c0_100] : memref<2x128xf32, #tpu.memory_space<vmem>>, vector<2x128xf32>
      tpu.vector_store %arg12[%c0_99, %c0_100], %148 {strides = array<i32>} : memref<2x128xf32, #tpu.memory_space<vmem>>, vector<2x128xf32>,
    } else {
    }
    %c0_86 = arith.constant 0 : index
    %c0_87 = arith.constant 0 : index
    %134 = vector.load %arg12[%c0_86, %c0_87] : memref<2x128xf32, #tpu.memory_space<vmem>>, vector<1x128xf32>
    %cst_88 = arith.constant dense<0.000000e+00> : vector<128xf32>
    %135 = vector.multi_reduction <add>, %126, %cst_88 [0] : vector<128x128xf32> to vector<128xf32>
    %136 = vector.shape_cast %135 : vector<128xf32> to vector<1x128xf32>
    %137 = arith.addf %134, %136 : vector<1x128xf32>
    %c0_89 = arith.constant 0 : index
    %c0_90 = arith.constant 0 : index
    %138 = vector.load %arg12[%c0_89, %c0_90] : memref<2x128xf32, #tpu.memory_space<vmem>>, vector<1x128xf32>
    tpu.vector_store %arg12[%c0_89, %c0_90], %137 {strides = array<i32>} : memref<2x128xf32, #tpu.memory_space<vmem>>, vector<1x128xf32>,
    %c1_91 = arith.constant 1 : index
    %c0_92 = arith.constant 0 : index
    %139 = vector.load %arg12[%c1_91, %c0_92] : memref<2x128xf32, #tpu.memory_space<vmem>>, vector<1x128xf32>
    %140 = arith.mulf %126, %126 : vector<128x128xf32>
    %cst_93 = arith.constant dense<0.000000e+00> : vector<128xf32>
    %141 = vector.multi_reduction <add>, %140, %cst_93 [0] : vector<128x128xf32> to vector<128xf32>
    %142 = vector.shape_cast %141 : vector<128xf32> to vector<1x128xf32>
    %143 = arith.addf %139, %142 : vector<1x128xf32>
    %c1_94 = arith.constant 1 : index
    %c0_95 = arith.constant 0 : index
    %144 = vector.load %arg12[%c1_94, %c0_95] : memref<2x128xf32, #tpu.memory_space<vmem>>, vector<1x128xf32>
    tpu.vector_store %arg12[%c1_94, %c0_95], %143 {strides = array<i32>} : memref<2x128xf32, #tpu.memory_space<vmem>>, vector<1x128xf32>,
    %c1_i32_96 = arith.constant 1 : i32
    %145 = arith.cmpi eq, %arg1, %c1_i32_96 : i32
    %146 = arith.extui %145 : i1 to i32
    %c0_i32_97 = arith.constant 0 : i32
    %147 = arith.cmpi ne, %146, %c0_i32_97 : i32
    scf.if %147 {
      %c0_98 = arith.constant 0 : index
      %c0_99 = arith.constant 0 : index
      %148 = vector.load %arg12[%c0_98, %c0_99] : memref<2x128xf32, #tpu.memory_space<vmem>>, vector<2x128xf32>
      %c0_100 = arith.constant 0 : index
      %c0_101 = arith.constant 0 : index
      %c0_102 = arith.constant 0 : index
      %149 = vector.load %arg9[%c0_100, %c0_101, %c0_102] : memref<1x2x128xf32, #tpu.memory_space<vmem>>, vector<1x2x128xf32>
      %150 = vector.shape_cast %149 : vector<1x2x128xf32> to vector<2x128xf32>
      %151 = vector.shape_cast %148 : vector<2x128xf32> to vector<1x2x128xf32>
      tpu.vector_store %arg9[%c0_100, %c0_101, %c0_102], %151 {strides = array<i32>} : memref<1x2x128xf32, #tpu.memory_space<vmem>>, vector<1x2x128xf32>,
    } else {
    }
    return
  }
  func.func @transform_0(%arg0: i32, %arg1: i32) -> (i32, i32, i32) {
    %c0_i32 = arith.constant 0 : i32
    %c0_i32_0 = arith.constant 0 : i32
    return %arg0, %arg1, %c0_i32 : i32, i32, i32
  }
  func.func @transform_1(%arg0: i32, %arg1: i32) -> (i32, i32, i32) {
    %c8_i32 = arith.constant 8 : i32
    %0 = arith.muli %arg1, %c8_i32 : i32
    %c1_i32 = arith.constant 1 : i32
    %1 = arith.subi %0, %c1_i32 : i32
    %c0_i32 = arith.constant 0 : i32
    %2 = arith.maxsi %1, %c0_i32 : i32
    %c0_i32_0 = arith.constant 0 : i32
    %c0_i32_1 = arith.constant 0 : i32
    return %arg0, %2, %c0_i32_0 : i32, i32, i32
  }
  func.func @transform_2(%arg0: i32, %arg1: i32) -> (i32, i32, i32) {
    %c1_i32 = arith.constant 1 : i32
    %0 = arith.addi %arg1, %c1_i32 : i32
    %c8_i32 = arith.constant 8 : i32
    %1 = arith.muli %0, %c8_i32 : i32
    %c15_i32 = arith.constant 15 : i32
    %2 = arith.minsi %1, %c15_i32 : i32
    %c0_i32 = arith.constant 0 : i32
    %c0_i32_0 = arith.constant 0 : i32
    return %arg0, %2, %c0_i32 : i32, i32, i32
  }
  func.func @transform_3(%arg0: i32, %arg1: i32) -> (i32, i32) {
    %c0_i32 = arith.constant 0 : i32
    %c0_i32_0 = arith.constant 0 : i32
    %c0_i32_1 = arith.constant 0 : i32
    return %c0_i32, %c0_i32_0 : i32, i32
  }
  func.func @transform_4(%arg0: i32, %arg1: i32) -> (i32, i32) {
    %c0_i32 = arith.constant 0 : i32
    %c0_i32_0 = arith.constant 0 : i32
    %c0_i32_1 = arith.constant 0 : i32
    return %c0_i32, %c0_i32_0 : i32, i32
  }
  func.func @transform_5(%arg0: i32, %arg1: i32) -> (i32, i32, i32) {
    %c0_i32 = arith.constant 0 : i32
    %c0_i32_0 = arith.constant 0 : i32
    %c0_i32_1 = arith.constant 0 : i32
    %c0_i32_2 = arith.constant 0 : i32
    return %c0_i32, %c0_i32_0, %c0_i32_1 : i32, i32, i32
  }
  func.func @transform_6(%arg0: i32, %arg1: i32) -> (i32, i32, i32) {
    %c0_i32 = arith.constant 0 : i32
    %c0_i32_0 = arith.constant 0 : i32
    return %arg0, %arg1, %c0_i32 : i32, i32, i32
  }
  func.func @transform_7(%arg0: i32, %arg1: i32) -> (i32, i32, i32) {
    %c0_i32 = arith.constant 0 : i32
    %c0_i32_0 = arith.constant 0 : i32
    %c0_i32_1 = arith.constant 0 : i32
    return %arg0, %c0_i32, %c0_i32_0 : i32, i32, i32
  }
}

</mosaic_0001>

<llo_original>
// kernel: double_conv.5
$region0: #{double_conv.5}
  #allocation0 [shape = 'u32[]', space=smem, size = 0x4, offset = 0x4, fixed_abs, tag = 'smem constant byte address 0x4 - core index']
  #allocation1 [shape = 'u32[144,128]{1,0:T(1,128)}', space=vmem, size = 0x12000, scoped, tag = 'internal scratch']
  %s0 = inlined_call_operand.vmem [shape: bf16[2,256,128], index: 0, kind: input, shape index: {}, may-alias: {0,3}]
  %s1 = inlined_call_operand.vmem [shape: f32[1,128], index: 1, kind: input, shape index: {}]
  %s2 = inlined_call_operand.vmem [shape: f32[1,128], index: 2, kind: input, shape index: {}]
  %s3 = inlined_call_operand.vmem [shape: bf16[2,256,128], index: 3, kind: output, shape index: {}, may-alias: {0,3}]
  %s4 = sld [smem:[#allocation0]]
  $region45: #{double_conv.5} parent=0
    _
  %s6 = ssub.s32 1, %s4
  %s7 = scalar_select 0, %s6, %s4
  loop: start=0, step=1, limit=6
  $region2: #{double_conv.5} parent=0 // loop_pre_header
    _
  $region3: #{double_conv.5} parent=0 // loop_header
    %s9 = sphi 0, %s13
    %p10 = scmp.ge.s32.totalorder %s9, 6
    %s16 = sphi 0, %s28
    %s17 = sphi 0, %s24
    %s18 = sphi 0, %s16
    %s19 = sphi 0, %s17
    %s20 = sphi 0, %s18
    %s21 = sphi 0, %s19
    %s33 = sphi 0, %s35
    %s36 = sphi 0, %s33
    %s37 = sphi 0, %s36
    %s53 = sphi 0, %s37
    %s57 = sphi 0, %s57
    %s59 = sphi 0, %s57
    %s60 = sphi 0, %s59
    %s74 = sphi 0, %s60
    %s78 = sphi 0, %s78
    %s80 = sphi 0, %s78
    %s81 = sphi 0, %s80
    %s95 = sphi 0, %s81
    %s103 = sphi 0, %s105
    %s106 = sphi 0, %s103
    %s107 = sphi 0, %s106
    %s123 = sphi 0, %s107
  $region4: #{double_conv.5} parent=0 // loop_header_branch
    %12 = sbr.rel (%p10) target = $region8
  $region5: #{double_conv.5} parent=0 // loop_body
    %s14 = ssub.s32 %s9, 1
    %s15 = ssub.s32 %s9, 2
    %s22 = sadd.s32 1, %s17
    %p23 = scmp.ge.s32.totalorder %s22, 2
    %s24 = scalar_select %p23, 0, %s22
    %s25 = sadd.s32 1, %s16
    %s26 = scalar_select %p23, %s25, %s16
    %p27 = scmp.ge.s32.totalorder %s26, 2
    %s28 = scalar_select %p27, 0, %s26
    %s29 = ssub.s32 %s16, %s28
    %s30 = ssub.s32 %s17, %s24
    %s31 = sor.u32 %s29, %s30
    %p32 = scmp.eq.s32.totalorder %s31, 0
    %s34 = sadd.s32 %s33, 1
    %s35 = scalar_select %p32, %s33, %s34
    %p38 = pneg %p32
    %p39 = scmp.eq.s32.totalorder %s9, 3
    %p40 = por %p38, %p39
    %p41 = scmp.ne.s32.totalorder %s33, %s36
    %p42 = scmp.eq.s32.totalorder %s9, 0
    %p43 = por %p41, %p42
    %p44 = scmp.ne.s32.totalorder %s33, %s36
    %p45 = scmp.eq.s32.totalorder %s14, 3
    %p46 = por %p44, %p45
    %p47 = scmp.ne.s32.totalorder %s36, %s37
    %p48 = scmp.eq.s32.totalorder %s14, 0
    %p49 = por %p47, %p48
    %p50 = scmp.ne.s32.totalorder %s36, %s37
    %p51 = scmp.eq.s32.totalorder %s15, 3
    %p52 = por %p50, %p51
    %p54 = scmp.ne.s32.totalorder %s37, %s53
    %p55 = scmp.eq.s32.totalorder %s15, 0
    %p56 = por %p54, %p55
    %s58 = sadd.s32 %s57, 1
    %p61 = scmp.eq.s32.totalorder %s9, 3
    %p62 = scmp.ne.s32.totalorder %s57, %s59
    %p63 = scmp.eq.s32.totalorder %s9, 0
    %p64 = por %p62, %p63
    %p65 = scmp.ne.s32.totalorder %s57, %s59
    %p66 = scmp.eq.s32.totalorder %s14, 3
    %p67 = por %p65, %p66
    %p68 = scmp.ne.s32.totalorder %s59, %s60
    %p69 = scmp.eq.s32.totalorder %s14, 0
    %p70 = por %p68, %p69
    %p71 = scmp.ne.s32.totalorder %s59, %s60
    %p72 = scmp.eq.s32.totalorder %s15, 3
    %p73 = por %p71, %p72
    %p75 = scmp.ne.s32.totalorder %s60, %s74
    %p76 = scmp.eq.s32.totalorder %s15, 0
    %p77 = por %p75, %p76
    %s79 = sadd.s32 %s78, 1
    %p82 = scmp.eq.s32.totalorder %s9, 3
    %p83 = scmp.ne.s32.totalorder %s78, %s80
    %p84 = scmp.eq.s32.totalorder %s9, 0
    %p85 = por %p83, %p84
    %p86 = scmp.ne.s32.totalorder %s78, %s80
    %p87 = scmp.eq.s32.totalorder %s14, 3
    %p88 = por %p86, %p87
    %p89 = scmp.ne.s32.totalorder %s80, %s81
    %p90 = scmp.eq.s32.totalorder %s14, 0
    %p91 = por %p89, %p90
    %p92 = scmp.ne.s32.totalorder %s80, %s81
    %p93 = scmp.eq.s32.totalorder %s15, 3
    %p94 = por %p92, %p93
    %p96 = scmp.ne.s32.totalorder %s81, %s95
    %p97 = scmp.eq.s32.totalorder %s15, 0
    %p98 = por %p96, %p97
    %s99 = ssub.s32 %s16, %s28
    %s100 = ssub.s32 %s17, %s24
    %s101 = sor.u32 %s99, %s100
    %p102 = scmp.eq.s32.totalorder %s101, 0
    %s104 = sadd.s32 %s103, 1
    %s105 = scalar_select %p102, %s103, %s104
    %p108 = pneg %p102
    %p109 = scmp.eq.s32.totalorder %s9, 3
    %p110 = por %p108, %p109
    %p111 = scmp.ne.s32.totalorder %s103, %s106
    %p112 = scmp.eq.s32.totalorder %s9, 0
    %p113 = por %p111, %p112
    %p114 = scmp.ne.s32.totalorder %s103, %s106
    %p115 = scmp.eq.s32.totalorder %s14, 3
    %p116 = por %p114, %p115
    %p117 = scmp.ne.s32.totalorder %s106, %s107
    %p118 = scmp.eq.s32.totalorder %s14, 0
    %p119 = por %p117, %p118
    %p120 = scmp.ne.s32.totalorder %s106, %s107
    %p121 = scmp.eq.s32.totalorder %s15, 3
    %p122 = por %p120, %p121
    %p124 = scmp.ne.s32.totalorder %s107, %s123
    %p125 = scmp.eq.s32.totalorder %s15, 0
    %p126 = por %p124, %p125
    %p127 = scmp.le.s32.totalorder 1, %s9
    %p128 = scmp.lt.s32.totalorder %s9, 5
    %p129 = pnand %p127, %p128
    %p130 = pneg %p129
    // Predicated region
    $region9: #{double_conv.5} parent=5 // pred_check
      _
    $region10: #{double_conv.5} parent=5 // pred_check_branch
      %132 = sbr.rel (%p129) target = $region12
    $region11: #{double_conv.5} parent=5 // pred_region
      %s133 = ssub.s32 %s9, 1
      // Predicated region
      $region13: #{double_conv.5} parent=11 // pred_check
        %p134 = pneg %p70
      $region14: #{double_conv.5} parent=11 // pred_check_branch
        %136 = sbr.rel (%p134) target = $region16
      $region15: #{double_conv.5} parent=11 // pred_region
        _
      $region16: #{double_conv.5} parent=11 // pred_fallthru
        _
      // Predicated region
      $region17: #{double_conv.5} parent=11 // pred_check
        %p137 = pneg %p91
      $region18: #{double_conv.5} parent=11 // pred_check_branch
        %139 = sbr.rel (%p137) target = $region20
      $region19: #{double_conv.5} parent=11 // pred_region
        _
      $region20: #{double_conv.5} parent=11 // pred_fallthru
        _
    $region12: #{double_conv.5} parent=5 // pred_fallthru
      _
    %p140 = scmp.lt.s32.totalorder %s9, 4
    // Predicated region
    $region21: #{double_conv.5} parent=5 // pred_check
      %p141 = pneg %p140
    $region22: #{double_conv.5} parent=5 // pred_check_branch
      %143 = sbr.rel (%p141) target = $region24
    $region23: #{double_conv.5} parent=5 // pred_region
      // Predicated region
      $region25: #{double_conv.5} parent=23 // pred_check
        %p144 = pneg %p43
      $region26: #{double_conv.5} parent=23 // pred_check_branch
        %146 = sbr.rel (%p144) target = $region28
      $region27: #{double_conv.5} parent=23 // pred_region
        %s147 = smul.u32 16, %s17
        %p148 = scmp.lt.s32.totalorder %s16, 1
        %s149 = scalar_select %p148, %s16, 1
        %p150 = scmp.lt.s32.totalorder %s147, 31
        %s151 = scalar_select %p150, %s147, 31
        %s152 = smul.addr %s149, 32
        %s153 = sadd.s32 %s151, %s152
        %s154 = smul.addr %s153, 4
        %s155 = scalar_lea.vmem %s0, %s154
        %s156 = smul.u32 16, %s17
      $region28: #{double_conv.5} parent=23 // pred_fallthru
        _
    $region24: #{double_conv.5} parent=5 // pred_fallthru
      _
    %p157 = scmp.le.s32.totalorder 1, %s9
    %p158 = scmp.lt.s32.totalorder %s9, 5
    %p159 = pnand %p157, %p158
    %p160 = pneg %p159
    // Predicated region
    $region29: #{double_conv.5} parent=5 // pred_check
      _
    $region30: #{double_conv.5} parent=5 // pred_check_branch
      %162 = sbr.rel (%p159) target = $region32
    $region31: #{double_conv.5} parent=5 // pred_region
      %s163 = ssub.s32 %s9, 1
      %s164 = smul.u32 16, %s19
      %p165 = scmp.lt.s32.totalorder %s18, 1
      %s166 = scalar_select %p165, %s18, 1
      %p167 = scmp.lt.s32.totalorder %s164, 31
      %s168 = scalar_select %p167, %s164, 31
      %s169 = smul.addr %s166, 32
      %s170 = sadd.s32 %s168, %s169
      %s171 = smul.addr %s170, 4
      %s172 = scalar_lea.vmem %s0, %s171
      %p173 = pneg %p49
      %p174 = pneg %p46
      %p175 = pneg %p70
      %p176 = pneg %p67
      %p177 = pneg %p91
      %p178 = pneg %p88
      %p179 = pneg %p119
      %p180 = pneg %p116
      %s181 = smul.u32 16, %s19
      %p182 = scmp.lt.s32.totalorder %s18, 1
      %s183 = scalar_select %p182, %s18, 1
      %p184 = scmp.lt.s32.totalorder %s181, 31
      %s185 = scalar_select %p184, %s181, 31
      %s186 = smul.addr %s183, 32
      %s187 = sadd.s32 %s185, %s186
      %s188 = smul.addr %s187, 4
      %s189 = scalar_lea.vmem %s3, %s188
      %s190 = smul.u32 16, %s19
      %p191 = scmp.lt.s32.totalorder %s18, 1
      %s192 = scalar_select %p191, %s18, 1
      %p193 = scmp.lt.s32.totalorder %s190, 31
      %s194 = scalar_select %p193, %s190, 31
      %s195 = smul.addr %s192, 32
      %s196 = sadd.s32 %s194, %s195
      %s197 = smul.addr %s196, 4
      %s198 = scalar_lea.vmem %s0, %s197
      %s199 = smul.u32 16, %s19
      %s200 = smul.u32 16, %s19
      %p201 = scmp.lt.s32.totalorder %s18, 1
      %s202 = scalar_select %p201, %s18, 1
      %p203 = scmp.lt.s32.totalorder %s200, 31
      %s204 = scalar_select %p203, %s200, 31
      %s205 = smul.addr %s202, 32
      %s206 = sadd.s32 %s204, %s205
      %s207 = smul.addr %s206, 4
      %s208 = scalar_lea.vmem %s3, %s207
      %s209 = smul.u32 16, %s19
      %v210 = vld [vmem:[%s198] sm:$0xf]
      %v211 = vld [vmem:[%s198 + $0x4] sm:$0xf]
      %v212 = vld [vmem:[%s198 + $0x8] sm:$0xf]
      %v213 = vld [vmem:[%s198 + $0xc] sm:$0xf]
      %v214 = vld [vmem:[%s198 + $0x10] sm:$0xf]
      %v215 = vld [vmem:[%s198 + $0x14] sm:$0xf]
      %v216 = vld [vmem:[%s198 + $0x18] sm:$0xf]
      %v217 = vld [vmem:[%s198 + $0x1c] sm:$0xf]
      %v218 = vld [vmem:[%s198 + $0x20] sm:$0xf]
      %v219 = vld [vmem:[%s198 + $0x24] sm:$0xf]
      %v220 = vld [vmem:[%s198 + $0x28] sm:$0xf]
      %v221 = vld [vmem:[%s198 + $0x2c] sm:$0xf]
      %v222 = vld [vmem:[%s198 + $0x30] sm:$0xf]
      %v223 = vld [vmem:[%s198 + $0x34] sm:$0xf]
      %v224 = vld [vmem:[%s198 + $0x38] sm:$0xf]
      %v225 = vld [vmem:[%s198 + $0x3c] sm:$0xf]
      %v226 = vunpack.c.l.bf16 %v210
      %v227 = vunpack.c.l.bf16 %v211
      %v228 = vunpack.c.l.bf16 %v212
      %v229 = vunpack.c.l.bf16 %v213
      %v230 = vunpack.c.l.bf16 %v214
      %v231 = vunpack.c.l.bf16 %v215
      %v232 = vunpack.c.l.bf16 %v216
      %v233 = vunpack.c.l.bf16 %v217
      %v234 = vunpack.c.l.bf16 %v218
      %v235 = vunpack.c.l.bf16 %v219
      %v236 = vunpack.c.l.bf16 %v220
      %v237 = vunpack.c.l.bf16 %v221
      %v238 = vunpack.c.l.bf16 %v222
      %v239 = vunpack.c.l.bf16 %v223
      %v240 = vunpack.c.l.bf16 %v224
      %v241 = vunpack.c.l.bf16 %v225
      %v242 = vld [vmem:[%s1] sm:$0x1]
      %v244 = vlaneseq
      %v245 = vshrl.u32 %v244, 7
      %v246 = vsub.s32 0, %v245
      %v247 = vrot.slane %v242, %v246
      %v249 = vmul.f32 %v226, %v247
      %v250 = vmul.f32 %v227, %v247
      %v251 = vmul.f32 %v228, %v247
      %v252 = vmul.f32 %v229, %v247
      %v253 = vmul.f32 %v230, %v247
      %v254 = vmul.f32 %v231, %v247
      %v255 = vmul.f32 %v232, %v247
      %v256 = vmul.f32 %v233, %v247
      %v257 = vmul.f32 %v234, %v247
      %v258 = vmul.f32 %v235, %v247
      %v259 = vmul.f32 %v236, %v247
      %v260 = vmul.f32 %v237, %v247
      %v261 = vmul.f32 %v238, %v247
      %v262 = vmul.f32 %v239, %v247
      %v263 = vmul.f32 %v240, %v247
      %v264 = vmul.f32 %v241, %v247
      %v265 = vld [vmem:[%s2] sm:$0x1]
      %v267 = vlaneseq
      %v268 = vshrl.u32 %v267, 7
      %v269 = vsub.s32 0, %v268
      %v270 = vrot.slane %v265, %v269
      %v272 = vadd.f32 %v249, %v270
      %v273 = vadd.f32 %v250, %v270
      %v274 = vadd.f32 %v251, %v270
      %v275 = vadd.f32 %v252, %v270
      %v276 = vadd.f32 %v253, %v270
      %v277 = vadd.f32 %v254, %v270
      %v278 = vadd.f32 %v255, %v270
      %v279 = vadd.f32 %v256, %v270
      %v280 = vadd.f32 %v257, %v270
      %v281 = vadd.f32 %v258, %v270
      %v282 = vadd.f32 %v259, %v270
      %v283 = vadd.f32 %v260, %v270
      %v284 = vadd.f32 %v261, %v270
      %v285 = vadd.f32 %v262, %v270
      %v286 = vadd.f32 %v263, %v270
      %v287 = vadd.f32 %v264, %v270
      %v288 = vmax.f32 %v272, 0.0
      %v289 = vmax.f32 %v273, 0.0
      %v290 = vmax.f32 %v274, 0.0
      %v291 = vmax.f32 %v275, 0.0
      %v292 = vmax.f32 %v276, 0.0
      %v293 = vmax.f32 %v277, 0.0
      %v294 = vmax.f32 %v278, 0.0
      %v295 = vmax.f32 %v279, 0.0
      %v296 = vmax.f32 %v280, 0.0
      %v297 = vmax.f32 %v281, 0.0
      %v298 = vmax.f32 %v282, 0.0
      %v299 = vmax.f32 %v283, 0.0
      %v300 = vmax.f32 %v284, 0.0
      %v301 = vmax.f32 %v285, 0.0
      %v302 = vmax.f32 %v286, 0.0
      %v303 = vmax.f32 %v287, 0.0
      %v304 = vpack.c.bf16 %v289, %v288
      %v305 = vpack.c.bf16 %v291, %v290
      %v306 = vpack.c.bf16 %v293, %v292
      %v307 = vpack.c.bf16 %v295, %v294
      %v308 = vpack.c.bf16 %v297, %v296
      %v309 = vpack.c.bf16 %v299, %v298
      %v310 = vpack.c.bf16 %v301, %v300
      %v311 = vpack.c.bf16 %v303, %v302
      %v320 = vunpack.c.l.b16 %v304
      %v321 = vunpack.c.h.b16 %v304
      %v322 = vunpack.c.l.b16 %v305
      %v323 = vunpack.c.h.b16 %v305
      %v324 = vunpack.c.l.b16 %v306
      %v325 = vunpack.c.h.b16 %v306
      %v326 = vunpack.c.l.b16 %v307
      %v327 = vunpack.c.h.b16 %v307
      %v328 = vunpack.c.l.b16 %v308
      %v329 = vunpack.c.h.b16 %v308
      %v330 = vunpack.c.l.b16 %v309
      %v331 = vunpack.c.h.b16 %v309
      %v332 = vunpack.c.l.b16 %v310
      %v333 = vunpack.c.h.b16 %v310
      %v334 = vunpack.c.l.b16 %v311
      %v335 = vunpack.c.h.b16 %v311
      %v336 = vpack.c.b16 %v320, %v320
      %v337 = vpack.c.b16 %v321, %v321
      %v338 = vpack.c.b16 %v322, %v322
      %v339 = vpack.c.b16 %v323, %v323
      %v340 = vpack.c.b16 %v324, %v324
      %v341 = vpack.c.b16 %v325, %v325
      %v342 = vpack.c.b16 %v326, %v326
      %v343 = vpack.c.b16 %v327, %v327
      %v344 = vpack.c.b16 %v328, %v328
      %v345 = vpack.c.b16 %v329, %v329
      %v346 = vpack.c.b16 %v330, %v330
      %v347 = vpack.c.b16 %v331, %v331
      %v348 = vpack.c.b16 %v332, %v332
      %v349 = vpack.c.b16 %v333, %v333
      %v350 = vpack.c.b16 %v334, %v334
      %v351 = vpack.c.b16 %v335, %v335
      %368 = vst [vmem:[%s208] sm:$0xf] %v336
      %369 = vst [vmem:[%s208 + $0x4] sm:$0xf] %v337
      %370 = vst [vmem:[%s208 + $0x8] sm:$0xf] %v338
      %371 = vst [vmem:[%s208 + $0xc] sm:$0xf] %v339
      %372 = vst [vmem:[%s208 + $0x10] sm:$0xf] %v340
      %373 = vst [vmem:[%s208 + $0x14] sm:$0xf] %v341
      %374 = vst [vmem:[%s208 + $0x18] sm:$0xf] %v342
      %375 = vst [vmem:[%s208 + $0x1c] sm:$0xf] %v343
      %376 = vst [vmem:[%s208 + $0x20] sm:$0xf] %v344
      %377 = vst [vmem:[%s208 + $0x24] sm:$0xf] %v345
      %378 = vst [vmem:[%s208 + $0x28] sm:$0xf] %v346
      %379 = vst [vmem:[%s208 + $0x2c] sm:$0xf] %v347
      %380 = vst [vmem:[%s208 + $0x30] sm:$0xf] %v348
      %381 = vst [vmem:[%s208 + $0x34] sm:$0xf] %v349
      %382 = vst [vmem:[%s208 + $0x38] sm:$0xf] %v350
      %383 = vst [vmem:[%s208 + $0x3c] sm:$0xf] %v351
      %s384 = smul.u32 16, %s19
      %p385 = scmp.lt.s32.totalorder %s18, 1
      %s386 = scalar_select %p385, %s18, 1
      %p387 = scmp.lt.s32.totalorder %s384, 31
      %s388 = scalar_select %p387, %s384, 31
      %s389 = smul.addr %s386, 32
      %s390 = sadd.s32 %s388, %s389
      %s391 = smul.addr %s390, 4
      %s392 = scalar_lea.vmem %s3, %s391
      // Predicated region
      $region33: #{double_conv.5} parent=31 // pred_check
        %p393 = pneg %p116
      $region34: #{double_conv.5} parent=31 // pred_check_branch
        %395 = sbr.rel (%p393) target = $region36
      $region35: #{double_conv.5} parent=31 // pred_region
        %s396 = smul.u32 16, %s19
      $region36: #{double_conv.5} parent=31 // pred_fallthru
        _
    $region32: #{double_conv.5} parent=5 // pred_fallthru
      _
    %p397 = scmp.le.s32.totalorder 2, %s9
    // Predicated region
    $region37: #{double_conv.5} parent=5 // pred_check
      %p398 = pneg %p397
    $region38: #{double_conv.5} parent=5 // pred_check_branch
      %400 = sbr.rel (%p398) target = $region40
    $region39: #{double_conv.5} parent=5 // pred_region
      %s401 = ssub.s32 %s9, 2
      // Predicated region
      $region41: #{double_conv.5} parent=39 // pred_check
        %p402 = pneg %p122
      $region42: #{double_conv.5} parent=39 // pred_check_branch
        %404 = sbr.rel (%p402) target = $region44
      $region43: #{double_conv.5} parent=39 // pred_region
        %s405 = smul.u32 16, %s21
        %p406 = scmp.lt.s32.totalorder %s20, 1
        %s407 = scalar_select %p406, %s20, 1
        %p408 = scmp.lt.s32.totalorder %s405, 31
        %s409 = scalar_select %p408, %s405, 31
        %s410 = smul.addr %s407, 32
        %s411 = sadd.s32 %s409, %s410
        %s412 = smul.addr %s411, 4
        %s413 = scalar_lea.vmem %s3, %s412
      $region44: #{double_conv.5} parent=39 // pred_fallthru
        _
    $region40: #{double_conv.5} parent=5 // pred_fallthru
      _
  $region6: #{double_conv.5} parent=0 // loop_footer
    %s13 = sadd.s32 1, %s9
  $region7: #{double_conv.5} parent=0 // loop_footer_branch
    %8 = sbr.rel target = $region3
  $region8: #{double_conv.5} parent=0 // loop_exit
    _

// kernel: double_conv.3
$region0: #{double_conv.3}
  #allocation0 [shape = 'u32[]', space=smem, size = 0x4, offset = 0x4, fixed_abs, tag = 'smem constant byte address 0x4 - core index']
  #allocation1 [shape = 'u32[144,128]{1,0:T(1,128)}', space=vmem, size = 0x12000, scoped, tag = 'internal scratch']
  #allocation2 [shape = 'bf16[192,4]{1,0:T(16,128)(2,1)}', space=vmem, size = 0xc000, scoped, tag = 'scratch operand']
  #allocation3 [shape = 'bf16[128,12]{1,0:T(16,128)(2,1)}', space=vmem, size = 0x8000, scoped, tag = 'scratch operand']
  #allocation4 [shape = 'f32[2,128]{1,0:T(2,128)}', space=vmem, size = 0x400, scoped, tag = 'scratch operand']
  %s0 = inlined_call_operand.vmem [shape: bf16[2,256,4], index: 0, kind: input, shape index: {}, may-alias: {0,1,2}]
  %s1 = inlined_call_operand.vmem [shape: bf16[2,256,4], index: 1, kind: input, shape index: {}, may-alias: {0,1,2}]
  %s2 = inlined_call_operand.vmem [shape: bf16[2,256,4], index: 2, kind: input, shape index: {}, may-alias: {0,1,2}]
  %s3 = inlined_call_operand.vmem [shape: bf16[3,12,128], index: 3, kind: input, shape index: {}]
  %s4 = inlined_call_operand.vmem [shape: bf16[2,256,128], index: 4, kind: output, shape index: {0}]
  %s5 = inlined_call_operand.vmem [shape: f32[2,2,128], index: 5, kind: output, shape index: {1}]
  %6 = xla_tuple %s4, %s5
  %s7 = sld [smem:[#allocation0]]
  $region65: #{double_conv.3} parent=0
    _
  %s9 = ssub.s32 1, %s7
  %s10 = scalar_select 0, %s9, %s7
  loop: start=0, step=1, limit=6
  $region2: #{double_conv.3} parent=0 // loop_pre_header
    _
  $region3: #{double_conv.3} parent=0 // loop_header
    %s12 = sphi 0, %s16
    %p13 = scmp.ge.s32.totalorder %s12, 6
    %s19 = sphi 0, %s31
    %s20 = sphi 0, %s27
    %s21 = sphi 0, %s19
    %s22 = sphi 0, %s20
    %s23 = sphi 0, %s21
    %s24 = sphi 0, %s22
    %s36 = sphi 0, %s38
    %s39 = sphi 0, %s36
    %s40 = sphi 0, %s39
    %s56 = sphi 0, %s40
    %s72 = sphi 0, %s74
    %s75 = sphi 0, %s72
    %s76 = sphi 0, %s75
    %s92 = sphi 0, %s76
    %s108 = sphi 0, %s110
    %s111 = sphi 0, %s108
    %s112 = sphi 0, %s111
    %s128 = sphi 0, %s112
    %s132 = sphi 0, %s132
    %s134 = sphi 0, %s132
    %s135 = sphi 0, %s134
    %s149 = sphi 0, %s135
    %s157 = sphi 0, %s159
    %s160 = sphi 0, %s157
    %s161 = sphi 0, %s160
    %s177 = sphi 0, %s161
    %s183 = sphi 0, %s185
    %s186 = sphi 0, %s183
    %s187 = sphi 0, %s186
    %s203 = sphi 0, %s187
  $region4: #{double_conv.3} parent=0 // loop_header_branch
    %15 = sbr.rel (%p13) target = $region8
  $region5: #{double_conv.3} parent=0 // loop_body
    %s17 = ssub.s32 %s12, 1
    %s18 = ssub.s32 %s12, 2
    %s25 = sadd.s32 1, %s20
    %p26 = scmp.ge.s32.totalorder %s25, 2
    %s27 = scalar_select %p26, 0, %s25
    %s28 = sadd.s32 1, %s19
    %s29 = scalar_select %p26, %s28, %s19
    %p30 = scmp.ge.s32.totalorder %s29, 2
    %s31 = scalar_select %p30, 0, %s29
    %s32 = ssub.s32 %s19, %s31
    %s33 = ssub.s32 %s20, %s27
    %s34 = sor.u32 %s32, %s33
    %p35 = scmp.eq.s32.totalorder %s34, 0
    %s37 = sadd.s32 %s36, 1
    %s38 = scalar_select %p35, %s36, %s37
    %p41 = pneg %p35
    %p42 = scmp.eq.s32.totalorder %s12, 3
    %p43 = por %p41, %p42
    %p44 = scmp.ne.s32.totalorder %s36, %s39
    %p45 = scmp.eq.s32.totalorder %s12, 0
    %p46 = por %p44, %p45
    %p47 = scmp.ne.s32.totalorder %s36, %s39
    %p48 = scmp.eq.s32.totalorder %s17, 3
    %p49 = por %p47, %p48
    %p50 = scmp.ne.s32.totalorder %s39, %s40
    %p51 = scmp.eq.s32.totalorder %s17, 0
    %p52 = por %p50, %p51
    %p53 = scmp.ne.s32.totalorder %s39, %s40
    %p54 = scmp.eq.s32.totalorder %s18, 3
    %p55 = por %p53, %p54
    %p57 = scmp.ne.s32.totalorder %s40, %s56
    %p58 = scmp.eq.s32.totalorder %s18, 0
    %p59 = por %p57, %p58
    %s60 = smul.u32 %s20, 8
    %s61 = ssub.s32 %s60, 1
    %p62 = scmp.gt.s32.totalorder %s61, 0
    %s63 = scalar_select %p62, %s61, 0
    %s64 = smul.u32 %s27, 8
    %s65 = ssub.s32 %s64, 1
    %p66 = scmp.gt.s32.totalorder %s65, 0
    %s67 = scalar_select %p66, %s65, 0
    %s68 = ssub.s32 %s19, %s31
    %s69 = ssub.s32 %s63, %s67
    %s70 = sor.u32 %s68, %s69
    %p71 = scmp.eq.s32.totalorder %s70, 0
    %s73 = sadd.s32 %s72, 1
    %s74 = scalar_select %p71, %s72, %s73
    %p77 = pneg %p71
    %p78 = scmp.eq.s32.totalorder %s12, 3
    %p79 = por %p77, %p78
    %p80 = scmp.ne.s32.totalorder %s72, %s75
    %p81 = scmp.eq.s32.totalorder %s12, 0
    %p82 = por %p80, %p81
    %p83 = scmp.ne.s32.totalorder %s72, %s75
    %p84 = scmp.eq.s32.totalorder %s17, 3
    %p85 = por %p83, %p84
    %p86 = scmp.ne.s32.totalorder %s75, %s76
    %p87 = scmp.eq.s32.totalorder %s17, 0
    %p88 = por %p86, %p87
    %p89 = scmp.ne.s32.totalorder %s75, %s76
    %p90 = scmp.eq.s32.totalorder %s18, 3
    %p91 = por %p89, %p90
    %p93 = scmp.ne.s32.totalorder %s76, %s92
    %p94 = scmp.eq.s32.totalorder %s18, 0
    %p95 = por %p93, %p94
    %s96 = sadd.s32 %s20, 1
    %s97 = smul.u32 %s96, 8
    %p98 = scmp.lt.s32.totalorder %s97, 15
    %s99 = scalar_select %p98, %s97, 15
    %s100 = sadd.s32 %s27, 1
    %s101 = smul.u32 %s100, 8
    %p102 = scmp.lt.s32.totalorder %s101, 15
    %s103 = scalar_select %p102, %s101, 15
    %s104 = ssub.s32 %s19, %s31
    %s105 = ssub.s32 %s99, %s103
    %s106 = sor.u32 %s104, %s105
    %p107 = scmp.eq.s32.totalorder %s106, 0
    %s109 = sadd.s32 %s108, 1
    %s110 = scalar_select %p107, %s108, %s109
    %p113 = pneg %p107
    %p114 = scmp.eq.s32.totalorder %s12, 3
    %p115 = por %p113, %p114
    %p116 = scmp.ne.s32.totalorder %s108, %s111
    %p117 = scmp.eq.s32.totalorder %s12, 0
    %p118 = por %p116, %p117
    %p119 = scmp.ne.s32.totalorder %s108, %s111
    %p120 = scmp.eq.s32.totalorder %s17, 3
    %p121 = por %p119, %p120
    %p122 = scmp.ne.s32.totalorder %s111, %s112
    %p123 = scmp.eq.s32.totalorder %s17, 0
    %p124 = por %p122, %p123
    %p125 = scmp.ne.s32.totalorder %s111, %s112
    %p126 = scmp.eq.s32.totalorder %s18, 3
    %p127 = por %p125, %p126
    %p129 = scmp.ne.s32.totalorder %s112, %s128
    %p130 = scmp.eq.s32.totalorder %s18, 0
    %p131 = por %p129, %p130
    %s133 = sadd.s32 %s132, 1
    %p136 = scmp.eq.s32.totalorder %s12, 3
    %p137 = scmp.ne.s32.totalorder %s132, %s134
    %p138 = scmp.eq.s32.totalorder %s12, 0
    %p139 = por %p137, %p138
    %p140 = scmp.ne.s32.totalorder %s132, %s134
    %p141 = scmp.eq.s32.totalorder %s17, 3
    %p142 = por %p140, %p141
    %p143 = scmp.ne.s32.totalorder %s134, %s135
    %p144 = scmp.eq.s32.totalorder %s17, 0
    %p145 = por %p143, %p144
    %p146 = scmp.ne.s32.totalorder %s134, %s135
    %p147 = scmp.eq.s32.totalorder %s18, 3
    %p148 = por %p146, %p147
    %p150 = scmp.ne.s32.totalorder %s135, %s149
    %p151 = scmp.eq.s32.totalorder %s18, 0
    %p152 = por %p150, %p151
    %s153 = ssub.s32 %s19, %s31
    %s154 = ssub.s32 %s20, %s27
    %s155 = sor.u32 %s153, %s154
    %p156 = scmp.eq.s32.totalorder %s155, 0
    %s158 = sadd.s32 %s157, 1
    %s159 = scalar_select %p156, %s157, %s158
    %p162 = pneg %p156
    %p163 = scmp.eq.s32.totalorder %s12, 3
    %p164 = por %p162, %p163
    %p165 = scmp.ne.s32.totalorder %s157, %s160
    %p166 = scmp.eq.s32.totalorder %s12, 0
    %p167 = por %p165, %p166
    %p168 = scmp.ne.s32.totalorder %s157, %s160
    %p169 = scmp.eq.s32.totalorder %s17, 3
    %p170 = por %p168, %p169
    %p171 = scmp.ne.s32.totalorder %s160, %s161
    %p172 = scmp.eq.s32.totalorder %s17, 0
    %p173 = por %p171, %p172
    %p174 = scmp.ne.s32.totalorder %s160, %s161
    %p175 = scmp.eq.s32.totalorder %s18, 3
    %p176 = por %p174, %p175
    %p178 = scmp.ne.s32.totalorder %s161, %s177
    %p179 = scmp.eq.s32.totalorder %s18, 0
    %p180 = por %p178, %p179
    %s181 = ssub.s32 %s19, %s31
    %p182 = scmp.eq.s32.totalorder %s181, 0
    %s184 = sadd.s32 %s183, 1
    %s185 = scalar_select %p182, %s183, %s184
    %p188 = pneg %p182
    %p189 = scmp.eq.s32.totalorder %s12, 3
    %p190 = por %p188, %p189
    %p191 = scmp.ne.s32.totalorder %s183, %s186
    %p192 = scmp.eq.s32.totalorder %s12, 0
    %p193 = por %p191, %p192
    %p194 = scmp.ne.s32.totalorder %s183, %s186
    %p195 = scmp.eq.s32.totalorder %s17, 3
    %p196 = por %p194, %p195
    %p197 = scmp.ne.s32.totalorder %s186, %s187
    %p198 = scmp.eq.s32.totalorder %s17, 0
    %p199 = por %p197, %p198
    %p200 = scmp.ne.s32.totalorder %s186, %s187
    %p201 = scmp.eq.s32.totalorder %s18, 3
    %p202 = por %p200, %p201
    %p204 = scmp.ne.s32.totalorder %s187, %s203
    %p205 = scmp.eq.s32.totalorder %s18, 0
    %p206 = por %p204, %p205
    %p207 = scmp.le.s32.totalorder 1, %s12
    %p208 = scmp.lt.s32.totalorder %s12, 5
    %p209 = pnand %p207, %p208
    %p210 = pneg %p209
    // Predicated region
    $region9: #{double_conv.3} parent=5 // pred_check
      _
    $region10: #{double_conv.3} parent=5 // pred_check_branch
      %212 = sbr.rel (%p209) target = $region12
    $region11: #{double_conv.3} parent=5 // pred_region
      %s213 = ssub.s32 %s12, 1
      // Predicated region
      $region13: #{double_conv.3} parent=11 // pred_check
        %p214 = pneg %p145
      $region14: #{double_conv.3} parent=11 // pred_check_branch
        %216 = sbr.rel (%p214) target = $region16
      $region15: #{double_conv.3} parent=11 // pred_region
        _
      $region16: #{double_conv.3} parent=11 // pred_fallthru
        _
    $region12: #{double_conv.3} parent=5 // pred_fallthru
      _
    %p217 = scmp.lt.s32.totalorder %s12, 4
    // Predicated region
    $region17: #{double_conv.3} parent=5 // pred_check
      %p218 = pneg %p217
    $region18: #{double_conv.3} parent=5 // pred_check_branch
      %220 = sbr.rel (%p218) target = $region20
    $region19: #{double_conv.3} parent=5 // pred_region
      // Predicated region
      $region21: #{double_conv.3} parent=19 // pred_check
        %p221 = pneg %p46
      $region22: #{double_conv.3} parent=19 // pred_check_branch
        %223 = sbr.rel (%p221) target = $region24
      $region23: #{double_conv.3} parent=19 // pred_region
        %s224 = smul.u32 16, %s20
        %p225 = scmp.lt.s32.totalorder %s19, 1
        %s226 = scalar_select %p225, %s19, 1
        %p227 = scmp.lt.s32.totalorder %s224, 31
        %s228 = scalar_select %p227, %s224, 31
        %s229 = smul.addr %s226, 32
        %s230 = sadd.s32 %s228, %s229
        %s231 = smul.addr %s230, 4
        %s232 = scalar_lea.vmem %s0, %s231
        %s233 = smul.u32 16, %s20
      $region24: #{double_conv.3} parent=19 // pred_fallthru
        _
      // Predicated region
      $region25: #{double_conv.3} parent=19 // pred_check
        %p234 = pneg %p82
      $region26: #{double_conv.3} parent=19 // pred_check_branch
        %236 = sbr.rel (%p234) target = $region28
      $region27: #{double_conv.3} parent=19 // pred_region
        %s237 = smul.u32 %s20, 8
        %s238 = ssub.s32 %s237, 1
        %p239 = scmp.gt.s32.totalorder %s238, 0
        %s240 = scalar_select %p239, %s238, 0
        %s241 = smul.u32 2, %s240
        %p242 = scmp.lt.s32.totalorder %s19, 1
        %s243 = scalar_select %p242, %s19, 1
        %p244 = scmp.lt.s32.totalorder %s241, 31
        %s245 = scalar_select %p244, %s241, 31
        %s246 = smul.addr %s243, 32
        %s247 = sadd.s32 %s245, %s246
        %s248 = smul.addr %s247, 4
        %s249 = scalar_lea.vmem %s1, %s248
        %s250 = smul.u32 %s20, 8
        %s251 = ssub.s32 %s250, 1
        %p252 = scmp.gt.s32.totalorder %s251, 0
        %s253 = scalar_select %p252, %s251, 0
        %s254 = smul.u32 2, %s253
      $region28: #{double_conv.3} parent=19 // pred_fallthru
        _
      // Predicated region
      $region29: #{double_conv.3} parent=19 // pred_check
        %p255 = pneg %p118
      $region30: #{double_conv.3} parent=19 // pred_check_branch
        %257 = sbr.rel (%p255) target = $region32
      $region31: #{double_conv.3} parent=19 // pred_region
        %s258 = sadd.s32 %s20, 1
        %s259 = smul.u32 %s258, 8
        %p260 = scmp.lt.s32.totalorder %s259, 15
        %s261 = scalar_select %p260, %s259, 15
        %s262 = smul.u32 2, %s261
        %p263 = scmp.lt.s32.totalorder %s19, 1
        %s264 = scalar_select %p263, %s19, 1
        %p265 = scmp.lt.s32.totalorder %s262, 31
        %s266 = scalar_select %p265, %s262, 31
        %s267 = smul.addr %s264, 32
        %s268 = sadd.s32 %s266, %s267
        %s269 = smul.addr %s268, 4
        %s270 = scalar_lea.vmem %s2, %s269
        %s271 = sadd.s32 %s20, 1
        %s272 = smul.u32 %s271, 8
        %p273 = scmp.lt.s32.totalorder %s272, 15
        %s274 = scalar_select %p273, %s272, 15
        %s275 = smul.u32 2, %s274
      $region32: #{double_conv.3} parent=19 // pred_fallthru
        _
    $region20: #{double_conv.3} parent=5 // pred_fallthru
      _
    %p276 = scmp.le.s32.totalorder 1, %s12
    %p277 = scmp.lt.s32.totalorder %s12, 5
    %p278 = pnand %p276, %p277
    %p279 = pneg %p278
    // Predicated region
    $region33: #{double_conv.3} parent=5 // pred_check
      _
    $region34: #{double_conv.3} parent=5 // pred_check_branch
      %281 = sbr.rel (%p278) target = $region36
    $region35: #{double_conv.3} parent=5 // pred_region
      %s282 = ssub.s32 %s12, 1
      %s283 = smul.u32 16, %s22
      %p284 = scmp.lt.s32.totalorder %s21, 1
      %s285 = scalar_select %p284, %s21, 1
      %p286 = scmp.lt.s32.totalorder %s283, 31
      %s287 = scalar_select %p286, %s283, 31
      %s288 = smul.addr %s285, 32
      %s289 = sadd.s32 %s287, %s288
      %s290 = smul.addr %s289, 4
      %s291 = scalar_lea.vmem %s0, %s290
      %p292 = pneg %p52
      %p293 = pneg %p49
      %s294 = smul.u32 %s22, 8
      %s295 = ssub.s32 %s294, 1
      %p296 = scmp.gt.s32.totalorder %s295, 0
      %s297 = scalar_select %p296, %s295, 0
      %s298 = smul.u32 2, %s297
      %p299 = scmp.lt.s32.totalorder %s21, 1
      %s300 = scalar_select %p299, %s21, 1
      %p301 = scmp.lt.s32.totalorder %s298, 31
      %s302 = scalar_select %p301, %s298, 31
      %s303 = smul.addr %s300, 32
      %s304 = sadd.s32 %s302, %s303
      %s305 = smul.addr %s304, 4
      %s306 = scalar_lea.vmem %s1, %s305
      %p307 = pneg %p88
      %p308 = pneg %p85
      %s309 = sadd.s32 %s22, 1
      %s310 = smul.u32 %s309, 8
      %p311 = scmp.lt.s32.totalorder %s310, 15
      %s312 = scalar_select %p311, %s310, 15
      %s313 = smul.u32 2, %s312
      %p314 = scmp.lt.s32.totalorder %s21, 1
      %s315 = scalar_select %p314, %s21, 1
      %p316 = scmp.lt.s32.totalorder %s313, 31
      %s317 = scalar_select %p316, %s313, 31
      %s318 = smul.addr %s315, 32
      %s319 = sadd.s32 %s317, %s318
      %s320 = smul.addr %s319, 4
      %s321 = scalar_lea.vmem %s2, %s320
      %p322 = pneg %p124
      %p323 = pneg %p121
      %p324 = pneg %p145
      %p325 = pneg %p142
      %p326 = pneg %p173
      %p327 = pneg %p170
      %s328 = smul.u32 16, %s22
      %p329 = scmp.lt.s32.totalorder %s21, 1
      %s330 = scalar_select %p329, %s21, 1
      %p331 = scmp.lt.s32.totalorder %s328, 31
      %s332 = scalar_select %p331, %s328, 31
      %s333 = smul.addr %s330, 32
      %s334 = sadd.s32 %s332, %s333
      %s335 = smul.addr %s334, 4
      %s336 = scalar_lea.vmem %s4, %s335
      %p337 = pneg %p199
      %p338 = pneg %p196
      %p339 = scmp.lt.s32.totalorder %s21, 1
      %s340 = scalar_select %p339, %s21, 1
      %s341 = smul.addr %s340, 2
      %s342 = scalar_lea.vmem %s5, %s341
      %s343 = smul.u32 16, %s22
      %p344 = scmp.lt.s32.totalorder %s21, 1
      %s345 = scalar_select %p344, %s21, 1
      %p346 = scmp.lt.s32.totalorder %s343, 31
      %s347 = scalar_select %p346, %s343, 31
      %s348 = smul.addr %s345, 32
      %s349 = sadd.s32 %s347, %s348
      %s350 = smul.addr %s349, 4
      %s351 = scalar_lea.vmem %s0, %s350
      %s352 = smul.u32 16, %s22
      %s353 = smul.u32 %s22, 8
      %s354 = ssub.s32 %s353, 1
      %p355 = scmp.gt.s32.totalorder %s354, 0
      %s356 = scalar_select %p355, %s354, 0
      %s357 = smul.u32 2, %s356
      %p358 = scmp.lt.s32.totalorder %s21, 1
      %s359 = scalar_select %p358, %s21, 1
      %p360 = scmp.lt.s32.totalorder %s357, 31
      %s361 = scalar_select %p360, %s357, 31
      %s362 = smul.addr %s359, 32
      %s363 = sadd.s32 %s361, %s362
      %s364 = smul.addr %s363, 4
      %s365 = scalar_lea.vmem %s1, %s364
      %s366 = smul.u32 %s22, 8
      %s367 = ssub.s32 %s366, 1
      %p368 = scmp.gt.s32.totalorder %s367, 0
      %s369 = scalar_select %p368, %s367, 0
      %s370 = smul.u32 2, %s369
      %s371 = sadd.s32 %s22, 1
      %s372 = smul.u32 %s371, 8
      %p373 = scmp.lt.s32.totalorder %s372, 15
      %s374 = scalar_select %p373, %s372, 15
      %s375 = smul.u32 2, %s374
      %p376 = scmp.lt.s32.totalorder %s21, 1
      %s377 = scalar_select %p376, %s21, 1
      %p378 = scmp.lt.s32.totalorder %s375, 31
      %s379 = scalar_select %p378, %s375, 31
      %s380 = smul.addr %s377, 32
      %s381 = sadd.s32 %s379, %s380
      %s382 = smul.addr %s381, 4
      %s383 = scalar_lea.vmem %s2, %s382
      %s384 = sadd.s32 %s22, 1
      %s385 = smul.u32 %s384, 8
      %p386 = scmp.lt.s32.totalorder %s385, 15
      %s387 = scalar_select %p386, %s385, 15
      %s388 = smul.u32 2, %s387
      %s389 = smul.u32 16, %s22
      %p390 = scmp.lt.s32.totalorder %s21, 1
      %s391 = scalar_select %p390, %s21, 1
      %p392 = scmp.lt.s32.totalorder %s389, 31
      %s393 = scalar_select %p392, %s389, 31
      %s394 = smul.addr %s391, 32
      %s395 = sadd.s32 %s393, %s394
      %s396 = smul.addr %s395, 4
      %s397 = scalar_lea.vmem %s4, %s396
      %s398 = smul.u32 16, %s22
      %p399 = scmp.lt.s32.totalorder %s21, 1
      %s400 = scalar_select %p399, %s21, 1
      %s401 = smul.addr %s400, 2
      %s402 = scalar_lea.vmem %s5, %s401
      %v406 = vld [vmem:[%s351] sm:$0xf]
      %v407 = vld [vmem:[%s351 + $0x4] sm:$0xf]
      %v408 = vld [vmem:[%s351 + $0x8] sm:$0xf]
      %v409 = vld [vmem:[%s351 + $0xc] sm:$0xf]
      %v410 = vld [vmem:[%s351 + $0x10] sm:$0xf]
      %v411 = vld [vmem:[%s351 + $0x14] sm:$0xf]
      %v412 = vld [vmem:[%s351 + $0x18] sm:$0xf]
      %v413 = vld [vmem:[%s351 + $0x1c] sm:$0xf]
      %v414 = vld [vmem:[%s351 + $0x20] sm:$0xf]
      %v415 = vld [vmem:[%s351 + $0x24] sm:$0xf]
      %v416 = vld [vmem:[%s351 + $0x28] sm:$0xf]
      %v417 = vld [vmem:[%s351 + $0x2c] sm:$0xf]
      %v418 = vld [vmem:[%s351 + $0x30] sm:$0xf]
      %v419 = vld [vmem:[%s351 + $0x34] sm:$0xf]
      %v420 = vld [vmem:[%s351 + $0x38] sm:$0xf]
      %v421 = vld [vmem:[%s351 + $0x3c] sm:$0xf]
      %v422 = vld [vmem:[%s365] sm:$0xf]
      %v423 = vld [vmem:[%s365 + $0x4] sm:$0xf]
      %v424 = vld [vmem:[%s383] sm:$0xf]
      %v425 = vld [vmem:[%s383 + $0x4] sm:$0xf]
      %vm426 = vcmask 31744
      %427 = vst.msk [vmem:[#allocation2] sm:$0xff] %vm426, 0
      %428 = vst.msk [vmem:[#allocation2 + $0x8] sm:$0xff] %vm426, 0
      %429 = vst.msk [vmem:[#allocation2 + $0x50] sm:$0xff] %vm426, 0
      %430 = vst.msk [vmem:[#allocation2 + $0x58] sm:$0xff] %vm426, 0
      %p431 = scmp.gt.s32.totalorder %s22, 0
      %s432 = scalar_select %p431, 1, 0
      %v433 = vstv %s432
      %vm434 = vcmp.eq.s32.totalorder %v433, 1
      %v435 = vsel %vm434, %v422, 0
      %v436 = vsel %vm434, %v423, 0
      %v439 = vunpack.c.l.b16 %v435
      %v440 = vunpack.c.l.b16 %v436
      %v441 = vpack.c.b16 %v440, %v439
      %443 = vst.msk [vmem:[#allocation2 + $0x8] sm:$0xff] %vm426, %v441
      %p444 = scmp.lt.s32.totalorder %s22, 1
      %s445 = scalar_select %p444, 1, 0
      %v446 = vstv %s445
      %vm447 = vcmp.eq.s32.totalorder %v446, 1
      %v448 = vsel %vm447, %v424, 0
      %v449 = vsel %vm447, %v425, 0
      %v452 = vunpack.c.l.b16 %v448
      %v453 = vunpack.c.l.b16 %v449
      %v454 = vpack.c.b16 %v453, %v452
      %456 = vst.msk [vmem:[#allocation2 + $0x50] sm:$0xff] %vm426, %v454
      %v473 = vunpack.c.l.b16 %v406
      %v474 = vunpack.c.l.b16 %v407
      %v475 = vunpack.c.l.b16 %v408
      %v476 = vunpack.c.l.b16 %v409
      %v477 = vunpack.c.l.b16 %v410
      %v478 = vunpack.c.l.b16 %v411
      %v479 = vunpack.c.l.b16 %v412
      %v480 = vunpack.c.l.b16 %v413
      %v481 = vunpack.c.l.b16 %v414
      %v482 = vunpack.c.l.b16 %v415
      %v483 = vunpack.c.l.b16 %v416
      %v484 = vunpack.c.l.b16 %v417
      %v485 = vunpack.c.l.b16 %v418
      %v486 = vunpack.c.l.b16 %v419
      %v487 = vunpack.c.l.b16 %v420
      %v488 = vunpack.c.l.b16 %v421
      %v489 = vpack.c.b16 %v474, %v473
      %v490 = vpack.c.b16 %v476, %v475
      %v491 = vpack.c.b16 %v478, %v477
      %v492 = vpack.c.b16 %v480, %v479
      %v493 = vpack.c.b16 %v482, %v481
      %v494 = vpack.c.b16 %v484, %v483
      %v495 = vpack.c.b16 %v486, %v485
      %v496 = vpack.c.b16 %v488, %v487
      %505 = vst.msk [vmem:[#allocation2 + $0x10] sm:$0xff] %vm426, %v489
      %506 = vst.msk [vmem:[#allocation2 + $0x18] sm:$0xff] %vm426, %v490
      %507 = vst.msk [vmem:[#allocation2 + $0x20] sm:$0xff] %vm426, %v491
      %508 = vst.msk [vmem:[#allocation2 + $0x28] sm:$0xff] %vm426, %v492
      %509 = vst.msk [vmem:[#allocation2 + $0x30] sm:$0xff] %vm426, %v493
      %510 = vst.msk [vmem:[#allocation2 + $0x38] sm:$0xff] %vm426, %v494
      %511 = vst.msk [vmem:[#allocation2 + $0x40] sm:$0xff] %vm426, %v495
      %512 = vst.msk [vmem:[#allocation2 + $0x48] sm:$0xff] %vm426, %v496
      %v513 = vlaneseq
      %v514 = vshrl.u32 %v513, 7
      %v515 = vadd.s32 %v514, 8
      %v516 = vadd.s32 %v514, 16
      %v517 = vadd.s32 %v514, 24
      %v518 = vadd.s32 %v514, 32
      %v519 = vadd.s32 %v514, 40
      %v520 = vadd.s32 %v514, 48
      %v521 = vadd.s32 %v514, 56
      %v522 = vadd.s32 %v514, 64
      %v523 = vadd.s32 %v514, 72
      %v524 = vadd.s32 %v514, 80
      %v525 = vadd.s32 %v514, 88
      %v526 = vadd.s32 %v514, 96
      %v527 = vadd.s32 %v514, 104
      %v528 = vadd.s32 %v514, 112
      %v529 = vadd.s32 %v514, 120
      %vm530 = vcmp.lt.s32.totalorder %v514, 0
      %v531 = vsub.s32 0, %v514
      %v532 = vsel %vm530, %v531, %v514
      %v533 = vshrl.u32 %v532, 4
      %v534 = vand.u32 %v532, 15
      %v535 = vsub.s32 0, %v534
      %v536 = vsel %vm530, %v535, %v534
      %vm537 = vcmp.lt.s32.totalorder %v515, 0
      %v538 = vsub.s32 0, %v515
      %v539 = vsel %vm537, %v538, %v515
      %v540 = vshrl.u32 %v539, 4
      %v541 = vand.u32 %v539, 15
      %v542 = vsub.s32 0, %v541
      %v543 = vsel %vm537, %v542, %v541
      %vm544 = vcmp.lt.s32.totalorder %v516, 0
      %v545 = vsub.s32 0, %v516
      %v546 = vsel %vm544, %v545, %v516
      %v547 = vshrl.u32 %v546, 4
      %v548 = vand.u32 %v546, 15
      %v549 = vsub.s32 0, %v548
      %v550 = vsel %vm544, %v549, %v548
      %vm551 = vcmp.lt.s32.totalorder %v517, 0
      %v552 = vsub.s32 0, %v517
      %v553 = vsel %vm551, %v552, %v517
      %v554 = vshrl.u32 %v553, 4
      %v555 = vand.u32 %v553, 15
      %v556 = vsub.s32 0, %v555
      %v557 = vsel %vm551, %v556, %v555
      %vm558 = vcmp.lt.s32.totalorder %v518, 0
      %v559 = vsub.s32 0, %v518
      %v560 = vsel %vm558, %v559, %v518
      %v561 = vshrl.u32 %v560, 4
      %v562 = vand.u32 %v560, 15
      %v563 = vsub.s32 0, %v562
      %v564 = vsel %vm558, %v563, %v562
      %vm565 = vcmp.lt.s32.totalorder %v519, 0
      %v566 = vsub.s32 0, %v519
      %v567 = vsel %vm565, %v566, %v519
      %v568 = vshrl.u32 %v567, 4
      %v569 = vand.u32 %v567, 15
      %v570 = vsub.s32 0, %v569
      %v571 = vsel %vm565, %v570, %v569
      %vm572 = vcmp.lt.s32.totalorder %v520, 0
      %v573 = vsub.s32 0, %v520
      %v574 = vsel %vm572, %v573, %v520
      %v575 = vshrl.u32 %v574, 4
      %v576 = vand.u32 %v574, 15
      %v577 = vsub.s32 0, %v576
      %v578 = vsel %vm572, %v577, %v576
      %vm579 = vcmp.lt.s32.totalorder %v521, 0
      %v580 = vsub.s32 0, %v521
      %v581 = vsel %vm579, %v580, %v521
      %v582 = vshrl.u32 %v581, 4
      %v583 = vand.u32 %v581, 15
      %v584 = vsub.s32 0, %v583
      %v585 = vsel %vm579, %v584, %v583
      %vm586 = vcmp.lt.s32.totalorder %v522, 0
      %v587 = vsub.s32 0, %v522
      %v588 = vsel %vm586, %v587, %v522
      %v589 = vshrl.u32 %v588, 4
      %v590 = vand.u32 %v588, 15
      %v591 = vsub.s32 0, %v590
      %v592 = vsel %vm586, %v591, %v590
      %vm593 = vcmp.lt.s32.totalorder %v523, 0
      %v594 = vsub.s32 0, %v523
      %v595 = vsel %vm593, %v594, %v523
      %v596 = vshrl.u32 %v595, 4
      %v597 = vand.u32 %v595, 15
      %v598 = vsub.s32 0, %v597
      %v599 = vsel %vm593, %v598, %v597
      %vm600 = vcmp.lt.s32.totalorder %v524, 0
      %v601 = vsub.s32 0, %v524
      %v602 = vsel %vm600, %v601, %v524
      %v603 = vshrl.u32 %v602, 4
      %v604 = vand.u32 %v602, 15
      %v605 = vsub.s32 0, %v604
      %v606 = vsel %vm600, %v605, %v604
      %vm607 = vcmp.lt.s32.totalorder %v525, 0
      %v608 = vsub.s32 0, %v525
      %v609 = vsel %vm607, %v608, %v525
      %v610 = vshrl.u32 %v609, 4
      %v611 = vand.u32 %v609, 15
      %v612 = vsub.s32 0, %v611
      %v613 = vsel %vm607, %v612, %v611
      %vm614 = vcmp.lt.s32.totalorder %v526, 0
      %v615 = vsub.s32 0, %v526
      %v616 = vsel %vm614, %v615, %v526
      %v617 = vshrl.u32 %v616, 4
      %v618 = vand.u32 %v616, 15
      %v619 = vsub.s32 0, %v618
      %v620 = vsel %vm614, %v619, %v618
      %vm621 = vcmp.lt.s32.totalorder %v527, 0
      %v622 = vsub.s32 0, %v527
      %v623 = vsel %vm621, %v622, %v527
      %v624 = vshrl.u32 %v623, 4
      %v625 = vand.u32 %v623, 15
      %v626 = vsub.s32 0, %v625
      %v627 = vsel %vm621, %v626, %v625
      %vm628 = vcmp.lt.s32.totalorder %v528, 0
      %v629 = vsub.s32 0, %v528
      %v630 = vsel %vm628, %v629, %v528
      %v631 = vshrl.u32 %v630, 4
      %v632 = vand.u32 %v630, 15
      %v633 = vsub.s32 0, %v632
      %v634 = vsel %vm628, %v633, %v632
      %vm635 = vcmp.lt.s32.totalorder %v529, 0
      %v636 = vsub.s32 0, %v529
      %v637 = vsel %vm635, %v636, %v529
      %v638 = vshrl.u32 %v637, 4
      %v639 = vand.u32 %v637, 15
      %v640 = vsub.s32 0, %v639
      %v641 = vsel %vm635, %v640, %v639
      %vm642 = vcmp.ne.s32.totalorder %v536, 0
      %vm643 = vcmp.ne.s32.totalorder %v543, 0
      %vm644 = vcmp.ne.s32.totalorder %v550, 0
      %vm645 = vcmp.ne.s32.totalorder %v557, 0
      %vm646 = vcmp.ne.s32.totalorder %v564, 0
      %vm647 = vcmp.ne.s32.totalorder %v571, 0
      %vm648 = vcmp.ne.s32.totalorder %v578, 0
      %vm649 = vcmp.ne.s32.totalorder %v585, 0
      %vm650 = vcmp.ne.s32.totalorder %v592, 0
      %vm651 = vcmp.ne.s32.totalorder %v599, 0
      %vm652 = vcmp.ne.s32.totalorder %v606, 0
      %vm653 = vcmp.ne.s32.totalorder %v613, 0
      %vm654 = vcmp.ne.s32.totalorder %v620, 0
      %vm655 = vcmp.ne.s32.totalorder %v627, 0
      %vm656 = vcmp.ne.s32.totalorder %v634, 0
      %vm657 = vcmp.ne.s32.totalorder %v641, 0
      %vm658 = vcmp.lt.s32.totalorder %v536, 0
      %vm659 = vcmp.lt.s32.totalorder %v543, 0
      %vm660 = vcmp.lt.s32.totalorder %v550, 0
      %vm661 = vcmp.lt.s32.totalorder %v557, 0
      %vm662 = vcmp.lt.s32.totalorder %v564, 0
      %vm663 = vcmp.lt.s32.totalorder %v571, 0
      %vm664 = vcmp.lt.s32.totalorder %v578, 0
      %vm665 = vcmp.lt.s32.totalorder %v585, 0
      %vm666 = vcmp.lt.s32.totalorder %v592, 0
      %vm667 = vcmp.lt.s32.totalorder %v599, 0
      %vm668 = vcmp.lt.s32.totalorder %v606, 0
      %vm669 = vcmp.lt.s32.totalorder %v613, 0
      %vm670 = vcmp.lt.s32.totalorder %v620, 0
      %vm671 = vcmp.lt.s32.totalorder %v627, 0
      %vm672 = vcmp.lt.s32.totalorder %v634, 0
      %vm673 = vcmp.lt.s32.totalorder %v641, 0
      %vm674 = vmand %vm658, %vm642
      %vm675 = vmand %vm659, %vm643
      %vm676 = vmand %vm660, %vm644
      %vm677 = vmand %vm661, %vm645
      %vm678 = vmand %vm662, %vm646
      %vm679 = vmand %vm663, %vm647
      %vm680 = vmand %vm664, %vm648
      %vm681 = vmand %vm665, %vm649
      %vm682 = vmand %vm666, %vm650
      %vm683 = vmand %vm667, %vm651
      %vm684 = vmand %vm668, %vm652
      %vm685 = vmand %vm669, %vm653
      %vm686 = vmand %vm670, %vm654
      %vm687 = vmand %vm671, %vm655
      %vm688 = vmand %vm672, %vm656
      %vm689 = vmand %vm673, %vm657
      %v690 = vadd.s32 %v536, 16
      %v691 = vadd.s32 %v543, 16
      %v692 = vadd.s32 %v550, 16
      %v693 = vadd.s32 %v557, 16
      %v694 = vadd.s32 %v564, 16
      %v695 = vadd.s32 %v571, 16
      %v696 = vadd.s32 %v578, 16
      %v697 = vadd.s32 %v585, 16
      %v698 = vadd.s32 %v592, 16
      %v699 = vadd.s32 %v599, 16
      %v700 = vadd.s32 %v606, 16
      %v701 = vadd.s32 %v613, 16
      %v702 = vadd.s32 %v620, 16
      %v703 = vadd.s32 %v627, 16
      %v704 = vadd.s32 %v634, 16
      %v705 = vadd.s32 %v641, 16
      %v706 = vsel %vm674, %v690, %v536
      %v707 = vsel %vm675, %v691, %v543
      %v708 = vsel %vm676, %v692, %v550
      %v709 = vsel %vm677, %v693, %v557
      %v710 = vsel %vm678, %v694, %v564
      %v711 = vsel %vm679, %v695, %v571
      %v712 = vsel %vm680, %v696, %v578
      %v713 = vsel %vm681, %v697, %v585
      %v714 = vsel %vm682, %v698, %v592
      %v715 = vsel %vm683, %v699, %v599
      %v716 = vsel %vm684, %v700, %v606
      %v717 = vsel %vm685, %v701, %v613
      %v718 = vsel %vm686, %v702, %v620
      %v719 = vsel %vm687, %v703, %v627
      %v720 = vsel %vm688, %v704, %v634
      %v721 = vsel %vm689, %v705, %v641
      %vm722 = vcmp.ge.s32.totalorder %v706, 1
      %vm723 = vcmp.ge.s32.totalorder %v707, 1
      %vm724 = vcmp.ge.s32.totalorder %v708, 1
      %vm725 = vcmp.ge.s32.totalorder %v709, 1
      %vm726 = vcmp.ge.s32.totalorder %v710, 1
      %vm727 = vcmp.ge.s32.totalorder %v711, 1
      %vm728 = vcmp.ge.s32.totalorder %v712, 1
      %vm729 = vcmp.ge.s32.totalorder %v713, 1
      %vm730 = vcmp.ge.s32.totalorder %v714, 1
      %vm731 = vcmp.ge.s32.totalorder %v715, 1
      %vm732 = vcmp.ge.s32.totalorder %v716, 1
      %vm733 = vcmp.ge.s32.totalorder %v717, 1
      %vm734 = vcmp.ge.s32.totalorder %v718, 1
      %vm735 = vcmp.ge.s32.totalorder %v719, 1
      %vm736 = vcmp.ge.s32.totalorder %v720, 1
      %vm737 = vcmp.ge.s32.totalorder %v721, 1
      %vm738 = vcmp.le.s32.totalorder %v706, 14
      %vm739 = vcmp.le.s32.totalorder %v707, 14
      %vm740 = vcmp.le.s32.totalorder %v708, 14
      %vm741 = vcmp.le.s32.totalorder %v709, 14
      %vm742 = vcmp.le.s32.totalorder %v710, 14
      %vm743 = vcmp.le.s32.totalorder %v711, 14
      %vm744 = vcmp.le.s32.totalorder %v712, 14
      %vm745 = vcmp.le.s32.totalorder %v713, 14
      %vm746 = vcmp.le.s32.totalorder %v714, 14
      %vm747 = vcmp.le.s32.totalorder %v715, 14
      %vm748 = vcmp.le.s32.totalorder %v716, 14
      %vm749 = vcmp.le.s32.totalorder %v717, 14
      %vm750 = vcmp.le.s32.totalorder %v718, 14
      %vm751 = vcmp.le.s32.totalorder %v719, 14
      %vm752 = vcmp.le.s32.totalorder %v720, 14
      %vm753 = vcmp.le.s32.totalorder %v721, 14
      %v754 = vld [vmem:[#allocation2] sm:$0x80]
      %v755 = vld [vmem:[#allocation2 + $0x8] sm:$0xff]
      %v756 = vld [vmem:[#allocation2 + $0x10] sm:$0xff]
      %v757 = vld [vmem:[#allocation2 + $0x18] sm:$0xff]
      %v758 = vld [vmem:[#allocation2 + $0x20] sm:$0xff]
      %v759 = vld [vmem:[#allocation2 + $0x28] sm:$0xff]
      %v760 = vld [vmem:[#allocation2 + $0x30] sm:$0xff]
      %v761 = vld [vmem:[#allocation2 + $0x38] sm:$0xff]
      %v762 = vld [vmem:[#allocation2 + $0x40] sm:$0xff]
      %v763 = vsel %vm722, 1, 0
      %v764 = vsel %vm723, 1, 0
      %v765 = vsel %vm724, 1, 0
      %v766 = vsel %vm725, 1, 0
      %v767 = vsel %vm726, 1, 0
      %v768 = vsel %vm727, 1, 0
      %v769 = vsel %vm728, 1, 0
      %v770 = vsel %vm729, 1, 0
      %v771 = vsel %vm730, 1, 0
      %v772 = vsel %vm731, 1, 0
      %v773 = vsel %vm732, 1, 0
      %v774 = vsel %vm733, 1, 0
      %v775 = vsel %vm734, 1, 0
      %v776 = vsel %vm735, 1, 0
      %v777 = vsel %vm736, 1, 0
      %v778 = vsel %vm737, 1, 0
      %vm779 = vcmp.eq.s32.totalorder %v763, 1
      %vm780 = vcmp.eq.s32.totalorder %v764, 1
      %vm781 = vcmp.eq.s32.totalorder %v765, 1
      %vm782 = vcmp.eq.s32.totalorder %v766, 1
      %vm783 = vcmp.eq.s32.totalorder %v767, 1
      %vm784 = vcmp.eq.s32.totalorder %v768, 1
      %vm785 = vcmp.eq.s32.totalorder %v769, 1
      %vm786 = vcmp.eq.s32.totalorder %v770, 1
      %vm787 = vcmp.eq.s32.totalorder %v771, 1
      %vm788 = vcmp.eq.s32.totalorder %v772, 1
      %vm789 = vcmp.eq.s32.totalorder %v773, 1
      %vm790 = vcmp.eq.s32.totalorder %v774, 1
      %vm791 = vcmp.eq.s32.totalorder %v775, 1
      %vm792 = vcmp.eq.s32.totalorder %v776, 1
      %vm793 = vcmp.eq.s32.totalorder %v777, 1
      %vm794 = vcmp.eq.s32.totalorder %v778, 1
      %vm795 = vmpackc.low %vm779, %vm779
      %vm796 = vmpackc.low %vm780, %vm780
      %vm797 = vmpackc.low %vm781, %vm781
      %vm798 = vmpackc.low %vm782, %vm782
      %vm799 = vmpackc.low %vm783, %vm783
      %vm800 = vmpackc.low %vm784, %vm784
      %vm801 = vmpackc.low %vm785, %vm785
      %vm802 = vmpackc.low %vm786, %vm786
      %vm803 = vmpackc.low %vm787, %vm787
      %vm804 = vmpackc.low %vm788, %vm788
      %vm805 = vmpackc.low %vm789, %vm789
      %vm806 = vmpackc.low %vm790, %vm790
      %vm807 = vmpackc.low %vm791, %vm791
      %vm808 = vmpackc.low %vm792, %vm792
      %vm809 = vmpackc.low %vm793, %vm793
      %vm810 = vmpackc.low %vm794, %vm794
      %v811 = vsel %vm795, 65537, 0
      %v812 = vsel %vm796, 65537, 0
      %v813 = vsel %vm797, 65537, 0
      %v814 = vsel %vm798, 65537, 0
      %v815 = vsel %vm799, 65537, 0
      %v816 = vsel %vm800, 65537, 0
      %v817 = vsel %vm801, 65537, 0
      %v818 = vsel %vm802, 65537, 0
      %v819 = vsel %vm803, 65537, 0
      %v820 = vsel %vm804, 65537, 0
      %v821 = vsel %vm805, 65537, 0
      %v822 = vsel %vm806, 65537, 0
      %v823 = vsel %vm807, 65537, 0
      %v824 = vsel %vm808, 65537, 0
      %v825 = vsel %vm809, 65537, 0
      %v826 = vsel %vm810, 65537, 0
      %v827 = vunpack.c.l.b16 %v811
      %v828 = vunpack.c.l.b16 %v812
      %v829 = vunpack.c.l.b16 %v813
      %v830 = vunpack.c.l.b16 %v814
      %v831 = vunpack.c.l.b16 %v815
      %v832 = vunpack.c.l.b16 %v816
      %v833 = vunpack.c.l.b16 %v817
      %v834 = vunpack.c.l.b16 %v818
      %v835 = vunpack.c.l.b16 %v819
      %v836 = vunpack.c.l.b16 %v820
      %v837 = vunpack.c.l.b16 %v821
      %v838 = vunpack.c.l.b16 %v822
      %v839 = vunpack.c.l.b16 %v823
      %v840 = vunpack.c.l.b16 %v824
      %v841 = vunpack.c.l.b16 %v825
      %v842 = vunpack.c.l.b16 %v826
      %v843 = vpack.c.b16 %v828, %v827
      %v844 = vpack.c.b16 %v830, %v829
      %v845 = vpack.c.b16 %v832, %v831
      %v846 = vpack.c.b16 %v834, %v833
      %v847 = vpack.c.b16 %v836, %v835
      %v848 = vpack.c.b16 %v838, %v837
      %v849 = vpack.c.b16 %v840, %v839
      %v850 = vpack.c.b16 %v842, %v841
      %vm851 = vsmask.f32 7424
      %v853 = vshll.u32 %v843, 16
      %v855 = vrot.slane %v853, 1
      %v856 = vshrl.u32 %v843, 16
      %v858 = vor.u32 %v856, %v855
      %v860 = vshll.u32 %v844, 16
      %v862 = vrot.slane %v860, 1
      %v863 = vsel %vm851, %v858, %v862
      %v864 = vshrl.u32 %v844, 16
      %v866 = vor.u32 %v864, %v862
      %v868 = vshll.u32 %v845, 16
      %v870 = vrot.slane %v868, 1
      %v871 = vsel %vm851, %v866, %v870
      %v872 = vshrl.u32 %v845, 16
      %v874 = vor.u32 %v872, %v870
      %v876 = vshll.u32 %v846, 16
      %v878 = vrot.slane %v876, 1
      %v879 = vsel %vm851, %v874, %v878
      %v880 = vshrl.u32 %v846, 16
      %v882 = vor.u32 %v880, %v878
      %v884 = vshll.u32 %v847, 16
      %v886 = vrot.slane %v884, 1
      %v887 = vsel %vm851, %v882, %v886
      %v888 = vshrl.u32 %v847, 16
      %v890 = vor.u32 %v888, %v886
      %v892 = vshll.u32 %v848, 16
      %v894 = vrot.slane %v892, 1
      %v895 = vsel %vm851, %v890, %v894
      %v896 = vshrl.u32 %v848, 16
      %v898 = vor.u32 %v896, %v894
      %v900 = vshll.u32 %v849, 16
      %v902 = vrot.slane %v900, 1
      %v903 = vsel %vm851, %v898, %v902
      %v904 = vshrl.u32 %v849, 16
      %v906 = vor.u32 %v904, %v902
      %v908 = vshll.u32 %v850, 16
      %v910 = vrot.slane %v908, 1
      %v911 = vsel %vm851, %v906, %v910
      %v912 = vshrl.u32 %v850, 16
      %v914 = vor.u32 %v912, %v910
      %vm915 = vcmp.ne.s16.totalorder %v855, 0
      %vm916 = vcmp.ne.s16.totalorder %v863, 0
      %vm917 = vcmp.ne.s16.totalorder %v871, 0
      %vm918 = vcmp.ne.s16.totalorder %v879, 0
      %vm919 = vcmp.ne.s16.totalorder %v887, 0
      %vm920 = vcmp.ne.s16.totalorder %v895, 0
      %vm921 = vcmp.ne.s16.totalorder %v903, 0
      %vm922 = vcmp.ne.s16.totalorder %v911, 0
      %vm923 = vcmp.ne.s16.totalorder %v914, 0
      %v924 = vsel %vm915, %v754, 0
      %v925 = vsel %vm916, %v755, 0
      %v926 = vsel %vm917, %v756, 0
      %v927 = vsel %vm918, %v757, 0
      %v928 = vsel %vm919, %v758, 0
      %v929 = vsel %vm920, %v759, 0
      %v930 = vsel %vm921, %v760, 0
      %v931 = vsel %vm922, %v761, 0
      %v932 = vsel %vm923, %v762, 0
      %vm933 = vsmask.f32 256
      %v935 = vshrl.u32 %v924, 16
      %v937 = vrot.slane %v935, 7
      %v939 = vshrl.u32 %v925, 16
      %v941 = vrot.slane %v939, 7
      %v942 = vshll.u32 %v925, 16
      %v944 = vor.u32 %v941, %v942
      %v945 = vsel %vm933, %v937, %v944
      %v947 = vshrl.u32 %v926, 16
      %v949 = vrot.slane %v947, 7
      %v950 = vshll.u32 %v926, 16
      %v952 = vor.u32 %v949, %v950
      %v953 = vsel %vm933, %v941, %v952
      %v955 = vshrl.u32 %v927, 16
      %v957 = vrot.slane %v955, 7
      %v958 = vshll.u32 %v927, 16
      %v960 = vor.u32 %v957, %v958
      %v961 = vsel %vm933, %v949, %v960
      %v963 = vshrl.u32 %v928, 16
      %v965 = vrot.slane %v963, 7
      %v966 = vshll.u32 %v928, 16
      %v968 = vor.u32 %v965, %v966
      %v969 = vsel %vm933, %v957, %v968
      %v971 = vshrl.u32 %v929, 16
      %v973 = vrot.slane %v971, 7
      %v974 = vshll.u32 %v929, 16
      %v976 = vor.u32 %v973, %v974
      %v977 = vsel %vm933, %v965, %v976
      %v979 = vshrl.u32 %v930, 16
      %v981 = vrot.slane %v979, 7
      %v982 = vshll.u32 %v930, 16
      %v984 = vor.u32 %v981, %v982
      %v985 = vsel %vm933, %v973, %v984
      %v987 = vshrl.u32 %v931, 16
      %v989 = vrot.slane %v987, 7
      %v990 = vshll.u32 %v931, 16
      %v992 = vor.u32 %v989, %v990
      %v993 = vsel %vm933, %v981, %v992
      %v995 = vshrl.u32 %v932, 16
      %v997 = vrot.slane %v995, 7
      %v998 = vshll.u32 %v932, 16
      %v1000 = vor.u32 %v997, %v998
      %v1001 = vsel %vm933, %v989, %v1000
      %1010 = vst.msk [vmem:[#allocation3] sm:$0xff] %vm426, %v945
      %1011 = vst.msk [vmem:[#allocation3 + $0x8] sm:$0xff] %vm426, %v953
      %1012 = vst.msk [vmem:[#allocation3 + $0x10] sm:$0xff] %vm426, %v961
      %1013 = vst.msk [vmem:[#allocation3 + $0x18] sm:$0xff] %vm426, %v969
      %1014 = vst.msk [vmem:[#allocation3 + $0x20] sm:$0xff] %vm426, %v977
      %1015 = vst.msk [vmem:[#allocation3 + $0x28] sm:$0xff] %vm426, %v985
      %1016 = vst.msk [vmem:[#allocation3 + $0x30] sm:$0xff] %vm426, %v993
      %1017 = vst.msk [vmem:[#allocation3 + $0x38] sm:$0xff] %vm426, %v1001
      %v1018 = vld [vmem:[#allocation2 + $0x8] sm:$0xff]
      %v1019 = vld [vmem:[#allocation2 + $0x10] sm:$0xff]
      %v1020 = vld [vmem:[#allocation2 + $0x18] sm:$0xff]
      %v1021 = vld [vmem:[#allocation2 + $0x20] sm:$0xff]
      %v1022 = vld [vmem:[#allocation2 + $0x28] sm:$0xff]
      %v1023 = vld [vmem:[#allocation2 + $0x30] sm:$0xff]
      %v1024 = vld [vmem:[#allocation2 + $0x38] sm:$0xff]
      %v1025 = vld [vmem:[#allocation2 + $0x40] sm:$0xff]
      %1034 = vrot.lane.b32.xlu0 %v1018, 4
      %v1035 = vpop.permute.xlu0 %1034
      %1036 = vrot.lane.b32.xlu0 %v1019, 4
      %v1037 = vpop.permute.xlu0 %1036
      %1038 = vrot.lane.b32.xlu0 %v1020, 4
      %v1039 = vpop.permute.xlu0 %1038
      %1040 = vrot.lane.b32.xlu0 %v1021, 4
      %v1041 = vpop.permute.xlu0 %1040
      %1042 = vrot.lane.b32.xlu0 %v1022, 4
      %v1043 = vpop.permute.xlu0 %1042
      %1044 = vrot.lane.b32.xlu0 %v1023, 4
      %v1045 = vpop.permute.xlu0 %1044
      %1046 = vrot.lane.b32.xlu0 %v1024, 4
      %v1047 = vpop.permute.xlu0 %1046
      %1048 = vrot.lane.b32.xlu0 %v1025, 4
      %v1049 = vpop.permute.xlu0 %1048
      %vm1058 = vcmask 64544
      %1059 = vst.msk [vmem:[#allocation3] sm:$0xff] %vm1058, %v1035
      %1060 = vst.msk [vmem:[#allocation3 + $0x8] sm:$0xff] %vm1058, %v1037
      %1061 = vst.msk [vmem:[#allocation3 + $0x10] sm:$0xff] %vm1058, %v1039
      %1062 = vst.msk [vmem:[#allocation3 + $0x18] sm:$0xff] %vm1058, %v1041
      %1063 = vst.msk [vmem:[#allocation3 + $0x20] sm:$0xff] %vm1058, %v1043
      %1064 = vst.msk [vmem:[#allocation3 + $0x28] sm:$0xff] %vm1058, %v1045
      %1065 = vst.msk [vmem:[#allocation3 + $0x30] sm:$0xff] %vm1058, %v1047
      %1066 = vst.msk [vmem:[#allocation3 + $0x38] sm:$0xff] %vm1058, %v1049
      %v1067 = vld [vmem:[#allocation2 + $0x8] sm:$0xff]
      %v1068 = vld [vmem:[#allocation2 + $0x10] sm:$0xff]
      %v1069 = vld [vmem:[#allocation2 + $0x18] sm:$0xff]
      %v1070 = vld [vmem:[#allocation2 + $0x20] sm:$0xff]
      %v1071 = vld [vmem:[#allocation2 + $0x28] sm:$0xff]
      %v1072 = vld [vmem:[#allocation2 + $0x30] sm:$0xff]
      %v1073 = vld [vmem:[#allocation2 + $0x38] sm:$0xff]
      %v1074 = vld [vmem:[#allocation2 + $0x40] sm:$0xff]
      %v1075 = vld [vmem:[#allocation2 + $0x48] sm:$0x1]
      %v1076 = vsel %vm738, 1, 0
      %v1077 = vsel %vm739, 1, 0
      %v1078 = vsel %vm740, 1, 0
      %v1079 = vsel %vm741, 1, 0
      %v1080 = vsel %vm742, 1, 0
      %v1081 = vsel %vm743, 1, 0
      %v1082 = vsel %vm744, 1, 0
      %v1083 = vsel %vm745, 1, 0
      %v1084 = vsel %vm746, 1, 0
      %v1085 = vsel %vm747, 1, 0
      %v1086 = vsel %vm748, 1, 0
      %v1087 = vsel %vm749, 1, 0
      %v1088 = vsel %vm750, 1, 0
      %v1089 = vsel %vm751, 1, 0
      %v1090 = vsel %vm752, 1, 0
      %v1091 = vsel %vm753, 1, 0
      %vm1092 = vcmp.eq.s32.totalorder %v1076, 1
      %vm1093 = vcmp.eq.s32.totalorder %v1077, 1
      %vm1094 = vcmp.eq.s32.totalorder %v1078, 1
      %vm1095 = vcmp.eq.s32.totalorder %v1079, 1
      %vm1096 = vcmp.eq.s32.totalorder %v1080, 1
      %vm1097 = vcmp.eq.s32.totalorder %v1081, 1
      %vm1098 = vcmp.eq.s32.totalorder %v1082, 1
      %vm1099 = vcmp.eq.s32.totalorder %v1083, 1
      %vm1100 = vcmp.eq.s32.totalorder %v1084, 1
      %vm1101 = vcmp.eq.s32.totalorder %v1085, 1
      %vm1102 = vcmp.eq.s32.totalorder %v1086, 1
      %vm1103 = vcmp.eq.s32.totalorder %v1087, 1
      %vm1104 = vcmp.eq.s32.totalorder %v1088, 1
      %vm1105 = vcmp.eq.s32.totalorder %v1089, 1
      %vm1106 = vcmp.eq.s32.totalorder %v1090, 1
      %vm1107 = vcmp.eq.s32.totalorder %v1091, 1
      %vm1108 = vmpackc.low %vm1092, %vm1092
      %vm1109 = vmpackc.low %vm1093, %vm1093
      %vm1110 = vmpackc.low %vm1094, %vm1094
      %vm1111 = vmpackc.low %vm1095, %vm1095
      %vm1112 = vmpackc.low %vm1096, %vm1096
      %vm1113 = vmpackc.low %vm1097, %vm1097
      %vm1114 = vmpackc.low %vm1098, %vm1098
      %vm1115 = vmpackc.low %vm1099, %vm1099
      %vm1116 = vmpackc.low %vm1100, %vm1100
      %vm1117 = vmpackc.low %vm1101, %vm1101
      %vm1118 = vmpackc.low %vm1102, %vm1102
      %vm1119 = vmpackc.low %vm1103, %vm1103
      %vm1120 = vmpackc.low %vm1104, %vm1104
      %vm1121 = vmpackc.low %vm1105, %vm1105
      %vm1122 = vmpackc.low %vm1106, %vm1106
      %vm1123 = vmpackc.low %vm1107, %vm1107
      %v1124 = vsel %vm1108, 65537, 0
      %v1125 = vsel %vm1109, 65537, 0
      %v1126 = vsel %vm1110, 65537, 0
      %v1127 = vsel %vm1111, 65537, 0
      %v1128 = vsel %vm1112, 65537, 0
      %v1129 = vsel %vm1113, 65537, 0
      %v1130 = vsel %vm1114, 65537, 0
      %v1131 = vsel %vm1115, 65537, 0
      %v1132 = vsel %vm1116, 65537, 0
      %v1133 = vsel %vm1117, 65537, 0
      %v1134 = vsel %vm1118, 65537, 0
      %v1135 = vsel %vm1119, 65537, 0
      %v1136 = vsel %vm1120, 65537, 0
      %v1137 = vsel %vm1121, 65537, 0
      %v1138 = vsel %vm1122, 65537, 0
      %v1139 = vsel %vm1123, 65537, 0
      %v1140 = vunpack.c.l.b16 %v1124
      %v1141 = vunpack.c.l.b16 %v1125
      %v1142 = vunpack.c.l.b16 %v1126
      %v1143 = vunpack.c.l.b16 %v1127
      %v1144 = vunpack.c.l.b16 %v1128
      %v1145 = vunpack.c.l.b16 %v1129
      %v1146 = vunpack.c.l.b16 %v1130
      %v1147 = vunpack.c.l.b16 %v1131
      %v1148 = vunpack.c.l.b16 %v1132
      %v1149 = vunpack.c.l.b16 %v1133
      %v1150 = vunpack.c.l.b16 %v1134
      %v1151 = vunpack.c.l.b16 %v1135
      %v1152 = vunpack.c.l.b16 %v1136
      %v1153 = vunpack.c.l.b16 %v1137
      %v1154 = vunpack.c.l.b16 %v1138
      %v1155 = vunpack.c.l.b16 %v1139
      %v1156 = vpack.c.b16 %v1141, %v1140
      %v1157 = vpack.c.b16 %v1143, %v1142
      %v1158 = vpack.c.b16 %v1145, %v1144
      %v1159 = vpack.c.b16 %v1147, %v1146
      %v1160 = vpack.c.b16 %v1149, %v1148
      %v1161 = vpack.c.b16 %v1151, %v1150
      %v1162 = vpack.c.b16 %v1153, %v1152
      %v1163 = vpack.c.b16 %v1155, %v1154
      %v1165 = vshrl.u32 %v1156, 16
      %v1167 = vrot.slane %v1165, 7
      %v1168 = vshll.u32 %v1156, 16
      %v1170 = vor.u32 %v1167, %v1168
      %v1172 = vshrl.u32 %v1157, 16
      %v1174 = vrot.slane %v1172, 7
      %v1175 = vshll.u32 %v1157, 16
      %v1177 = vor.u32 %v1174, %v1175
      %v1178 = vsel %vm933, %v1167, %v1177
      %v1180 = vshrl.u32 %v1158, 16
      %v1182 = vrot.slane %v1180, 7
      %v1183 = vshll.u32 %v1158, 16
      %v1185 = vor.u32 %v1182, %v1183
      %v1186 = vsel %vm933, %v1174, %v1185
      %v1188 = vshrl.u32 %v1159, 16
      %v1190 = vrot.slane %v1188, 7
      %v1191 = vshll.u32 %v1159, 16
      %v1193 = vor.u32 %v1190, %v1191
      %v1194 = vsel %vm933, %v1182, %v1193
      %v1196 = vshrl.u32 %v1160, 16
      %v1198 = vrot.slane %v1196, 7
      %v1199 = vshll.u32 %v1160, 16
      %v1201 = vor.u32 %v1198, %v1199
      %v1202 = vsel %vm933, %v1190, %v1201
      %v1204 = vshrl.u32 %v1161, 16
      %v1206 = vrot.slane %v1204, 7
      %v1207 = vshll.u32 %v1161, 16
      %v1209 = vor.u32 %v1206, %v1207
      %v1210 = vsel %vm933, %v1198, %v1209
      %v1212 = vshrl.u32 %v1162, 16
      %v1214 = vrot.slane %v1212, 7
      %v1215 = vshll.u32 %v1162, 16
      %v1217 = vor.u32 %v1214, %v1215
      %v1218 = vsel %vm933, %v1206, %v1217
      %v1220 = vshrl.u32 %v1163, 16
      %v1222 = vrot.slane %v1220, 7
      %v1223 = vshll.u32 %v1163, 16
      %v1225 = vor.u32 %v1222, %v1223
      %v1226 = vsel %vm933, %v1214, %v1225
      %vm1227 = vcmp.ne.s16.totalorder %v1170, 0
      %vm1228 = vcmp.ne.s16.totalorder %v1178, 0
      %vm1229 = vcmp.ne.s16.totalorder %v1186, 0
      %vm1230 = vcmp.ne.s16.totalorder %v1194, 0
      %vm1231 = vcmp.ne.s16.totalorder %v1202, 0
      %vm1232 = vcmp.ne.s16.totalorder %v1210, 0
      %vm1233 = vcmp.ne.s16.totalorder %v1218, 0
      %vm1234 = vcmp.ne.s16.totalorder %v1226, 0
      %vm1235 = vcmp.ne.s16.totalorder %v1222, 0
      %v1236 = vsel %vm1227, %v1067, 0
      %v1237 = vsel %vm1228, %v1068, 0
      %v1238 = vsel %vm1229, %v1069, 0
      %v1239 = vsel %vm1230, %v1070, 0
      %v1240 = vsel %vm1231, %v1071, 0
      %v1241 = vsel %vm1232, %v1072, 0
      %v1242 = vsel %vm1233, %v1073, 0
      %v1243 = vsel %vm1234, %v1074, 0
      %v1244 = vsel %vm1235, %v1075, 0
      %v1246 = vshrl.u32 %v1236, 16
      %v1248 = vshll.u32 %v1236, 16
      %v1250 = vrot.slane %v1248, 1
      %v1251 = vor.u32 %v1246, %v1250
      %v1253 = vshll.u32 %v1237, 16
      %v1255 = vrot.slane %v1253, 1
      %v1256 = vsel %vm851, %v1251, %v1255
      %v1257 = vshrl.u32 %v1237, 16
      %v1259 = vor.u32 %v1257, %v1255
      %v1261 = vshll.u32 %v1238, 16
      %v1263 = vrot.slane %v1261, 1
      %v1264 = vsel %vm851, %v1259, %v1263
      %v1265 = vshrl.u32 %v1238, 16
      %v1267 = vor.u32 %v1265, %v1263
      %v1269 = vshll.u32 %v1239, 16
      %v1271 = vrot.slane %v1269, 1
      %v1272 = vsel %vm851, %v1267, %v1271
      %v1273 = vshrl.u32 %v1239, 16
      %v1275 = vor.u32 %v1273, %v1271
      %v1277 = vshll.u32 %v1240, 16
      %v1279 = vrot.slane %v1277, 1
      %v1280 = vsel %vm851, %v1275, %v1279
      %v1281 = vshrl.u32 %v1240, 16
      %v1283 = vor.u32 %v1281, %v1279
      %v1285 = vshll.u32 %v1241, 16
      %v1287 = vrot.slane %v1285, 1
      %v1288 = vsel %vm851, %v1283, %v1287
      %v1289 = vshrl.u32 %v1241, 16
      %v1291 = vor.u32 %v1289, %v1287
      %v1293 = vshll.u32 %v1242, 16
      %v1295 = vrot.slane %v1293, 1
      %v1296 = vsel %vm851, %v1291, %v1295
      %v1297 = vshrl.u32 %v1242, 16
      %v1299 = vor.u32 %v1297, %v1295
      %v1301 = vshll.u32 %v1243, 16
      %v1303 = vrot.slane %v1301, 1
      %v1304 = vsel %vm851, %v1299, %v1303
      %v1305 = vshrl.u32 %v1243, 16
      %v1307 = vor.u32 %v1305, %v1303
      %v1309 = vshll.u32 %v1244, 16
      %v1311 = vrot.slane %v1309, 1
      %v1312 = vsel %vm851, %v1307, %v1311
      %1313 = vrot.lane.b32.xlu0 %v1256, 8
      %v1314 = vpop.permute.xlu0 %1313
      %1315 = vrot.lane.b32.xlu0 %v1264, 8
      %v1316 = vpop.permute.xlu0 %1315
      %1317 = vrot.lane.b32.xlu0 %v1272, 8
      %v1318 = vpop.permute.xlu0 %1317
      %1319 = vrot.lane.b32.xlu0 %v1280, 8
      %v1320 = vpop.permute.xlu0 %1319
      %1321 = vrot.lane.b32.xlu0 %v1288, 8
      %v1322 = vpop.permute.xlu0 %1321
      %1323 = vrot.lane.b32.xlu0 %v1296, 8
      %v1324 = vpop.permute.xlu0 %1323
      %1325 = vrot.lane.b32.xlu0 %v1304, 8
      %v1326 = vpop.permute.xlu0 %1325
      %1327 = vrot.lane.b32.xlu0 %v1312, 8
      %v1328 = vpop.permute.xlu0 %1327
      %vm1337 = vcmask 97344
      %1338 = vst.msk [vmem:[#allocation3] sm:$0xff] %vm1337, %v1314
      %1339 = vst.msk [vmem:[#allocation3 + $0x8] sm:$0xff] %vm1337, %v1316
      %1340 = vst.msk [vmem:[#allocation3 + $0x10] sm:$0xff] %vm1337, %v1318
      %1341 = vst.msk [vmem:[#allocation3 + $0x18] sm:$0xff] %vm1337, %v1320
      %1342 = vst.msk [vmem:[#allocation3 + $0x20] sm:$0xff] %vm1337, %v1322
      %1343 = vst.msk [vmem:[#allocation3 + $0x28] sm:$0xff] %vm1337, %v1324
      %1344 = vst.msk [vmem:[#allocation3 + $0x30] sm:$0xff] %vm1337, %v1326
      %1345 = vst.msk [vmem:[#allocation3 + $0x38] sm:$0xff] %vm1337, %v1328
      %v1346 = vld [vmem:[#allocation3] sm:$0xff]
      %v1347 = vld [vmem:[#allocation3 + $0x8] sm:$0xff]
      %v1348 = vld [vmem:[#allocation3 + $0x10] sm:$0xff]
      %v1349 = vld [vmem:[#allocation3 + $0x18] sm:$0xff]
      %v1350 = vld [vmem:[#allocation3 + $0x20] sm:$0xff]
      %v1351 = vld [vmem:[#allocation3 + $0x28] sm:$0xff]
      %v1352 = vld [vmem:[#allocation3 + $0x30] sm:$0xff]
      %v1353 = vld [vmem:[#allocation3 + $0x38] sm:$0xff]
      %v1354 = vld [vmem:[%s3] sm:$0xf]
      %v1355 = vld [vmem:[%s3 + $0x4] sm:$0x3]
      %v1356 = vld [vmem:[#allocation2 + $0x8] sm:$0x80]
      %v1357 = vld [vmem:[#allocation2 + $0x10] sm:$0xff]
      %v1358 = vld [vmem:[#allocation2 + $0x18] sm:$0xff]
      %v1359 = vld [vmem:[#allocation2 + $0x20] sm:$0xff]
      %v1360 = vld [vmem:[#allocation2 + $0x28] sm:$0xff]
      %v1361 = vld [vmem:[#allocation2 + $0x30] sm:$0xff]
      %v1362 = vld [vmem:[#allocation2 + $0x38] sm:$0xff]
      %v1363 = vld [vmem:[#allocation2 + $0x40] sm:$0xff]
      %v1364 = vld [vmem:[#allocation2 + $0x48] sm:$0xff]
      %v1365 = vsel %vm915, %v1356, 0
      %v1366 = vsel %vm916, %v1357, 0
      %v1367 = vsel %vm917, %v1358, 0
      %v1368 = vsel %vm918, %v1359, 0
      %v1369 = vsel %vm919, %v1360, 0
      %v1370 = vsel %vm920, %v1361, 0
      %v1371 = vsel %vm921, %v1362, 0
      %v1372 = vsel %vm922, %v1363, 0
      %v1373 = vsel %vm923, %v1364, 0
      %v1375 = vshrl.u32 %v1365, 16
      %v1377 = vrot.slane %v1375, 7
      %v1379 = vshrl.u32 %v1366, 16
      %v1381 = vrot.slane %v1379, 7
      %v1382 = vshll.u32 %v1366, 16
      %v1384 = vor.u32 %v1381, %v1382
      %v1385 = vsel %vm933, %v1377, %v1384
      %v1387 = vshrl.u32 %v1367, 16
      %v1389 = vrot.slane %v1387, 7
      %v1390 = vshll.u32 %v1367, 16
      %v1392 = vor.u32 %v1389, %v1390
      %v1393 = vsel %vm933, %v1381, %v1392
      %v1395 = vshrl.u32 %v1368, 16
      %v1397 = vrot.slane %v1395, 7
      %v1398 = vshll.u32 %v1368, 16
      %v1400 = vor.u32 %v1397, %v1398
      %v1401 = vsel %vm933, %v1389, %v1400
      %v1403 = vshrl.u32 %v1369, 16
      %v1405 = vrot.slane %v1403, 7
      %v1406 = vshll.u32 %v1369, 16
      %v1408 = vor.u32 %v1405, %v1406
      %v1409 = vsel %vm933, %v1397, %v1408
      %v1411 = vshrl.u32 %v1370, 16
      %v1413 = vrot.slane %v1411, 7
      %v1414 = vshll.u32 %v1370, 16
      %v1416 = vor.u32 %v1413, %v1414
      %v1417 = vsel %vm933, %v1405, %v1416
      %v1419 = vshrl.u32 %v1371, 16
      %v1421 = vrot.slane %v1419, 7
      %v1422 = vshll.u32 %v1371, 16
      %v1424 = vor.u32 %v1421, %v1422
      %v1425 = vsel %vm933, %v1413, %v1424
      %v1427 = vshrl.u32 %v1372, 16
      %v1429 = vrot.slane %v1427, 7
      %v1430 = vshll.u32 %v1372, 16
      %v1432 = vor.u32 %v1429, %v1430
      %v1433 = vsel %vm933, %v1421, %v1432
      %v1435 = vshrl.u32 %v1373, 16
      %v1437 = vrot.slane %v1435, 7
      %v1438 = vshll.u32 %v1373, 16
      %v1440 = vor.u32 %v1437, %v1438
      %v1441 = vsel %vm933, %v1429, %v1440
      %1450 = vst.msk [vmem:[#allocation3] sm:$0xff] %vm426, %v1385
      %1451 = vst.msk [vmem:[#allocation3 + $0x8] sm:$0xff] %vm426, %v1393
      %1452 = vst.msk [vmem:[#allocation3 + $0x10] sm:$0xff] %vm426, %v1401
      %1453 = vst.msk [vmem:[#allocation3 + $0x18] sm:$0xff] %vm426, %v1409
      %1454 = vst.msk [vmem:[#allocation3 + $0x20] sm:$0xff] %vm426, %v1417
      %1455 = vst.msk [vmem:[#allocation3 + $0x28] sm:$0xff] %vm426, %v1425
      %1456 = vst.msk [vmem:[#allocation3 + $0x30] sm:$0xff] %vm426, %v1433
      %1457 = vst.msk [vmem:[#allocation3 + $0x38] sm:$0xff] %vm426, %v1441
      %v1458 = vld [vmem:[#allocation2 + $0x10] sm:$0xff]
      %v1459 = vld [vmem:[#allocation2 + $0x18] sm:$0xff]
      %v1460 = vld [vmem:[#allocation2 + $0x20] sm:$0xff]
      %v1461 = vld [vmem:[#allocation2 + $0x28] sm:$0xff]
      %v1462 = vld [vmem:[#allocation2 + $0x30] sm:$0xff]
      %v1463 = vld [vmem:[#allocation2 + $0x38] sm:$0xff]
      %v1464 = vld [vmem:[#allocation2 + $0x40] sm:$0xff]
      %v1465 = vld [vmem:[#allocation2 + $0x48] sm:$0xff]
      %1474 = vrot.lane.b32.xlu0 %v1458, 4
      %v1475 = vpop.permute.xlu0 %1474
      %1476 = vrot.lane.b32.xlu0 %v1459, 4
      %v1477 = vpop.permute.xlu0 %1476
      %1478 = vrot.lane.b32.xlu0 %v1460, 4
      %v1479 = vpop.permute.xlu0 %1478
      %1480 = vrot.lane.b32.xlu0 %v1461, 4
      %v1481 = vpop.permute.xlu0 %1480
      %1482 = vrot.lane.b32.xlu0 %v1462, 4
      %v1483 = vpop.permute.xlu0 %1482
      %1484 = vrot.lane.b32.xlu0 %v1463, 4
      %v1485 = vpop.permute.xlu0 %1484
      %1486 = vrot.lane.b32.xlu0 %v1464, 4
      %v1487 = vpop.permute.xlu0 %1486
      %1488 = vrot.lane.b32.xlu0 %v1465, 4
      %v1489 = vpop.permute.xlu0 %1488
      %1498 = vst.msk [vmem:[#allocation3] sm:$0xff] %vm1058, %v1475
      %1499 = vst.msk [vmem:[#allocation3 + $0x8] sm:$0xff] %vm1058, %v1477
      %1500 = vst.msk [vmem:[#allocation3 + $0x10] sm:$0xff] %vm1058, %v1479
      %1501 = vst.msk [vmem:[#allocation3 + $0x18] sm:$0xff] %vm1058, %v1481
      %1502 = vst.msk [vmem:[#allocation3 + $0x20] sm:$0xff] %vm1058, %v1483
      %1503 = vst.msk [vmem:[#allocation3 + $0x28] sm:$0xff] %vm1058, %v1485
      %1504 = vst.msk [vmem:[#allocation3 + $0x30] sm:$0xff] %vm1058, %v1487
      %1505 = vst.msk [vmem:[#allocation3 + $0x38] sm:$0xff] %vm1058, %v1489
      %v1506 = vld [vmem:[#allocation2 + $0x10] sm:$0xff]
      %v1507 = vld [vmem:[#allocation2 + $0x18] sm:$0xff]
      %v1508 = vld [vmem:[#allocation2 + $0x20] sm:$0xff]
      %v1509 = vld [vmem:[#allocation2 + $0x28] sm:$0xff]
      %v1510 = vld [vmem:[#allocation2 + $0x30] sm:$0xff]
      %v1511 = vld [vmem:[#allocation2 + $0x38] sm:$0xff]
      %v1512 = vld [vmem:[#allocation2 + $0x40] sm:$0xff]
      %v1513 = vld [vmem:[#allocation2 + $0x48] sm:$0xff]
      %v1514 = vld [vmem:[#allocation2 + $0x50] sm:$0x1]
      %v1515 = vsel %vm1227, %v1506, 0
      %v1516 = vsel %vm1228, %v1507, 0
      %v1517 = vsel %vm1229, %v1508, 0
      %v1518 = vsel %vm1230, %v1509, 0
      %v1519 = vsel %vm1231, %v1510, 0
      %v1520 = vsel %vm1232, %v1511, 0
      %v1521 = vsel %vm1233, %v1512, 0
      %v1522 = vsel %vm1234, %v1513, 0
      %v1523 = vsel %vm1235, %v1514, 0
      %v1525 = vshrl.u32 %v1515, 16
      %v1527 = vshll.u32 %v1515, 16
      %v1529 = vrot.slane %v1527, 1
      %v1530 = vor.u32 %v1525, %v1529
      %v1532 = vshll.u32 %v1516, 16
      %v1534 = vrot.slane %v1532, 1
      %v1535 = vsel %vm851, %v1530, %v1534
      %v1536 = vshrl.u32 %v1516, 16
      %v1538 = vor.u32 %v1536, %v1534
      %v1540 = vshll.u32 %v1517, 16
      %v1542 = vrot.slane %v1540, 1
      %v1543 = vsel %vm851, %v1538, %v1542
      %v1544 = vshrl.u32 %v1517, 16
      %v1546 = vor.u32 %v1544, %v1542
      %v1548 = vshll.u32 %v1518, 16
      %v1550 = vrot.slane %v1548, 1
      %v1551 = vsel %vm851, %v1546, %v1550
      %v1552 = vshrl.u32 %v1518, 16
      %v1554 = vor.u32 %v1552, %v1550
      %v1556 = vshll.u32 %v1519, 16
      %v1558 = vrot.slane %v1556, 1
      %v1559 = vsel %vm851, %v1554, %v1558
      %v1560 = vshrl.u32 %v1519, 16
      %v1562 = vor.u32 %v1560, %v1558
      %v1564 = vshll.u32 %v1520, 16
      %v1566 = vrot.slane %v1564, 1
      %v1567 = vsel %vm851, %v1562, %v1566
      %v1568 = vshrl.u32 %v1520, 16
      %v1570 = vor.u32 %v1568, %v1566
      %v1572 = vshll.u32 %v1521, 16
      %v1574 = vrot.slane %v1572, 1
      %v1575 = vsel %vm851, %v1570, %v1574
      %v1576 = vshrl.u32 %v1521, 16
      %v1578 = vor.u32 %v1576, %v1574
      %v1580 = vshll.u32 %v1522, 16
      %v1582 = vrot.slane %v1580, 1
      %v1583 = vsel %vm851, %v1578, %v1582
      %v1584 = vshrl.u32 %v1522, 16
      %v1586 = vor.u32 %v1584, %v1582
      %v1588 = vshll.u32 %v1523, 16
      %v1590 = vrot.slane %v1588, 1
      %v1591 = vsel %vm851, %v1586, %v1590
      %1592 = vrot.lane.b32.xlu0 %v1535, 8
      %v1593 = vpop.permute.xlu0 %1592
      %1594 = vrot.lane.b32.xlu0 %v1543, 8
      %v1595 = vpop.permute.xlu0 %1594
      %1596 = vrot.lane.b32.xlu0 %v1551, 8
      %v1597 = vpop.permute.xlu0 %1596
      %1598 = vrot.lane.b32.xlu0 %v1559, 8
      %v1599 = vpop.permute.xlu0 %1598
      %1600 = vrot.lane.b32.xlu0 %v1567, 8
      %v1601 = vpop.permute.xlu0 %1600
      %1602 = vrot.lane.b32.xlu0 %v1575, 8
      %v1603 = vpop.permute.xlu0 %1602
      %1604 = vrot.lane.b32.xlu0 %v1583, 8
      %v1605 = vpop.permute.xlu0 %1604
      %1606 = vrot.lane.b32.xlu0 %v1591, 8
      %v1607 = vpop.permute.xlu0 %1606
      %1616 = vst.msk [vmem:[#allocation3] sm:$0xff] %vm1337, %v1593
      %1617 = vst.msk [vmem:[#allocation3 + $0x8] sm:$0xff] %vm1337, %v1595
      %1618 = vst.msk [vmem:[#allocation3 + $0x10] sm:$0xff] %vm1337, %v1597
      %1619 = vst.msk [vmem:[#allocation3 + $0x18] sm:$0xff] %vm1337, %v1599
      %1620 = vst.msk [vmem:[#allocation3 + $0x20] sm:$0xff] %vm1337, %v1601
      %1621 = vst.msk [vmem:[#allocation3 + $0x28] sm:$0xff] %vm1337, %v1603
      %1622 = vst.msk [vmem:[#allocation3 + $0x30] sm:$0xff] %vm1337, %v1605
      %1623 = vst.msk [vmem:[#allocation3 + $0x38] sm:$0xff] %vm1337, %v1607
      %v1624 = vld [vmem:[#allocation3] sm:$0xff]
      %v1625 = vld [vmem:[#allocation3 + $0x8] sm:$0xff]
      %v1626 = vld [vmem:[#allocation3 + $0x10] sm:$0xff]
      %v1627 = vld [vmem:[#allocation3 + $0x18] sm:$0xff]
      %v1628 = vld [vmem:[#allocation3 + $0x20] sm:$0xff]
      %v1629 = vld [vmem:[#allocation3 + $0x28] sm:$0xff]
      %v1630 = vld [vmem:[#allocation3 + $0x30] sm:$0xff]
      %v1631 = vld [vmem:[#allocation3 + $0x38] sm:$0xff]
      %s1632 = scalar_lea.vmem %s3, 8
      %v1633 = vld [vmem:[%s1632] sm:$0xf]
      %v1634 = vld [vmem:[%s1632 + $0x4] sm:$0x3]
      %v1637 = vunpack.c.l.b16 %v1633
      %v1638 = vunpack.c.l.b16 %v1634
      %v1639 = vpack.c.b16 %v1638, %v1637
      %vm1640 = vcmask 97280
      %v1642 = vsel %vm1640, %v1624, 0
      %v1645 = vsel %vm1640, %v1625, 0
      %v1648 = vsel %vm1640, %v1626, 0
      %v1651 = vsel %vm1640, %v1627, 0
      %v1654 = vsel %vm1640, %v1628, 0
      %v1657 = vsel %vm1640, %v1629, 0
      %v1660 = vsel %vm1640, %v1630, 0
      %v1663 = vsel %vm1640, %v1631, 0
      %vm1665 = vcmask 1045504
      %v1667 = vsel %vm1665, %v1639, 0
      %1669 = vmatprep.subr.bf16.mxu0 0
      %1670 = vmatpush1.bf16.msra.mxu0 %v1667
      %1671 = vmatprep.subr.bf16.mxu0 0
      %1672 = vmatpush1.bf16.msra.mxu0 0
      %1673 = vmatprep.subr.bf16.mxu0 0
      %1674 = vmatpush1.bf16.msra.mxu0 0
      %1675 = vmatprep.subr.bf16.mxu0 0
      %1676 = vmatpush1.bf16.msra.mxu0 0
      %1677 = vmatprep.subr.bf16.mxu0 0
      %1678 = vmatpush1.bf16.msra.mxu0 0
      %1679 = vmatprep.subr.bf16.mxu0 0
      %1680 = vmatpush1.bf16.msra.mxu0 0
      %1681 = vmatprep.subr.bf16.mxu0 0
      %1682 = vmatpush1.bf16.msra.mxu0 0
      %1683 = vmatprep.subr.bf16.mxu0 0
      %1684 = vmatpush1.bf16.msra.mxu0 0
      %1685 = vmatprep.subr.bf16.mxu0 0
      %1686 = vmatpush1.bf16.msra.mxu0 0
      %1687 = vmatprep.subr.bf16.mxu0 0
      %1688 = vmatpush1.bf16.msra.mxu0 0
      %1689 = vmatprep.subr.bf16.mxu0 0
      %1690 = vmatpush1.bf16.msra.mxu0 0
      %1691 = vmatprep.subr.bf16.mxu0 0
      %1692 = vmatpush1.bf16.msra.mxu0 0
      %1693 = vmatprep.subr.bf16.mxu0 0
      %1694 = vmatpush1.bf16.msra.mxu0 0
      %1695 = vmatprep.subr.bf16.mxu0 0
      %1696 = vmatpush1.bf16.msra.mxu0 0
      %1697 = vmatprep.subr.bf16.mxu0 0
      %1698 = vmatpush1.bf16.msra.mxu0 0
      %1699 = vmatprep.subr.bf16.mxu0 0
      %1700 = vmatpush1.bf16.msra.mxu0 0
      %1701 = vmatprep.mubr.bf16.mxu0 0
      %1702 = vmatmul.mubr.bf16.gmra.mrb[0].mxu0 %v1642
      %v1703 = vpop.f32.mrb[0].mxu0
      %v1704 = vadd.f32 0.0, %v1703
      %v1705 = vpop.f32.mrb[0].mxu0
      %v1706 = vpop.f32.mrb[0].mxu0
      %v1707 = vadd.f32 0.0, %v1706
      %v1708 = vpop.f32.mrb[0].mxu0
      %1709 = vmatprep.mubr.bf16.mxu0 0
      %1710 = vmatmul.mubr.bf16.gmra.mrb[0].mxu0 %v1645
      %v1711 = vpop.f32.mrb[0].mxu0
      %v1712 = vadd.f32 0.0, %v1711
      %v1713 = vpop.f32.mrb[0].mxu0
      %v1714 = vpop.f32.mrb[0].mxu0
      %v1715 = vadd.f32 0.0, %v1714
      %v1716 = vpop.f32.mrb[0].mxu0
      %1717 = vmatprep.mubr.bf16.mxu0 0
      %1718 = vmatmul.mubr.bf16.gmra.mrb[0].mxu0 %v1648
      %v1719 = vpop.f32.mrb[0].mxu0
      %v1720 = vadd.f32 0.0, %v1719
      %v1721 = vpop.f32.mrb[0].mxu0
      %v1722 = vpop.f32.mrb[0].mxu0
      %v1723 = vadd.f32 0.0, %v1722
      %v1724 = vpop.f32.mrb[0].mxu0
      %1725 = vmatprep.mubr.bf16.mxu0 0
      %1726 = vmatmul.mubr.bf16.gmra.mrb[0].mxu0 %v1651
      %v1727 = vpop.f32.mrb[0].mxu0
      %v1728 = vadd.f32 0.0, %v1727
      %v1729 = vpop.f32.mrb[0].mxu0
      %v1730 = vpop.f32.mrb[0].mxu0
      %v1731 = vadd.f32 0.0, %v1730
      %v1732 = vpop.f32.mrb[0].mxu0
      %1733 = vmatprep.mubr.bf16.mxu0 0
      %1734 = vmatmul.mubr.bf16.gmra.mrb[0].mxu0 %v1654
      %v1735 = vpop.f32.mrb[0].mxu0
      %v1736 = vadd.f32 0.0, %v1735
      %v1737 = vpop.f32.mrb[0].mxu0
      %v1738 = vpop.f32.mrb[0].mxu0
      %v1739 = vadd.f32 0.0, %v1738
      %v1740 = vpop.f32.mrb[0].mxu0
      %1741 = vmatprep.mubr.bf16.mxu0 0
      %1742 = vmatmul.mubr.bf16.gmra.mrb[0].mxu0 %v1657
      %v1743 = vpop.f32.mrb[0].mxu0
      %v1744 = vadd.f32 0.0, %v1743
      %v1745 = vpop.f32.mrb[0].mxu0
      %v1746 = vpop.f32.mrb[0].mxu0
      %v1747 = vadd.f32 0.0, %v1746
      %v1748 = vpop.f32.mrb[0].mxu0
      %1749 = vmatprep.mubr.bf16.mxu0 0
      %1750 = vmatmul.mubr.bf16.gmra.mrb[0].mxu0 %v1660
      %v1751 = vpop.f32.mrb[0].mxu0
      %v1752 = vadd.f32 0.0, %v1751
      %v1753 = vpop.f32.mrb[0].mxu0
      %v1754 = vpop.f32.mrb[0].mxu0
      %v1755 = vadd.f32 0.0, %v1754
      %v1756 = vpop.f32.mrb[0].mxu0
      %1757 = vmatprep.mubr.bf16.mxu0 0
      %1758 = vmatmul.mubr.bf16.gmra.mrb[0].mxu0 %v1663
      %v1759 = vpop.f32.mrb[0].mxu0
      %v1760 = vadd.f32 0.0, %v1759
      %v1761 = vpop.f32.mrb[0].mxu0
      %v1762 = vpop.f32.mrb[0].mxu0
      %v1763 = vadd.f32 0.0, %v1762
      %v1764 = vpop.f32.mrb[0].mxu0
      %1765 = vdwg.mxu0
      %v1768 = vunpack.c.l.b16 %v1354
      %v1769 = vunpack.c.l.b16 %v1355
      %v1770 = vpack.c.b16 %v1769, %v1768
      %v1772 = vsel %vm1640, %v1346, 0
      %v1775 = vsel %vm1640, %v1347, 0
      %v1778 = vsel %vm1640, %v1348, 0
      %v1781 = vsel %vm1640, %v1349, 0
      %v1784 = vsel %vm1640, %v1350, 0
      %v1787 = vsel %vm1640, %v1351, 0
      %v1790 = vsel %vm1640, %v1352, 0
      %v1793 = vsel %vm1640, %v1353, 0
      %v1796 = vsel %vm1665, %v1770, 0
      %1798 = vmatprep.subr.bf16.mxu0 0
      %1799 = vmatpush1.bf16.msra.mxu0 %v1796
      %1800 = vmatprep.subr.bf16.mxu0 0
      %1801 = vmatpush1.bf16.msra.mxu0 0
      %1802 = vmatprep.subr.bf16.mxu0 0
      %1803 = vmatpush1.bf16.msra.mxu0 0
      %1804 = vmatprep.subr.bf16.mxu0 0
      %1805 = vmatpush1.bf16.msra.mxu0 0
      %1806 = vmatprep.subr.bf16.mxu0 0
      %1807 = vmatpush1.bf16.msra.mxu0 0
      %1808 = vmatprep.subr.bf16.mxu0 0
      %1809 = vmatpush1.bf16.msra.mxu0 0
      %1810 = vmatprep.subr.bf16.mxu0 0
      %1811 = vmatpush1.bf16.msra.mxu0 0
      %1812 = vmatprep.subr.bf16.mxu0 0
      %1813 = vmatpush1.bf16.msra.mxu0 0
      %1814 = vmatprep.subr.bf16.mxu0 0
      %1815 = vmatpush1.bf16.msra.mxu0 0
      %1816 = vmatprep.subr.bf16.mxu0 0
      %1817 = vmatpush1.bf16.msra.mxu0 0
      %1818 = vmatprep.subr.bf16.mxu0 0
      %1819 = vmatpush1.bf16.msra.mxu0 0
      %1820 = vmatprep.subr.bf16.mxu0 0
      %1821 = vmatpush1.bf16.msra.mxu0 0
      %1822 = vmatprep.subr.bf16.mxu0 0
      %1823 = vmatpush1.bf16.msra.mxu0 0
      %1824 = vmatprep.subr.bf16.mxu0 0
      %1825 = vmatpush1.bf16.msra.mxu0 0
      %1826 = vmatprep.subr.bf16.mxu0 0
      %1827 = vmatpush1.bf16.msra.mxu0 0
      %1828 = vmatprep.subr.bf16.mxu0 0
      %1829 = vmatpush1.bf16.msra.mxu0 0
      %1830 = vmatprep.mubr.bf16.mxu0 0
      %1831 = vmatmul.mubr.bf16.gmra.mrb[0].mxu0 %v1772
      %v1832 = vpop.f32.mrb[0].mxu0
      %v1833 = vadd.f32 %v1704, %v1832
      %v1834 = vpop.f32.mrb[0].mxu0
      %v1835 = vpop.f32.mrb[0].mxu0
      %v1836 = vadd.f32 %v1707, %v1835
      %v1837 = vpop.f32.mrb[0].mxu0
      %1838 = vmatprep.mubr.bf16.mxu0 0
      %1839 = vmatmul.mubr.bf16.gmra.mrb[0].mxu0 %v1775
      %v1840 = vpop.f32.mrb[0].mxu0
      %v1841 = vadd.f32 %v1712, %v1840
      %v1842 = vpop.f32.mrb[0].mxu0
      %v1843 = vpop.f32.mrb[0].mxu0
      %v1844 = vadd.f32 %v1715, %v1843
      %v1845 = vpop.f32.mrb[0].mxu0
      %1846 = vmatprep.mubr.bf16.mxu0 0
      %1847 = vmatmul.mubr.bf16.gmra.mrb[0].mxu0 %v1778
      %v1848 = vpop.f32.mrb[0].mxu0
      %v1849 = vadd.f32 %v1720, %v1848
      %v1850 = vpop.f32.mrb[0].mxu0
      %v1851 = vpop.f32.mrb[0].mxu0
      %v1852 = vadd.f32 %v1723, %v1851
      %v1853 = vpop.f32.mrb[0].mxu0
      %1854 = vmatprep.mubr.bf16.mxu0 0
      %1855 = vmatmul.mubr.bf16.gmra.mrb[0].mxu0 %v1781
      %v1856 = vpop.f32.mrb[0].mxu0
      %v1857 = vadd.f32 %v1728, %v1856
      %v1858 = vpop.f32.mrb[0].mxu0
      %v1859 = vpop.f32.mrb[0].mxu0
      %v1860 = vadd.f32 %v1731, %v1859
      %v1861 = vpop.f32.mrb[0].mxu0
      %1862 = vmatprep.mubr.bf16.mxu0 0
      %1863 = vmatmul.mubr.bf16.gmra.mrb[0].mxu0 %v1784
      %v1864 = vpop.f32.mrb[0].mxu0
      %v1865 = vadd.f32 %v1736, %v1864
      %v1866 = vpop.f32.mrb[0].mxu0
      %v1867 = vpop.f32.mrb[0].mxu0
      %v1868 = vadd.f32 %v1739, %v1867
      %v1869 = vpop.f32.mrb[0].mxu0
      %1870 = vmatprep.mubr.bf16.mxu0 0
      %1871 = vmatmul.mubr.bf16.gmra.mrb[0].mxu0 %v1787
      %v1872 = vpop.f32.mrb[0].mxu0
      %v1873 = vadd.f32 %v1744, %v1872
      %v1874 = vpop.f32.mrb[0].mxu0
      %v1875 = vpop.f32.mrb[0].mxu0
      %v1876 = vadd.f32 %v1747, %v1875
      %v1877 = vpop.f32.mrb[0].mxu0
      %1878 = vmatprep.mubr.bf16.mxu0 0
      %1879 = vmatmul.mubr.bf16.gmra.mrb[0].mxu0 %v1790
      %v1880 = vpop.f32.mrb[0].mxu0
      %v1881 = vadd.f32 %v1752, %v1880
      %v1882 = vpop.f32.mrb[0].mxu0
      %v1883 = vpop.f32.mrb[0].mxu0
      %v1884 = vadd.f32 %v1755, %v1883
      %v1885 = vpop.f32.mrb[0].mxu0
      %1886 = vmatprep.mubr.bf16.mxu0 0
      %1887 = vmatmul.mubr.bf16.gmra.mrb[0].mxu0 %v1793
      %v1888 = vpop.f32.mrb[0].mxu0
      %v1889 = vadd.f32 %v1760, %v1888
      %v1890 = vpop.f32.mrb[0].mxu0
      %v1891 = vpop.f32.mrb[0].mxu0
      %v1892 = vadd.f32 %v1763, %v1891
      %v1893 = vpop.f32.mrb[0].mxu0
      %1894 = vdwg.mxu0
      %v1895 = vld [vmem:[#allocation2 + $0x10] sm:$0x80]
      %v1896 = vld [vmem:[#allocation2 + $0x18] sm:$0xff]
      %v1897 = vld [vmem:[#allocation2 + $0x20] sm:$0xff]
      %v1898 = vld [vmem:[#allocation2 + $0x28] sm:$0xff]
      %v1899 = vld [vmem:[#allocation2 + $0x30] sm:$0xff]
      %v1900 = vld [vmem:[#allocation2 + $0x38] sm:$0xff]
      %v1901 = vld [vmem:[#allocation2 + $0x40] sm:$0xff]
      %v1902 = vld [vmem:[#allocation2 + $0x48] sm:$0xff]
      %v1903 = vld [vmem:[#allocation2 + $0x50] sm:$0xff]
      %v1904 = vsel %vm915, %v1895, 0
      %v1905 = vsel %vm916, %v1896, 0
      %v1906 = vsel %vm917, %v1897, 0
      %v1907 = vsel %vm918, %v1898, 0
      %v1908 = vsel %vm919, %v1899, 0
      %v1909 = vsel %vm920, %v1900, 0
      %v1910 = vsel %vm921, %v1901, 0
      %v1911 = vsel %vm922, %v1902, 0
      %v1912 = vsel %vm923, %v1903, 0
      %v1914 = vshrl.u32 %v1904, 16
      %v1916 = vrot.slane %v1914, 7
      %v1918 = vshrl.u32 %v1905, 16
      %v1920 = vrot.slane %v1918, 7
      %v1921 = vshll.u32 %v1905, 16
      %v1923 = vor.u32 %v1920, %v1921
      %v1924 = vsel %vm933, %v1916, %v1923
      %v1926 = vshrl.u32 %v1906, 16
      %v1928 = vrot.slane %v1926, 7
      %v1929 = vshll.u32 %v1906, 16
      %v1931 = vor.u32 %v1928, %v1929
      %v1932 = vsel %vm933, %v1920, %v1931
      %v1934 = vshrl.u32 %v1907, 16
      %v1936 = vrot.slane %v1934, 7
      %v1937 = vshll.u32 %v1907, 16
      %v1939 = vor.u32 %v1936, %v1937
      %v1940 = vsel %vm933, %v1928, %v1939
      %v1942 = vshrl.u32 %v1908, 16
      %v1944 = vrot.slane %v1942, 7
      %v1945 = vshll.u32 %v1908, 16
      %v1947 = vor.u32 %v1944, %v1945
      %v1948 = vsel %vm933, %v1936, %v1947
      %v1950 = vshrl.u32 %v1909, 16
      %v1952 = vrot.slane %v1950, 7
      %v1953 = vshll.u32 %v1909, 16
      %v1955 = vor.u32 %v1952, %v1953
      %v1956 = vsel %vm933, %v1944, %v1955
      %v1958 = vshrl.u32 %v1910, 16
      %v1960 = vrot.slane %v1958, 7
      %v1961 = vshll.u32 %v1910, 16
      %v1963 = vor.u32 %v1960, %v1961
      %v1964 = vsel %vm933, %v1952, %v1963
      %v1966 = vshrl.u32 %v1911, 16
      %v1968 = vrot.slane %v1966, 7
      %v1969 = vshll.u32 %v1911, 16
      %v1971 = vor.u32 %v1968, %v1969
      %v1972 = vsel %vm933, %v1960, %v1971
      %v1974 = vshrl.u32 %v1912, 16
      %v1976 = vrot.slane %v1974, 7
      %v1977 = vshll.u32 %v1912, 16
      %v1979 = vor.u32 %v1976, %v1977
      %v1980 = vsel %vm933, %v1968, %v1979
      %1989 = vst.msk [vmem:[#allocation3] sm:$0xff] %vm426, %v1924
      %1990 = vst.msk [vmem:[#allocation3 + $0x8] sm:$0xff] %vm426, %v1932
      %1991 = vst.msk [vmem:[#allocation3 + $0x10] sm:$0xff] %vm426, %v1940
      %1992 = vst.msk [vmem:[#allocation3 + $0x18] sm:$0xff] %vm426, %v1948
      %1993 = vst.msk [vmem:[#allocation3 + $0x20] sm:$0xff] %vm426, %v1956
      %1994 = vst.msk [vmem:[#allocation3 + $0x28] sm:$0xff] %vm426, %v1964
      %1995 = vst.msk [vmem:[#allocation3 + $0x30] sm:$0xff] %vm426, %v1972
      %1996 = vst.msk [vmem:[#allocation3 + $0x38] sm:$0xff] %vm426, %v1980
      %v1997 = vld [vmem:[#allocation2 + $0x18] sm:$0xff]
      %v1998 = vld [vmem:[#allocation2 + $0x20] sm:$0xff]
      %v1999 = vld [vmem:[#allocation2 + $0x28] sm:$0xff]
      %v2000 = vld [vmem:[#allocation2 + $0x30] sm:$0xff]
      %v2001 = vld [vmem:[#allocation2 + $0x38] sm:$0xff]
      %v2002 = vld [vmem:[#allocation2 + $0x40] sm:$0xff]
      %v2003 = vld [vmem:[#allocation2 + $0x48] sm:$0xff]
      %v2004 = vld [vmem:[#allocation2 + $0x50] sm:$0xff]
      %2013 = vrot.lane.b32.xlu0 %v1997, 4
      %v2014 = vpop.permute.xlu0 %2013
      %2015 = vrot.lane.b32.xlu0 %v1998, 4
      %v2016 = vpop.permute.xlu0 %2015
      %2017 = vrot.lane.b32.xlu0 %v1999, 4
      %v2018 = vpop.permute.xlu0 %2017
      %2019 = vrot.lane.b32.xlu0 %v2000, 4
      %v2020 = vpop.permute.xlu0 %2019
      %2021 = vrot.lane.b32.xlu0 %v2001, 4
      %v2022 = vpop.permute.xlu0 %2021
      %2023 = vrot.lane.b32.xlu0 %v2002, 4
      %v2024 = vpop.permute.xlu0 %2023
      %2025 = vrot.lane.b32.xlu0 %v2003, 4
      %v2026 = vpop.permute.xlu0 %2025
      %2027 = vrot.lane.b32.xlu0 %v2004, 4
      %v2028 = vpop.permute.xlu0 %2027
      %2037 = vst.msk [vmem:[#allocation3] sm:$0xff] %vm1058, %v2014
      %2038 = vst.msk [vmem:[#allocation3 + $0x8] sm:$0xff] %vm1058, %v2016
      %2039 = vst.msk [vmem:[#allocation3 + $0x10] sm:$0xff] %vm1058, %v2018
      %2040 = vst.msk [vmem:[#allocation3 + $0x18] sm:$0xff] %vm1058, %v2020
      %2041 = vst.msk [vmem:[#allocation3 + $0x20] sm:$0xff] %vm1058, %v2022
      %2042 = vst.msk [vmem:[#allocation3 + $0x28] sm:$0xff] %vm1058, %v2024
      %2043 = vst.msk [vmem:[#allocation3 + $0x30] sm:$0xff] %vm1058, %v2026
      %2044 = vst.msk [vmem:[#allocation3 + $0x38] sm:$0xff] %vm1058, %v2028
      %v2045 = vld [vmem:[#allocation2 + $0x18] sm:$0xff]
      %v2046 = vld [vmem:[#allocation2 + $0x20] sm:$0xff]
      %v2047 = vld [vmem:[#allocation2 + $0x28] sm:$0xff]
      %v2048 = vld [vmem:[#allocation2 + $0x30] sm:$0xff]
      %v2049 = vld [vmem:[#allocation2 + $0x38] sm:$0xff]
      %v2050 = vld [vmem:[#allocation2 + $0x40] sm:$0xff]
      %v2051 = vld [vmem:[#allocation2 + $0x48] sm:$0xff]
      %v2052 = vld [vmem:[#allocation2 + $0x50] sm:$0xff]
      %v2053 = vld [vmem:[#allocation2 + $0x58] sm:$0x1]
      %v2054 = vsel %vm1227, %v2045, 0
      %v2055 = vsel %vm1228, %v2046, 0
      %v2056 = vsel %vm1229, %v2047, 0
      %v2057 = vsel %vm1230, %v2048, 0
      %v2058 = vsel %vm1231, %v2049, 0
      %v2059 = vsel %vm1232, %v2050, 0
      %v2060 = vsel %vm1233, %v2051, 0
      %v2061 = vsel %vm1234, %v2052, 0
      %v2062 = vsel %vm1235, %v2053, 0
      %v2064 = vshrl.u32 %v2054, 16
      %v2066 = vshll.u32 %v2054, 16
      %v2068 = vrot.slane %v2066, 1
      %v2069 = vor.u32 %v2064, %v2068
      %v2071 = vshll.u32 %v2055, 16
      %v2073 = vrot.slane %v2071, 1
      %v2074 = vsel %vm851, %v2069, %v2073
      %v2075 = vshrl.u32 %v2055, 16
      %v2077 = vor.u32 %v2075, %v2073
      %v2079 = vshll.u32 %v2056, 16
      %v2081 = vrot.slane %v2079, 1
      %v2082 = vsel %vm851, %v2077, %v2081
      %v2083 = vshrl.u32 %v2056, 16
      %v2085 = vor.u32 %v2083, %v2081
      %v2087 = vshll.u32 %v2057, 16
      %v2089 = vrot.slane %v2087, 1
      %v2090 = vsel %vm851, %v2085, %v2089
      %v2091 = vshrl.u32 %v2057, 16
      %v2093 = vor.u32 %v2091, %v2089
      %v2095 = vshll.u32 %v2058, 16
      %v2097 = vrot.slane %v2095, 1
      %v2098 = vsel %vm851, %v2093, %v2097
      %v2099 = vshrl.u32 %v2058, 16
      %v2101 = vor.u32 %v2099, %v2097
      %v2103 = vshll.u32 %v2059, 16
      %v2105 = vrot.slane %v2103, 1
      %v2106 = vsel %vm851, %v2101, %v2105
      %v2107 = vshrl.u32 %v2059, 16
      %v2109 = vor.u32 %v2107, %v2105
      %v2111 = vshll.u32 %v2060, 16
      %v2113 = vrot.slane %v2111, 1
      %v2114 = vsel %vm851, %v2109, %v2113
      %v2115 = vshrl.u32 %v2060, 16
      %v2117 = vor.u32 %v2115, %v2113
      %v2119 = vshll.u32 %v2061, 16
      %v2121 = vrot.slane %v2119, 1
      %v2122 = vsel %vm851, %v2117, %v2121
      %v2123 = vshrl.u32 %v2061, 16
      %v2125 = vor.u32 %v2123, %v2121
      %v2127 = vshll.u32 %v2062, 16
      %v2129 = vrot.slane %v2127, 1
      %v2130 = vsel %vm851, %v2125, %v2129
      %2131 = vrot.lane.b32.xlu0 %v2074, 8
      %v2132 = vpop.permute.xlu0 %2131
      %2133 = vrot.lane.b32.xlu0 %v2082, 8
      %v2134 = vpop.permute.xlu0 %2133
      %2135 = vrot.lane.b32.xlu0 %v2090, 8
      %v2136 = vpop.permute.xlu0 %2135
      %2137 = vrot.lane.b32.xlu0 %v2098, 8
      %v2138 = vpop.permute.xlu0 %2137
      %2139 = vrot.lane.b32.xlu0 %v2106, 8
      %v2140 = vpop.permute.xlu0 %2139
      %2141 = vrot.lane.b32.xlu0 %v2114, 8
      %v2142 = vpop.permute.xlu0 %2141
      %2143 = vrot.lane.b32.xlu0 %v2122, 8
      %v2144 = vpop.permute.xlu0 %2143
      %2145 = vrot.lane.b32.xlu0 %v2130, 8
      %v2146 = vpop.permute.xlu0 %2145
      %2155 = vst.msk [vmem:[#allocation3] sm:$0xff] %vm1337, %v2132
      %2156 = vst.msk [vmem:[#allocation3 + $0x8] sm:$0xff] %vm1337, %v2134
      %2157 = vst.msk [vmem:[#allocation3 + $0x10] sm:$0xff] %vm1337, %v2136
      %2158 = vst.msk [vmem:[#allocation3 + $0x18] sm:$0xff] %vm1337, %v2138
      %2159 = vst.msk [vmem:[#allocation3 + $0x20] sm:$0xff] %vm1337, %v2140
      %2160 = vst.msk [vmem:[#allocation3 + $0x28] sm:$0xff] %vm1337, %v2142
      %2161 = vst.msk [vmem:[#allocation3 + $0x30] sm:$0xff] %vm1337, %v2144
      %2162 = vst.msk [vmem:[#allocation3 + $0x38] sm:$0xff] %vm1337, %v2146
      %v2163 = vld [vmem:[#allocation3] sm:$0xff]
      %v2164 = vld [vmem:[#allocation3 + $0x8] sm:$0xff]
      %v2165 = vld [vmem:[#allocation3 + $0x10] sm:$0xff]
      %v2166 = vld [vmem:[#allocation3 + $0x18] sm:$0xff]
      %v2167 = vld [vmem:[#allocation3 + $0x20] sm:$0xff]
      %v2168 = vld [vmem:[#allocation3 + $0x28] sm:$0xff]
      %v2169 = vld [vmem:[#allocation3 + $0x30] sm:$0xff]
      %v2170 = vld [vmem:[#allocation3 + $0x38] sm:$0xff]
      %s2171 = scalar_lea.vmem %s3, 16
      %v2172 = vld [vmem:[%s2171] sm:$0xf]
      %v2173 = vld [vmem:[%s2171 + $0x4] sm:$0x3]
      %v2176 = vunpack.c.l.b16 %v2172
      %v2177 = vunpack.c.l.b16 %v2173
      %v2178 = vpack.c.b16 %v2177, %v2176
      %v2180 = vsel %vm1640, %v2163, 0
      %v2183 = vsel %vm1640, %v2164, 0
      %v2186 = vsel %vm1640, %v2165, 0
      %v2189 = vsel %vm1640, %v2166, 0
      %v2192 = vsel %vm1640, %v2167, 0
      %v2195 = vsel %vm1640, %v2168, 0
      %v2198 = vsel %vm1640, %v2169, 0
      %v2201 = vsel %vm1640, %v2170, 0
      %v2204 = vsel %vm1665, %v2178, 0
      %2206 = vmatprep.subr.bf16.mxu0 0
      %2207 = vmatpush1.bf16.msra.mxu0 %v2204
      %2208 = vmatprep.subr.bf16.mxu0 0
      %2209 = vmatpush1.bf16.msra.mxu0 0
      %2210 = vmatprep.subr.bf16.mxu0 0
      %2211 = vmatpush1.bf16.msra.mxu0 0
      %2212 = vmatprep.subr.bf16.mxu0 0
      %2213 = vmatpush1.bf16.msra.mxu0 0
      %2214 = vmatprep.subr.bf16.mxu0 0
      %2215 = vmatpush1.bf16.msra.mxu0 0
      %2216 = vmatprep.subr.bf16.mxu0 0
      %2217 = vmatpush1.bf16.msra.mxu0 0
      %2218 = vmatprep.subr.bf16.mxu0 0
      %2219 = vmatpush1.bf16.msra.mxu0 0
      %2220 = vmatprep.subr.bf16.mxu0 0
      %2221 = vmatpush1.bf16.msra.mxu0 0
      %2222 = vmatprep.subr.bf16.mxu0 0
      %2223 = vmatpush1.bf16.msra.mxu0 0
      %2224 = vmatprep.subr.bf16.mxu0 0
      %2225 = vmatpush1.bf16.msra.mxu0 0
      %2226 = vmatprep.subr.bf16.mxu0 0
      %2227 = vmatpush1.bf16.msra.mxu0 0
      %2228 = vmatprep.subr.bf16.mxu0 0
      %2229 = vmatpush1.bf16.msra.mxu0 0
      %2230 = vmatprep.subr.bf16.mxu0 0
      %2231 = vmatpush1.bf16.msra.mxu0 0
      %2232 = vmatprep.subr.bf16.mxu0 0
      %2233 = vmatpush1.bf16.msra.mxu0 0
      %2234 = vmatprep.subr.bf16.mxu0 0
      %2235 = vmatpush1.bf16.msra.mxu0 0
      %2236 = vmatprep.subr.bf16.mxu0 0
      %2237 = vmatpush1.bf16.msra.mxu0 0
      %2238 = vmatprep.mubr.bf16.mxu0 0
      %2239 = vmatmul.mubr.bf16.gmra.mrb[0].mxu0 %v2180
      %v2240 = vpop.f32.mrb[0].mxu0
      %v2241 = vadd.f32 0.0, %v2240
      %v2242 = vpop.f32.mrb[0].mxu0
      %v2243 = vpop.f32.mrb[0].mxu0
      %v2244 = vadd.f32 0.0, %v2243
      %v2245 = vpop.f32.mrb[0].mxu0
      %2246 = vmatprep.mubr.bf16.mxu0 0
      %2247 = vmatmul.mubr.bf16.gmra.mrb[0].mxu0 %v2183
      %v2248 = vpop.f32.mrb[0].mxu0
      %v2249 = vadd.f32 0.0, %v2248
      %v2250 = vpop.f32.mrb[0].mxu0
      %v2251 = vpop.f32.mrb[0].mxu0
      %v2252 = vadd.f32 0.0, %v2251
      %v2253 = vpop.f32.mrb[0].mxu0
      %2254 = vmatprep.mubr.bf16.mxu0 0
      %2255 = vmatmul.mubr.bf16.gmra.mrb[0].mxu0 %v2186
      %v2256 = vpop.f32.mrb[0].mxu0
      %v2257 = vadd.f32 0.0, %v2256
      %v2258 = vpop.f32.mrb[0].mxu0
      %v2259 = vpop.f32.mrb[0].mxu0
      %v2260 = vadd.f32 0.0, %v2259
      %v2261 = vpop.f32.mrb[0].mxu0
      %2262 = vmatprep.mubr.bf16.mxu0 0
      %2263 = vmatmul.mubr.bf16.gmra.mrb[0].mxu0 %v2189
      %v2264 = vpop.f32.mrb[0].mxu0
      %v2265 = vadd.f32 0.0, %v2264
      %v2266 = vpop.f32.mrb[0].mxu0
      %v2267 = vpop.f32.mrb[0].mxu0
      %v2268 = vadd.f32 0.0, %v2267
      %v2269 = vpop.f32.mrb[0].mxu0
      %2270 = vmatprep.mubr.bf16.mxu0 0
      %2271 = vmatmul.mubr.bf16.gmra.mrb[0].mxu0 %v2192
      %v2272 = vpop.f32.mrb[0].mxu0
      %v2273 = vadd.f32 0.0, %v2272
      %v2274 = vpop.f32.mrb[0].mxu0
      %v2275 = vpop.f32.mrb[0].mxu0
      %v2276 = vadd.f32 0.0, %v2275
      %v2277 = vpop.f32.mrb[0].mxu0
      %2278 = vmatprep.mubr.bf16.mxu0 0
      %2279 = vmatmul.mubr.bf16.gmra.mrb[0].mxu0 %v2195
      %v2280 = vpop.f32.mrb[0].mxu0
      %v2281 = vadd.f32 0.0, %v2280
      %v2282 = vpop.f32.mrb[0].mxu0
      %v2283 = vpop.f32.mrb[0].mxu0
      %v2284 = vadd.f32 0.0, %v2283
      %v2285 = vpop.f32.mrb[0].mxu0
      %2286 = vmatprep.mubr.bf16.mxu0 0
      %2287 = vmatmul.mubr.bf16.gmra.mrb[0].mxu0 %v2198
      %v2288 = vpop.f32.mrb[0].mxu0
      %v2289 = vadd.f32 0.0, %v2288
      %v2290 = vpop.f32.mrb[0].mxu0
      %v2291 = vpop.f32.mrb[0].mxu0
      %v2292 = vadd.f32 0.0, %v2291
      %v2293 = vpop.f32.mrb[0].mxu0
      %2294 = vmatprep.mubr.bf16.mxu0 0
      %2295 = vmatmul.mubr.bf16.gmra.mrb[0].mxu0 %v2201
      %v2296 = vpop.f32.mrb[0].mxu0
      %v2297 = vadd.f32 0.0, %v2296
      %v2298 = vpop.f32.mrb[0].mxu0
      %v2299 = vpop.f32.mrb[0].mxu0
      %v2300 = vadd.f32 0.0, %v2299
      %v2301 = vpop.f32.mrb[0].mxu0
      %2302 = vdwg.mxu0
      %v2303 = vadd.f32 %v1833, %v2241
      %v2304 = vadd.f32 %v1836, %v2244
      %v2305 = vadd.f32 %v1841, %v2249
      %v2306 = vadd.f32 %v1844, %v2252
      %v2307 = vadd.f32 %v1849, %v2257
      %v2308 = vadd.f32 %v1852, %v2260
      %v2309 = vadd.f32 %v1857, %v2265
      %v2310 = vadd.f32 %v1860, %v2268
      %v2311 = vadd.f32 %v1865, %v2273
      %v2312 = vadd.f32 %v1868, %v2276
      %v2313 = vadd.f32 %v1873, %v2281
      %v2314 = vadd.f32 %v1876, %v2284
      %v2315 = vadd.f32 %v1881, %v2289
      %v2316 = vadd.f32 %v1884, %v2292
      %v2317 = vadd.f32 %v1889, %v2297
      %v2318 = vadd.f32 %v1892, %v2300
      %v2319 = vpack.c.bf16 %v2304, %v2303
      %v2320 = vpack.c.bf16 %v2306, %v2305
      %v2321 = vpack.c.bf16 %v2308, %v2307
      %v2322 = vpack.c.bf16 %v2310, %v2309
      %v2323 = vpack.c.bf16 %v2312, %v2311
      %v2324 = vpack.c.bf16 %v2314, %v2313
      %v2325 = vpack.c.bf16 %v2316, %v2315
      %v2326 = vpack.c.bf16 %v2318, %v2317
      %v2335 = vunpack.c.l.b16 %v2319
      %v2336 = vunpack.c.h.b16 %v2319
      %v2337 = vunpack.c.l.b16 %v2320
      %v2338 = vunpack.c.h.b16 %v2320
      %v2339 = vunpack.c.l.b16 %v2321
      %v2340 = vunpack.c.h.b16 %v2321
      %v2341 = vunpack.c.l.b16 %v2322
      %v2342 = vunpack.c.h.b16 %v2322
      %v2343 = vunpack.c.l.b16 %v2323
      %v2344 = vunpack.c.h.b16 %v2323
      %v2345 = vunpack.c.l.b16 %v2324
      %v2346 = vunpack.c.h.b16 %v2324
      %v2347 = vunpack.c.l.b16 %v2325
      %v2348 = vunpack.c.h.b16 %v2325
      %v2349 = vunpack.c.l.b16 %v2326
      %v2350 = vunpack.c.h.b16 %v2326
      %v2351 = vpack.c.b16 %v2335, %v2335
      %v2352 = vpack.c.b16 %v2336, %v2336
      %v2353 = vpack.c.b16 %v2337, %v2337
      %v2354 = vpack.c.b16 %v2338, %v2338
      %v2355 = vpack.c.b16 %v2339, %v2339
      %v2356 = vpack.c.b16 %v2340, %v2340
      %v2357 = vpack.c.b16 %v2341, %v2341
      %v2358 = vpack.c.b16 %v2342, %v2342
      %v2359 = vpack.c.b16 %v2343, %v2343
      %v2360 = vpack.c.b16 %v2344, %v2344
      %v2361 = vpack.c.b16 %v2345, %v2345
      %v2362 = vpack.c.b16 %v2346, %v2346
      %v2363 = vpack.c.b16 %v2347, %v2347
      %v2364 = vpack.c.b16 %v2348, %v2348
      %v2365 = vpack.c.b16 %v2349, %v2349
      %v2366 = vpack.c.b16 %v2350, %v2350
      %2383 = vst [vmem:[%s397] sm:$0xf] %v2351
      %2384 = vst [vmem:[%s397 + $0x4] sm:$0xf] %v2352
      %2385 = vst [vmem:[%s397 + $0x8] sm:$0xf] %v2353
      %2386 = vst [vmem:[%s397 + $0xc] sm:$0xf] %v2354
      %2387 = vst [vmem:[%s397 + $0x10] sm:$0xf] %v2355
      %2388 = vst [vmem:[%s397 + $0x14] sm:$0xf] %v2356
      %2389 = vst [vmem:[%s397 + $0x18] sm:$0xf] %v2357
      %2390 = vst [vmem:[%s397 + $0x1c] sm:$0xf] %v2358
      %2391 = vst [vmem:[%s397 + $0x20] sm:$0xf] %v2359
      %2392 = vst [vmem:[%s397 + $0x24] sm:$0xf] %v2360
      %2393 = vst [vmem:[%s397 + $0x28] sm:$0xf] %v2361
      %2394 = vst [vmem:[%s397 + $0x2c] sm:$0xf] %v2362
      %2395 = vst [vmem:[%s397 + $0x30] sm:$0xf] %v2363
      %2396 = vst [vmem:[%s397 + $0x34] sm:$0xf] %v2364
      %2397 = vst [vmem:[%s397 + $0x38] sm:$0xf] %v2365
      %2398 = vst [vmem:[%s397 + $0x3c] sm:$0xf] %v2366
      %p2399 = scmp.eq.s32.totalorder %s22, 0
      // Predicated region
      $region37: #{double_conv.3} parent=35 // pred_check
        %p2400 = pneg %p2399
      $region38: #{double_conv.3} parent=35 // pred_check_branch
        %2402 = sbr.rel (%p2400) target = $region40
      $region39: #{double_conv.3} parent=35 // pred_region
        %2403 = vst [vmem:[#allocation4] sm:$0x3] 0.0
      $region40: #{double_conv.3} parent=35 // pred_fallthru
        _
      %v2404 = vld [vmem:[#allocation4] sm:$0x1]
      %v2405 = vadd.f32 %v2303, %v2304
      %v2406 = vadd.f32 %v2405, %v2305
      %v2407 = vadd.f32 %v2406, %v2306
      %v2408 = vadd.f32 %v2407, %v2307
      %v2409 = vadd.f32 %v2408, %v2308
      %v2410 = vadd.f32 %v2409, %v2309
      %v2411 = vadd.f32 %v2410, %v2310
      %v2412 = vadd.f32 %v2411, %v2311
      %v2413 = vadd.f32 %v2412, %v2312
      %v2414 = vadd.f32 %v2413, %v2313
      %v2415 = vadd.f32 %v2414, %v2314
      %v2416 = vadd.f32 %v2415, %v2315
      %v2417 = vadd.f32 %v2416, %v2316
      %v2418 = vadd.f32 %v2417, %v2317
      %v2419 = vadd.f32 %v2418, %v2318
      %v2420 = vrot.slane %v2419, 4
      %v2421 = vadd.f32 %v2419, %v2420
      %v2422 = vrot.slane %v2421, 2
      %v2423 = vadd.f32 %v2421, %v2422
      %v2424 = vrot.slane %v2423, 1
      %v2425 = vadd.f32 %v2423, %v2424
      %v2426 = vadd.f32 %v2404, %v2425
      %2427 = vst [vmem:[#allocation4] sm:$0x1] %v2426
      %v2428 = vld [vmem:[#allocation4 + $0x1] sm:$0x1]
      %v2429 = vmul.f32 %v2303, %v2303
      %v2430 = vmul.f32 %v2304, %v2304
      %v2431 = vmul.f32 %v2305, %v2305
      %v2432 = vmul.f32 %v2306, %v2306
      %v2433 = vmul.f32 %v2307, %v2307
      %v2434 = vmul.f32 %v2308, %v2308
      %v2435 = vmul.f32 %v2309, %v2309
      %v2436 = vmul.f32 %v2310, %v2310
      %v2437 = vmul.f32 %v2311, %v2311
      %v2438 = vmul.f32 %v2312, %v2312
      %v2439 = vmul.f32 %v2313, %v2313
      %v2440 = vmul.f32 %v2314, %v2314
      %v2441 = vmul.f32 %v2315, %v2315
      %v2442 = vmul.f32 %v2316, %v2316
      %v2443 = vmul.f32 %v2317, %v2317
      %v2444 = vmul.f32 %v2318, %v2318
      %v2445 = vadd.f32 %v2429, %v2430
      %v2446 = vadd.f32 %v2445, %v2431
      %v2447 = vadd.f32 %v2446, %v2432
      %v2448 = vadd.f32 %v2447, %v2433
      %v2449 = vadd.f32 %v2448, %v2434
      %v2450 = vadd.f32 %v2449, %v2435
      %v2451 = vadd.f32 %v2450, %v2436
      %v2452 = vadd.f32 %v2451, %v2437
      %v2453 = vadd.f32 %v2452, %v2438
      %v2454 = vadd.f32 %v2453, %v2439
      %v2455 = vadd.f32 %v2454, %v2440
      %v2456 = vadd.f32 %v2455, %v2441
      %v2457 = vadd.f32 %v2456, %v2442
      %v2458 = vadd.f32 %v2457, %v2443
      %v2459 = vadd.f32 %v2458, %v2444
      %v2460 = vrot.slane %v2459, 4
      %v2461 = vadd.f32 %v2459, %v2460
      %v2462 = vrot.slane %v2461, 2
      %v2463 = vadd.f32 %v2461, %v2462
      %v2464 = vrot.slane %v2463, 1
      %v2465 = vadd.f32 %v2463, %v2464
      %v2466 = vadd.f32 %v2428, %v2465
      %2467 = vst [vmem:[#allocation4 + $0x1] sm:$0x1] %v2466
      %p2468 = scmp.eq.s32.totalorder %s22, 1
      // Predicated region
      $region41: #{double_conv.3} parent=35 // pred_check
        %p2469 = pneg %p2468
      $region42: #{double_conv.3} parent=35 // pred_check_branch
        %2471 = sbr.rel (%p2469) target = $region44
      $region43: #{double_conv.3} parent=35 // pred_region
        %v2472 = vld [vmem:[#allocation4] sm:$0x3]
        %2473 = vst [vmem:[%s402] sm:$0x3] %v2472
      $region44: #{double_conv.3} parent=35 // pred_fallthru
        _
      %s2474 = smul.u32 16, %s22
      %p2475 = scmp.lt.s32.totalorder %s21, 1
      %s2476 = scalar_select %p2475, %s21, 1
      %p2477 = scmp.lt.s32.totalorder %s2474, 31
      %s2478 = scalar_select %p2477, %s2474, 31
      %s2479 = smul.addr %s2476, 32
      %s2480 = sadd.s32 %s2478, %s2479
      %s2481 = smul.addr %s2480, 4
      %s2482 = scalar_lea.vmem %s4, %s2481
      %p2483 = scmp.lt.s32.totalorder %s21, 1
      %s2484 = scalar_select %p2483, %s21, 1
      %s2485 = smul.addr %s2484, 2
      %s2486 = scalar_lea.vmem %s5, %s2485
      // Predicated region
      $region45: #{double_conv.3} parent=35 // pred_check
        %p2487 = pneg %p170
      $region46: #{double_conv.3} parent=35 // pred_check_branch
        %2489 = sbr.rel (%p2487) target = $region48
      $region47: #{double_conv.3} parent=35 // pred_region
        %s2490 = smul.u32 16, %s22
      $region48: #{double_conv.3} parent=35 // pred_fallthru
        _
      // Predicated region
      $region49: #{double_conv.3} parent=35 // pred_check
        %p2491 = pneg %p196
      $region50: #{double_conv.3} parent=35 // pred_check_branch
        %2493 = sbr.rel (%p2491) target = $region52
      $region51: #{double_conv.3} parent=35 // pred_region
        _
      $region52: #{double_conv.3} parent=35 // pred_fallthru
        _
    $region36: #{double_conv.3} parent=5 // pred_fallthru
      _
    %p2494 = scmp.le.s32.totalorder 2, %s12
    // Predicated region
    $region53: #{double_conv.3} parent=5 // pred_check
      %p2495 = pneg %p2494
    $region54: #{double_conv.3} parent=5 // pred_check_branch
      %2497 = sbr.rel (%p2495) target = $region56
    $region55: #{double_conv.3} parent=5 // pred_region
      %s2498 = ssub.s32 %s12, 2
      // Predicated region
      $region57: #{double_conv.3} parent=55 // pred_check
        %p2499 = pneg %p176
      $region58: #{double_conv.3} parent=55 // pred_check_branch
        %2501 = sbr.rel (%p2499) target = $region60
      $region59: #{double_conv.3} parent=55 // pred_region
        %s2502 = smul.u32 16, %s24
        %p2503 = scmp.lt.s32.totalorder %s23, 1
        %s2504 = scalar_select %p2503, %s23, 1
        %p2505 = scmp.lt.s32.totalorder %s2502, 31
        %s2506 = scalar_select %p2505, %s2502, 31
        %s2507 = smul.addr %s2504, 32
        %s2508 = sadd.s32 %s2506, %s2507
        %s2509 = smul.addr %s2508, 4
        %s2510 = scalar_lea.vmem %s4, %s2509
      $region60: #{double_conv.3} parent=55 // pred_fallthru
        _
      // Predicated region
      $region61: #{double_conv.3} parent=55 // pred_check
        %p2511 = pneg %p202
      $region62: #{double_conv.3} parent=55 // pred_check_branch
        %2513 = sbr.rel (%p2511) target = $region64
      $region63: #{double_conv.3} parent=55 // pred_region
        %p2514 = scmp.lt.s32.totalorder %s23, 1
        %s2515 = scalar_select %p2514, %s23, 1
        %s2516 = smul.addr %s2515, 2
        %s2517 = scalar_lea.vmem %s5, %s2516
      $region64: #{double_conv.3} parent=55 // pred_fallthru
        _
    $region56: #{double_conv.3} parent=5 // pred_fallthru
      _
  $region6: #{double_conv.3} parent=0 // loop_footer
    %s16 = sadd.s32 1, %s12
  $region7: #{double_conv.3} parent=0 // loop_footer_branch
    %11 = sbr.rel target = $region3
  $region8: #{double_conv.3} parent=0 // loop_exit
    _

// kernel: double_conv.4
$region0: #{double_conv.4}
  #allocation0 [shape = 'u32[]', space=smem, size = 0x4, offset = 0x4, fixed_abs, tag = 'smem constant byte address 0x4 - core index']
  #allocation1 [shape = 'u32[144,128]{1,0:T(1,128)}', space=vmem, size = 0x12000, scoped, tag = 'internal scratch']
  #allocation2 [shape = 'bf16[192,8]{1,0:T(16,128)(2,1)}', space=vmem, size = 0xc000, scoped, tag = 'scratch operand']
  #allocation3 [shape = 'bf16[128,24]{1,0:T(16,128)(2,1)}', space=vmem, size = 0x8000, scoped, tag = 'scratch operand']
  #allocation4 [shape = 'f32[2,128]{1,0:T(2,128)}', space=vmem, size = 0x400, scoped, tag = 'scratch operand']
  %s0 = inlined_call_operand.vmem [shape: bf16[2,256,128], index: 0, kind: input, shape index: {}, may-alias: {0,1,2}]
  %s1 = inlined_call_operand.vmem [shape: bf16[2,256,128], index: 1, kind: input, shape index: {}, may-alias: {0,1,2}]
  %s2 = inlined_call_operand.vmem [shape: bf16[2,256,128], index: 2, kind: input, shape index: {}, may-alias: {0,1,2}]
  %s3 = inlined_call_operand.vmem [shape: f32[1,8], index: 3, kind: input, shape index: {}]
  %s4 = inlined_call_operand.vmem [shape: f32[1,8], index: 4, kind: input, shape index: {}]
  %s5 = inlined_call_operand.vmem [shape: bf16[3,24,128], index: 5, kind: input, shape index: {}]
  %s6 = inlined_call_operand.vmem [shape: bf16[2,256,128], index: 6, kind: output, shape index: {0}]
  %s7 = inlined_call_operand.vmem [shape: f32[2,2,128], index: 7, kind: output, shape index: {1}]
  %8 = xla_tuple %s6, %s7
  %s9 = sld [smem:[#allocation0]]
  $region73: #{double_conv.4} parent=0
    _
  %s11 = ssub.s32 1, %s9
  %s12 = scalar_select 0, %s11, %s9
  loop: start=0, step=1, limit=6
  $region2: #{double_conv.4} parent=0 // loop_pre_header
    _
  $region3: #{double_conv.4} parent=0 // loop_header
    %s14 = sphi 0, %s18
    %p15 = scmp.ge.s32.totalorder %s14, 6
    %s21 = sphi 0, %s33
    %s22 = sphi 0, %s29
    %s23 = sphi 0, %s21
    %s24 = sphi 0, %s22
    %s25 = sphi 0, %s23
    %s26 = sphi 0, %s24
    %s38 = sphi 0, %s40
    %s41 = sphi 0, %s38
    %s42 = sphi 0, %s41
    %s58 = sphi 0, %s42
    %s74 = sphi 0, %s76
    %s77 = sphi 0, %s74
    %s78 = sphi 0, %s77
    %s94 = sphi 0, %s78
    %s110 = sphi 0, %s112
    %s113 = sphi 0, %s110
    %s114 = sphi 0, %s113
    %s130 = sphi 0, %s114
    %s134 = sphi 0, %s134
    %s136 = sphi 0, %s134
    %s137 = sphi 0, %s136
    %s151 = sphi 0, %s137
    %s155 = sphi 0, %s155
    %s157 = sphi 0, %s155
    %s158 = sphi 0, %s157
    %s172 = sphi 0, %s158
    %s176 = sphi 0, %s176
    %s178 = sphi 0, %s176
    %s179 = sphi 0, %s178
    %s193 = sphi 0, %s179
    %s201 = sphi 0, %s203
    %s204 = sphi 0, %s201
    %s205 = sphi 0, %s204
    %s221 = sphi 0, %s205
    %s227 = sphi 0, %s229
    %s230 = sphi 0, %s227
    %s231 = sphi 0, %s230
    %s247 = sphi 0, %s231
  $region4: #{double_conv.4} parent=0 // loop_header_branch
    %17 = sbr.rel (%p15) target = $region8
  $region5: #{double_conv.4} parent=0 // loop_body
    %s19 = ssub.s32 %s14, 1
    %s20 = ssub.s32 %s14, 2
    %s27 = sadd.s32 1, %s22
    %p28 = scmp.ge.s32.totalorder %s27, 2
    %s29 = scalar_select %p28, 0, %s27
    %s30 = sadd.s32 1, %s21
    %s31 = scalar_select %p28, %s30, %s21
    %p32 = scmp.ge.s32.totalorder %s31, 2
    %s33 = scalar_select %p32, 0, %s31
    %s34 = ssub.s32 %s21, %s33
    %s35 = ssub.s32 %s22, %s29
    %s36 = sor.u32 %s34, %s35
    %p37 = scmp.eq.s32.totalorder %s36, 0
    %s39 = sadd.s32 %s38, 1
    %s40 = scalar_select %p37, %s38, %s39
    %p43 = pneg %p37
    %p44 = scmp.eq.s32.totalorder %s14, 3
    %p45 = por %p43, %p44
    %p46 = scmp.ne.s32.totalorder %s38, %s41
    %p47 = scmp.eq.s32.totalorder %s14, 0
    %p48 = por %p46, %p47
    %p49 = scmp.ne.s32.totalorder %s38, %s41
    %p50 = scmp.eq.s32.totalorder %s19, 3
    %p51 = por %p49, %p50
    %p52 = scmp.ne.s32.totalorder %s41, %s42
    %p53 = scmp.eq.s32.totalorder %s19, 0
    %p54 = por %p52, %p53
    %p55 = scmp.ne.s32.totalorder %s41, %s42
    %p56 = scmp.eq.s32.totalorder %s20, 3
    %p57 = por %p55, %p56
    %p59 = scmp.ne.s32.totalorder %s42, %s58
    %p60 = scmp.eq.s32.totalorder %s20, 0
    %p61 = por %p59, %p60
    %s62 = smul.u32 %s22, 8
    %s63 = ssub.s32 %s62, 1
    %p64 = scmp.gt.s32.totalorder %s63, 0
    %s65 = scalar_select %p64, %s63, 0
    %s66 = smul.u32 %s29, 8
    %s67 = ssub.s32 %s66, 1
    %p68 = scmp.gt.s32.totalorder %s67, 0
    %s69 = scalar_select %p68, %s67, 0
    %s70 = ssub.s32 %s21, %s33
    %s71 = ssub.s32 %s65, %s69
    %s72 = sor.u32 %s70, %s71
    %p73 = scmp.eq.s32.totalorder %s72, 0
    %s75 = sadd.s32 %s74, 1
    %s76 = scalar_select %p73, %s74, %s75
    %p79 = pneg %p73
    %p80 = scmp.eq.s32.totalorder %s14, 3
    %p81 = por %p79, %p80
    %p82 = scmp.ne.s32.totalorder %s74, %s77
    %p83 = scmp.eq.s32.totalorder %s14, 0
    %p84 = por %p82, %p83
    %p85 = scmp.ne.s32.totalorder %s74, %s77
    %p86 = scmp.eq.s32.totalorder %s19, 3
    %p87 = por %p85, %p86
    %p88 = scmp.ne.s32.totalorder %s77, %s78
    %p89 = scmp.eq.s32.totalorder %s19, 0
    %p90 = por %p88, %p89
    %p91 = scmp.ne.s32.totalorder %s77, %s78
    %p92 = scmp.eq.s32.totalorder %s20, 3
    %p93 = por %p91, %p92
    %p95 = scmp.ne.s32.totalorder %s78, %s94
    %p96 = scmp.eq.s32.totalorder %s20, 0
    %p97 = por %p95, %p96
    %s98 = sadd.s32 %s22, 1
    %s99 = smul.u32 %s98, 8
    %p100 = scmp.lt.s32.totalorder %s99, 15
    %s101 = scalar_select %p100, %s99, 15
    %s102 = sadd.s32 %s29, 1
    %s103 = smul.u32 %s102, 8
    %p104 = scmp.lt.s32.totalorder %s103, 15
    %s105 = scalar_select %p104, %s103, 15
    %s106 = ssub.s32 %s21, %s33
    %s107 = ssub.s32 %s101, %s105
    %s108 = sor.u32 %s106, %s107
    %p109 = scmp.eq.s32.totalorder %s108, 0
    %s111 = sadd.s32 %s110, 1
    %s112 = scalar_select %p109, %s110, %s111
    %p115 = pneg %p109
    %p116 = scmp.eq.s32.totalorder %s14, 3
    %p117 = por %p115, %p116
    %p118 = scmp.ne.s32.totalorder %s110, %s113
    %p119 = scmp.eq.s32.totalorder %s14, 0
    %p120 = por %p118, %p119
    %p121 = scmp.ne.s32.totalorder %s110, %s113
    %p122 = scmp.eq.s32.totalorder %s19, 3
    %p123 = por %p121, %p122
    %p124 = scmp.ne.s32.totalorder %s113, %s114
    %p125 = scmp.eq.s32.totalorder %s19, 0
    %p126 = por %p124, %p125
    %p127 = scmp.ne.s32.totalorder %s113, %s114
    %p128 = scmp.eq.s32.totalorder %s20, 3
    %p129 = por %p127, %p128
    %p131 = scmp.ne.s32.totalorder %s114, %s130
    %p132 = scmp.eq.s32.totalorder %s20, 0
    %p133 = por %p131, %p132
    %s135 = sadd.s32 %s134, 1
    %p138 = scmp.eq.s32.totalorder %s14, 3
    %p139 = scmp.ne.s32.totalorder %s134, %s136
    %p140 = scmp.eq.s32.totalorder %s14, 0
    %p141 = por %p139, %p140
    %p142 = scmp.ne.s32.totalorder %s134, %s136
    %p143 = scmp.eq.s32.totalorder %s19, 3
    %p144 = por %p142, %p143
    %p145 = scmp.ne.s32.totalorder %s136, %s137
    %p146 = scmp.eq.s32.totalorder %s19, 0
    %p147 = por %p145, %p146
    %p148 = scmp.ne.s32.totalorder %s136, %s137
    %p149 = scmp.eq.s32.totalorder %s20, 3
    %p150 = por %p148, %p149
    %p152 = scmp.ne.s32.totalorder %s137, %s151
    %p153 = scmp.eq.s32.totalorder %s20, 0
    %p154 = por %p152, %p153
    %s156 = sadd.s32 %s155, 1
    %p159 = scmp.eq.s32.totalorder %s14, 3
    %p160 = scmp.ne.s32.totalorder %s155, %s157
    %p161 = scmp.eq.s32.totalorder %s14, 0
    %p162 = por %p160, %p161
    %p163 = scmp.ne.s32.totalorder %s155, %s157
    %p164 = scmp.eq.s32.totalorder %s19, 3
    %p165 = por %p163, %p164
    %p166 = scmp.ne.s32.totalorder %s157, %s158
    %p167 = scmp.eq.s32.totalorder %s19, 0
    %p168 = por %p166, %p167
    %p169 = scmp.ne.s32.totalorder %s157, %s158
    %p170 = scmp.eq.s32.totalorder %s20, 3
    %p171 = por %p169, %p170
    %p173 = scmp.ne.s32.totalorder %s158, %s172
    %p174 = scmp.eq.s32.totalorder %s20, 0
    %p175 = por %p173, %p174
    %s177 = sadd.s32 %s176, 1
    %p180 = scmp.eq.s32.totalorder %s14, 3
    %p181 = scmp.ne.s32.totalorder %s176, %s178
    %p182 = scmp.eq.s32.totalorder %s14, 0
    %p183 = por %p181, %p182
    %p184 = scmp.ne.s32.totalorder %s176, %s178
    %p185 = scmp.eq.s32.totalorder %s19, 3
    %p186 = por %p184, %p185
    %p187 = scmp.ne.s32.totalorder %s178, %s179
    %p188 = scmp.eq.s32.totalorder %s19, 0
    %p189 = por %p187, %p188
    %p190 = scmp.ne.s32.totalorder %s178, %s179
    %p191 = scmp.eq.s32.totalorder %s20, 3
    %p192 = por %p190, %p191
    %p194 = scmp.ne.s32.totalorder %s179, %s193
    %p195 = scmp.eq.s32.totalorder %s20, 0
    %p196 = por %p194, %p195
    %s197 = ssub.s32 %s21, %s33
    %s198 = ssub.s32 %s22, %s29
    %s199 = sor.u32 %s197, %s198
    %p200 = scmp.eq.s32.totalorder %s199, 0
    %s202 = sadd.s32 %s201, 1
    %s203 = scalar_select %p200, %s201, %s202
    %p206 = pneg %p200
    %p207 = scmp.eq.s32.totalorder %s14, 3
    %p208 = por %p206, %p207
    %p209 = scmp.ne.s32.totalorder %s201, %s204
    %p210 = scmp.eq.s32.totalorder %s14, 0
    %p211 = por %p209, %p210
    %p212 = scmp.ne.s32.totalorder %s201, %s204
    %p213 = scmp.eq.s32.totalorder %s19, 3
    %p214 = por %p212, %p213
    %p215 = scmp.ne.s32.totalorder %s204, %s205
    %p216 = scmp.eq.s32.totalorder %s19, 0
    %p217 = por %p215, %p216
    %p218 = scmp.ne.s32.totalorder %s204, %s205
    %p219 = scmp.eq.s32.totalorder %s20, 3
    %p220 = por %p218, %p219
    %p222 = scmp.ne.s32.totalorder %s205, %s221
    %p223 = scmp.eq.s32.totalorder %s20, 0
    %p224 = por %p222, %p223
    %s225 = ssub.s32 %s21, %s33
    %p226 = scmp.eq.s32.totalorder %s225, 0
    %s228 = sadd.s32 %s227, 1
    %s229 = scalar_select %p226, %s227, %s228
    %p232 = pneg %p226
    %p233 = scmp.eq.s32.totalorder %s14, 3
    %p234 = por %p232, %p233
    %p235 = scmp.ne.s32.totalorder %s227, %s230
    %p236 = scmp.eq.s32.totalorder %s14, 0
    %p237 = por %p235, %p236
    %p238 = scmp.ne.s32.totalorder %s227, %s230
    %p239 = scmp.eq.s32.totalorder %s19, 3
    %p240 = por %p238, %p239
    %p241 = scmp.ne.s32.totalorder %s230, %s231
    %p242 = scmp.eq.s32.totalorder %s19, 0
    %p243 = por %p241, %p242
    %p244 = scmp.ne.s32.totalorder %s230, %s231
    %p245 = scmp.eq.s32.totalorder %s20, 3
    %p246 = por %p244, %p245
    %p248 = scmp.ne.s32.totalorder %s231, %s247
    %p249 = scmp.eq.s32.totalorder %s20, 0
    %p250 = por %p248, %p249
    %p251 = scmp.le.s32.totalorder 1, %s14
    %p252 = scmp.lt.s32.totalorder %s14, 5
    %p253 = pnand %p251, %p252
    %p254 = pneg %p253
    // Predicated region
    $region9: #{double_conv.4} parent=5 // pred_check
      _
    $region10: #{double_conv.4} parent=5 // pred_check_branch
      %256 = sbr.rel (%p253) target = $region12
    $region11: #{double_conv.4} parent=5 // pred_region
      %s257 = ssub.s32 %s14, 1
      // Predicated region
      $region13: #{double_conv.4} parent=11 // pred_check
        %p258 = pneg %p147
      $region14: #{double_conv.4} parent=11 // pred_check_branch
        %260 = sbr.rel (%p258) target = $region16
      $region15: #{double_conv.4} parent=11 // pred_region
        _
      $region16: #{double_conv.4} parent=11 // pred_fallthru
        _
      // Predicated region
      $region17: #{double_conv.4} parent=11 // pred_check
        %p261 = pneg %p168
      $region18: #{double_conv.4} parent=11 // pred_check_branch
        %263 = sbr.rel (%p261) target = $region20
      $region19: #{double_conv.4} parent=11 // pred_region
        _
      $region20: #{double_conv.4} parent=11 // pred_fallthru
        _
      // Predicated region
      $region21: #{double_conv.4} parent=11 // pred_check
        %p264 = pneg %p189
      $region22: #{double_conv.4} parent=11 // pred_check_branch
        %266 = sbr.rel (%p264) target = $region24
      $region23: #{double_conv.4} parent=11 // pred_region
        _
      $region24: #{double_conv.4} parent=11 // pred_fallthru
        _
    $region12: #{double_conv.4} parent=5 // pred_fallthru
      _
    %p267 = scmp.lt.s32.totalorder %s14, 4
    // Predicated region
    $region25: #{double_conv.4} parent=5 // pred_check
      %p268 = pneg %p267
    $region26: #{double_conv.4} parent=5 // pred_check_branch
      %270 = sbr.rel (%p268) target = $region28
    $region27: #{double_conv.4} parent=5 // pred_region
      // Predicated region
      $region29: #{double_conv.4} parent=27 // pred_check
        %p271 = pneg %p48
      $region30: #{double_conv.4} parent=27 // pred_check_branch
        %273 = sbr.rel (%p271) target = $region32
      $region31: #{double_conv.4} parent=27 // pred_region
        %s274 = smul.u32 16, %s22
        %p275 = scmp.lt.s32.totalorder %s21, 1
        %s276 = scalar_select %p275, %s21, 1
        %p277 = scmp.lt.s32.totalorder %s274, 31
        %s278 = scalar_select %p277, %s274, 31
        %s279 = smul.addr %s276, 32
        %s280 = sadd.s32 %s278, %s279
        %s281 = smul.addr %s280, 4
        %s282 = scalar_lea.vmem %s0, %s281
        %s283 = smul.u32 16, %s22
      $region32: #{double_conv.4} parent=27 // pred_fallthru
        _
      // Predicated region
      $region33: #{double_conv.4} parent=27 // pred_check
        %p284 = pneg %p84
      $region34: #{double_conv.4} parent=27 // pred_check_branch
        %286 = sbr.rel (%p284) target = $region36
      $region35: #{double_conv.4} parent=27 // pred_region
        %s287 = smul.u32 %s22, 8
        %s288 = ssub.s32 %s287, 1
        %p289 = scmp.gt.s32.totalorder %s288, 0
        %s290 = scalar_select %p289, %s288, 0
        %s291 = smul.u32 2, %s290
        %p292 = scmp.lt.s32.totalorder %s21, 1
        %s293 = scalar_select %p292, %s21, 1
        %p294 = scmp.lt.s32.totalorder %s291, 31
        %s295 = scalar_select %p294, %s291, 31
        %s296 = smul.addr %s293, 32
        %s297 = sadd.s32 %s295, %s296
        %s298 = smul.addr %s297, 4
        %s299 = scalar_lea.vmem %s1, %s298
        %s300 = smul.u32 %s22, 8
        %s301 = ssub.s32 %s300, 1
        %p302 = scmp.gt.s32.totalorder %s301, 0
        %s303 = scalar_select %p302, %s301, 0
        %s304 = smul.u32 2, %s303
      $region36: #{double_conv.4} parent=27 // pred_fallthru
        _
      // Predicated region
      $region37: #{double_conv.4} parent=27 // pred_check
        %p305 = pneg %p120
      $region38: #{double_conv.4} parent=27 // pred_check_branch
        %307 = sbr.rel (%p305) target = $region40
      $region39: #{double_conv.4} parent=27 // pred_region
        %s308 = sadd.s32 %s22, 1
        %s309 = smul.u32 %s308, 8
        %p310 = scmp.lt.s32.totalorder %s309, 15
        %s311 = scalar_select %p310, %s309, 15
        %s312 = smul.u32 2, %s311
        %p313 = scmp.lt.s32.totalorder %s21, 1
        %s314 = scalar_select %p313, %s21, 1
        %p315 = scmp.lt.s32.totalorder %s312, 31
        %s316 = scalar_select %p315, %s312, 31
        %s317 = smul.addr %s314, 32
        %s318 = sadd.s32 %s316, %s317
        %s319 = smul.addr %s318, 4
        %s320 = scalar_lea.vmem %s2, %s319
        %s321 = sadd.s32 %s22, 1
        %s322 = smul.u32 %s321, 8
        %p323 = scmp.lt.s32.totalorder %s322, 15
        %s324 = scalar_select %p323, %s322, 15
        %s325 = smul.u32 2, %s324
      $region40: #{double_conv.4} parent=27 // pred_fallthru
        _
    $region28: #{double_conv.4} parent=5 // pred_fallthru
      _
    %p326 = scmp.le.s32.totalorder 1, %s14
    %p327 = scmp.lt.s32.totalorder %s14, 5
    %p328 = pnand %p326, %p327
    %p329 = pneg %p328
    // Predicated region
    $region41: #{double_conv.4} parent=5 // pred_check
      _
    $region42: #{double_conv.4} parent=5 // pred_check_branch
      %331 = sbr.rel (%p328) target = $region44
    $region43: #{double_conv.4} parent=5 // pred_region
      %s332 = ssub.s32 %s14, 1
      %s333 = smul.u32 16, %s24
      %p334 = scmp.lt.s32.totalorder %s23, 1
      %s335 = scalar_select %p334, %s23, 1
      %p336 = scmp.lt.s32.totalorder %s333, 31
      %s337 = scalar_select %p336, %s333, 31
      %s338 = smul.addr %s335, 32
      %s339 = sadd.s32 %s337, %s338
      %s340 = smul.addr %s339, 4
      %s341 = scalar_lea.vmem %s0, %s340
      %p342 = pneg %p54
      %p343 = pneg %p51
      %s344 = smul.u32 %s24, 8
      %s345 = ssub.s32 %s344, 1
      %p346 = scmp.gt.s32.totalorder %s345, 0
      %s347 = scalar_select %p346, %s345, 0
      %s348 = smul.u32 2, %s347
      %p349 = scmp.lt.s32.totalorder %s23, 1
      %s350 = scalar_select %p349, %s23, 1
      %p351 = scmp.lt.s32.totalorder %s348, 31
      %s352 = scalar_select %p351, %s348, 31
      %s353 = smul.addr %s350, 32
      %s354 = sadd.s32 %s352, %s353
      %s355 = smul.addr %s354, 4
      %s356 = scalar_lea.vmem %s1, %s355
      %p357 = pneg %p90
      %p358 = pneg %p87
      %s359 = sadd.s32 %s24, 1
      %s360 = smul.u32 %s359, 8
      %p361 = scmp.lt.s32.totalorder %s360, 15
      %s362 = scalar_select %p361, %s360, 15
      %s363 = smul.u32 2, %s362
      %p364 = scmp.lt.s32.totalorder %s23, 1
      %s365 = scalar_select %p364, %s23, 1
      %p366 = scmp.lt.s32.totalorder %s363, 31
      %s367 = scalar_select %p366, %s363, 31
      %s368 = smul.addr %s365, 32
      %s369 = sadd.s32 %s367, %s368
      %s370 = smul.addr %s369, 4
      %s371 = scalar_lea.vmem %s2, %s370
      %p372 = pneg %p126
      %p373 = pneg %p123
      %p374 = pneg %p147
      %p375 = pneg %p144
      %p376 = pneg %p168
      %p377 = pneg %p165
      %p378 = pneg %p189
      %p379 = pneg %p186
      %p380 = pneg %p217
      %p381 = pneg %p214
      %s382 = smul.u32 16, %s24
      %p383 = scmp.lt.s32.totalorder %s23, 1
      %s384 = scalar_select %p383, %s23, 1
      %p385 = scmp.lt.s32.totalorder %s382, 31
      %s386 = scalar_select %p385, %s382, 31
      %s387 = smul.addr %s384, 32
      %s388 = sadd.s32 %s386, %s387
      %s389 = smul.addr %s388, 4
      %s390 = scalar_lea.vmem %s6, %s389
      %p391 = pneg %p243
      %p392 = pneg %p240
      %p393 = scmp.lt.s32.totalorder %s23, 1
      %s394 = scalar_select %p393, %s23, 1
      %s395 = smul.addr %s394, 2
      %s396 = scalar_lea.vmem %s7, %s395
      %s397 = smul.u32 16, %s24
      %p398 = scmp.lt.s32.totalorder %s23, 1
      %s399 = scalar_select %p398, %s23, 1
      %p400 = scmp.lt.s32.totalorder %s397, 31
      %s401 = scalar_select %p400, %s397, 31
      %s402 = smul.addr %s399, 32
      %s403 = sadd.s32 %s401, %s402
      %s404 = smul.addr %s403, 4
      %s405 = scalar_lea.vmem %s0, %s404
      %s406 = smul.u32 16, %s24
      %s407 = smul.u32 %s24, 8
      %s408 = ssub.s32 %s407, 1
      %p409 = scmp.gt.s32.totalorder %s408, 0
      %s410 = scalar_select %p409, %s408, 0
      %s411 = smul.u32 2, %s410
      %p412 = scmp.lt.s32.totalorder %s23, 1
      %s413 = scalar_select %p412, %s23, 1
      %p414 = scmp.lt.s32.totalorder %s411, 31
      %s415 = scalar_select %p414, %s411, 31
      %s416 = smul.addr %s413, 32
      %s417 = sadd.s32 %s415, %s416
      %s418 = smul.addr %s417, 4
      %s419 = scalar_lea.vmem %s1, %s418
      %s420 = smul.u32 %s24, 8
      %s421 = ssub.s32 %s420, 1
      %p422 = scmp.gt.s32.totalorder %s421, 0
      %s423 = scalar_select %p422, %s421, 0
      %s424 = smul.u32 2, %s423
      %s425 = sadd.s32 %s24, 1
      %s426 = smul.u32 %s425, 8
      %p427 = scmp.lt.s32.totalorder %s426, 15
      %s428 = scalar_select %p427, %s426, 15
      %s429 = smul.u32 2, %s428
      %p430 = scmp.lt.s32.totalorder %s23, 1
      %s431 = scalar_select %p430, %s23, 1
      %p432 = scmp.lt.s32.totalorder %s429, 31
      %s433 = scalar_select %p432, %s429, 31
      %s434 = smul.addr %s431, 32
      %s435 = sadd.s32 %s433, %s434
      %s436 = smul.addr %s435, 4
      %s437 = scalar_lea.vmem %s2, %s436
      %s438 = sadd.s32 %s24, 1
      %s439 = smul.u32 %s438, 8
      %p440 = scmp.lt.s32.totalorder %s439, 15
      %s441 = scalar_select %p440, %s439, 15
      %s442 = smul.u32 2, %s441
      %s443 = smul.u32 16, %s24
      %p444 = scmp.lt.s32.totalorder %s23, 1
      %s445 = scalar_select %p444, %s23, 1
      %p446 = scmp.lt.s32.totalorder %s443, 31
      %s447 = scalar_select %p446, %s443, 31
      %s448 = smul.addr %s445, 32
      %s449 = sadd.s32 %s447, %s448
      %s450 = smul.addr %s449, 4
      %s451 = scalar_lea.vmem %s6, %s450
      %s452 = smul.u32 16, %s24
      %p453 = scmp.lt.s32.totalorder %s23, 1
      %s454 = scalar_select %p453, %s23, 1
      %s455 = smul.addr %s454, 2
      %s456 = scalar_lea.vmem %s7, %s455
      %v460 = vld [vmem:[%s3] sm:$0x1]
      %v461 = vld [vmem:[%s4] sm:$0x1]
      %v462 = vld [vmem:[%s405] sm:$0xf]
      %v463 = vld [vmem:[%s405 + $0x4] sm:$0xf]
      %v464 = vld [vmem:[%s405 + $0x8] sm:$0xf]
      %v465 = vld [vmem:[%s405 + $0xc] sm:$0xf]
      %v466 = vld [vmem:[%s405 + $0x10] sm:$0xf]
      %v467 = vld [vmem:[%s405 + $0x14] sm:$0xf]
      %v468 = vld [vmem:[%s405 + $0x18] sm:$0xf]
      %v469 = vld [vmem:[%s405 + $0x1c] sm:$0xf]
      %v470 = vld [vmem:[%s405 + $0x20] sm:$0xf]
      %v471 = vld [vmem:[%s405 + $0x24] sm:$0xf]
      %v472 = vld [vmem:[%s405 + $0x28] sm:$0xf]
      %v473 = vld [vmem:[%s405 + $0x2c] sm:$0xf]
      %v474 = vld [vmem:[%s405 + $0x30] sm:$0xf]
      %v475 = vld [vmem:[%s405 + $0x34] sm:$0xf]
      %v476 = vld [vmem:[%s405 + $0x38] sm:$0xf]
      %v477 = vld [vmem:[%s405 + $0x3c] sm:$0xf]
      %v478 = vunpack.c.l.bf16 %v462
      %v479 = vunpack.c.l.bf16 %v463
      %v480 = vunpack.c.l.bf16 %v464
      %v481 = vunpack.c.l.bf16 %v465
      %v482 = vunpack.c.l.bf16 %v466
      %v483 = vunpack.c.l.bf16 %v467
      %v484 = vunpack.c.l.bf16 %v468
      %v485 = vunpack.c.l.bf16 %v469
      %v486 = vunpack.c.l.bf16 %v470
      %v487 = vunpack.c.l.bf16 %v471
      %v488 = vunpack.c.l.bf16 %v472
      %v489 = vunpack.c.l.bf16 %v473
      %v490 = vunpack.c.l.bf16 %v474
      %v491 = vunpack.c.l.bf16 %v475
      %v492 = vunpack.c.l.bf16 %v476
      %v493 = vunpack.c.l.bf16 %v477
      %v495 = vlaneseq
      %v496 = vshrl.u32 %v495, 7
      %v497 = vsub.s32 0, %v496
      %v498 = vrot.slane %v460, %v497
      %v500 = vmul.f32 %v478, %v498
      %v501 = vmul.f32 %v479, %v498
      %v502 = vmul.f32 %v480, %v498
      %v503 = vmul.f32 %v481, %v498
      %v504 = vmul.f32 %v482, %v498
      %v505 = vmul.f32 %v483, %v498
      %v506 = vmul.f32 %v484, %v498
      %v507 = vmul.f32 %v485, %v498
      %v508 = vmul.f32 %v486, %v498
      %v509 = vmul.f32 %v487, %v498
      %v510 = vmul.f32 %v488, %v498
      %v511 = vmul.f32 %v489, %v498
      %v512 = vmul.f32 %v490, %v498
      %v513 = vmul.f32 %v491, %v498
      %v514 = vmul.f32 %v492, %v498
      %v515 = vmul.f32 %v493, %v498
      %v517 = vlaneseq
      %v518 = vshrl.u32 %v517, 7
      %v519 = vsub.s32 0, %v518
      %v520 = vrot.slane %v461, %v519
      %v522 = vadd.f32 %v500, %v520
      %v523 = vadd.f32 %v501, %v520
      %v524 = vadd.f32 %v502, %v520
      %v525 = vadd.f32 %v503, %v520
      %v526 = vadd.f32 %v504, %v520
      %v527 = vadd.f32 %v505, %v520
      %v528 = vadd.f32 %v506, %v520
      %v529 = vadd.f32 %v507, %v520
      %v530 = vadd.f32 %v508, %v520
      %v531 = vadd.f32 %v509, %v520
      %v532 = vadd.f32 %v510, %v520
      %v533 = vadd.f32 %v511, %v520
      %v534 = vadd.f32 %v512, %v520
      %v535 = vadd.f32 %v513, %v520
      %v536 = vadd.f32 %v514, %v520
      %v537 = vadd.f32 %v515, %v520
      %v538 = vmax.f32 %v522, 0.0
      %v539 = vmax.f32 %v523, 0.0
      %v540 = vmax.f32 %v524, 0.0
      %v541 = vmax.f32 %v525, 0.0
      %v542 = vmax.f32 %v526, 0.0
      %v543 = vmax.f32 %v527, 0.0
      %v544 = vmax.f32 %v528, 0.0
      %v545 = vmax.f32 %v529, 0.0
      %v546 = vmax.f32 %v530, 0.0
      %v547 = vmax.f32 %v531, 0.0
      %v548 = vmax.f32 %v532, 0.0
      %v549 = vmax.f32 %v533, 0.0
      %v550 = vmax.f32 %v534, 0.0
      %v551 = vmax.f32 %v535, 0.0
      %v552 = vmax.f32 %v536, 0.0
      %v553 = vmax.f32 %v537, 0.0
      %v554 = vpack.c.bf16 %v539, %v538
      %v555 = vpack.c.bf16 %v541, %v540
      %v556 = vpack.c.bf16 %v543, %v542
      %v557 = vpack.c.bf16 %v545, %v544
      %v558 = vpack.c.bf16 %v547, %v546
      %v559 = vpack.c.bf16 %v549, %v548
      %v560 = vpack.c.bf16 %v551, %v550
      %v561 = vpack.c.bf16 %v553, %v552
      %v562 = vld [vmem:[%s419] sm:$0xf]
      %v563 = vld [vmem:[%s419 + $0x4] sm:$0xf]
      %v564 = vunpack.c.l.bf16 %v562
      %v565 = vunpack.c.l.bf16 %v563
      %v566 = vmul.f32 %v564, %v498
      %v567 = vmul.f32 %v565, %v498
      %v568 = vadd.f32 %v566, %v520
      %v569 = vadd.f32 %v567, %v520
      %v570 = vmax.f32 %v568, 0.0
      %v571 = vmax.f32 %v569, 0.0
      %v572 = vpack.c.bf16 %v571, %v570
      %v573 = vld [vmem:[%s437] sm:$0xf]
      %v574 = vld [vmem:[%s437 + $0x4] sm:$0xf]
      %v575 = vunpack.c.l.bf16 %v573
      %v576 = vunpack.c.l.bf16 %v574
      %v577 = vmul.f32 %v575, %v498
      %v578 = vmul.f32 %v576, %v498
      %v579 = vadd.f32 %v577, %v520
      %v580 = vadd.f32 %v578, %v520
      %v581 = vmax.f32 %v579, 0.0
      %v582 = vmax.f32 %v580, 0.0
      %v583 = vpack.c.bf16 %v582, %v581
      %vm584 = vcmask 64512
      %585 = vst.msk [vmem:[#allocation2] sm:$0xff] %vm584, 0
      %586 = vst.msk [vmem:[#allocation2 + $0x8] sm:$0xff] %vm584, 0
      %587 = vst.msk [vmem:[#allocation2 + $0x50] sm:$0xff] %vm584, 0
      %588 = vst.msk [vmem:[#allocation2 + $0x58] sm:$0xff] %vm584, 0
      %p589 = scmp.gt.s32.totalorder %s24, 0
      %s590 = scalar_select %p589, 1, 0
      %v591 = vstv %s590
      %vm592 = vcmp.eq.s32.totalorder %v591, 1
      %v593 = vsel %vm592, %v572, 0
      %594 = vst.msk [vmem:[#allocation2 + $0x8] sm:$0xff] %vm584, %v593
      %p595 = scmp.lt.s32.totalorder %s24, 1
      %s596 = scalar_select %p595, 1, 0
      %v597 = vstv %s596
      %vm598 = vcmp.eq.s32.totalorder %v597, 1
      %v599 = vsel %vm598, %v583, 0
      %600 = vst.msk [vmem:[#allocation2 + $0x50] sm:$0xff] %vm584, %v599
      %601 = vst.msk [vmem:[#allocation2 + $0x10] sm:$0xff] %vm584, %v554
      %602 = vst.msk [vmem:[#allocation2 + $0x18] sm:$0xff] %vm584, %v555
      %603 = vst.msk [vmem:[#allocation2 + $0x20] sm:$0xff] %vm584, %v556
      %604 = vst.msk [vmem:[#allocation2 + $0x28] sm:$0xff] %vm584, %v557
      %605 = vst.msk [vmem:[#allocation2 + $0x30] sm:$0xff] %vm584, %v558
      %606 = vst.msk [vmem:[#allocation2 + $0x38] sm:$0xff] %vm584, %v559
      %607 = vst.msk [vmem:[#allocation2 + $0x40] sm:$0xff] %vm584, %v560
      %608 = vst.msk [vmem:[#allocation2 + $0x48] sm:$0xff] %vm584, %v561
      %v609 = vlaneseq
      %v610 = vshrl.u32 %v609, 7
      %v611 = vadd.s32 %v610, 8
      %v612 = vadd.s32 %v610, 16
      %v613 = vadd.s32 %v610, 24
      %v614 = vadd.s32 %v610, 32
      %v615 = vadd.s32 %v610, 40
      %v616 = vadd.s32 %v610, 48
      %v617 = vadd.s32 %v610, 56
      %v618 = vadd.s32 %v610, 64
      %v619 = vadd.s32 %v610, 72
      %v620 = vadd.s32 %v610, 80
      %v621 = vadd.s32 %v610, 88
      %v622 = vadd.s32 %v610, 96
      %v623 = vadd.s32 %v610, 104
      %v624 = vadd.s32 %v610, 112
      %v625 = vadd.s32 %v610, 120
      %vm626 = vcmp.lt.s32.totalorder %v610, 0
      %v627 = vsub.s32 0, %v610
      %v628 = vsel %vm626, %v627, %v610
      %v629 = vshrl.u32 %v628, 4
      %v630 = vand.u32 %v628, 15
      %v631 = vsub.s32 0, %v630
      %v632 = vsel %vm626, %v631, %v630
      %vm633 = vcmp.lt.s32.totalorder %v611, 0
      %v634 = vsub.s32 0, %v611
      %v635 = vsel %vm633, %v634, %v611
      %v636 = vshrl.u32 %v635, 4
      %v637 = vand.u32 %v635, 15
      %v638 = vsub.s32 0, %v637
      %v639 = vsel %vm633, %v638, %v637
      %vm640 = vcmp.lt.s32.totalorder %v612, 0
      %v641 = vsub.s32 0, %v612
      %v642 = vsel %vm640, %v641, %v612
      %v643 = vshrl.u32 %v642, 4
      %v644 = vand.u32 %v642, 15
      %v645 = vsub.s32 0, %v644
      %v646 = vsel %vm640, %v645, %v644
      %vm647 = vcmp.lt.s32.totalorder %v613, 0
      %v648 = vsub.s32 0, %v613
      %v649 = vsel %vm647, %v648, %v613
      %v650 = vshrl.u32 %v649, 4
      %v651 = vand.u32 %v649, 15
      %v652 = vsub.s32 0, %v651
      %v653 = vsel %vm647, %v652, %v651
      %vm654 = vcmp.lt.s32.totalorder %v614, 0
      %v655 = vsub.s32 0, %v614
      %v656 = vsel %vm654, %v655, %v614
      %v657 = vshrl.u32 %v656, 4
      %v658 = vand.u32 %v656, 15
      %v659 = vsub.s32 0, %v658
      %v660 = vsel %vm654, %v659, %v658
      %vm661 = vcmp.lt.s32.totalorder %v615, 0
      %v662 = vsub.s32 0, %v615
      %v663 = vsel %vm661, %v662, %v615
      %v664 = vshrl.u32 %v663, 4
      %v665 = vand.u32 %v663, 15
      %v666 = vsub.s32 0, %v665
      %v667 = vsel %vm661, %v666, %v665
      %vm668 = vcmp.lt.s32.totalorder %v616, 0
      %v669 = vsub.s32 0, %v616
      %v670 = vsel %vm668, %v669, %v616
      %v671 = vshrl.u32 %v670, 4
      %v672 = vand.u32 %v670, 15
      %v673 = vsub.s32 0, %v672
      %v674 = vsel %vm668, %v673, %v672
      %vm675 = vcmp.lt.s32.totalorder %v617, 0
      %v676 = vsub.s32 0, %v617
      %v677 = vsel %vm675, %v676, %v617
      %v678 = vshrl.u32 %v677, 4
      %v679 = vand.u32 %v677, 15
      %v680 = vsub.s32 0, %v679
      %v681 = vsel %vm675, %v680, %v679
      %vm682 = vcmp.lt.s32.totalorder %v618, 0
      %v683 = vsub.s32 0, %v618
      %v684 = vsel %vm682, %v683, %v618
      %v685 = vshrl.u32 %v684, 4
      %v686 = vand.u32 %v684, 15
      %v687 = vsub.s32 0, %v686
      %v688 = vsel %vm682, %v687, %v686
      %vm689 = vcmp.lt.s32.totalorder %v619, 0
      %v690 = vsub.s32 0, %v619
      %v691 = vsel %vm689, %v690, %v619
      %v692 = vshrl.u32 %v691, 4
      %v693 = vand.u32 %v691, 15
      %v694 = vsub.s32 0, %v693
      %v695 = vsel %vm689, %v694, %v693
      %vm696 = vcmp.lt.s32.totalorder %v620, 0
      %v697 = vsub.s32 0, %v620
      %v698 = vsel %vm696, %v697, %v620
      %v699 = vshrl.u32 %v698, 4
      %v700 = vand.u32 %v698, 15
      %v701 = vsub.s32 0, %v700
      %v702 = vsel %vm696, %v701, %v700
      %vm703 = vcmp.lt.s32.totalorder %v621, 0
      %v704 = vsub.s32 0, %v621
      %v705 = vsel %vm703, %v704, %v621
      %v706 = vshrl.u32 %v705, 4
      %v707 = vand.u32 %v705, 15
      %v708 = vsub.s32 0, %v707
      %v709 = vsel %vm703, %v708, %v707
      %vm710 = vcmp.lt.s32.totalorder %v622, 0
      %v711 = vsub.s32 0, %v622
      %v712 = vsel %vm710, %v711, %v622
      %v713 = vshrl.u32 %v712, 4
      %v714 = vand.u32 %v712, 15
      %v715 = vsub.s32 0, %v714
      %v716 = vsel %vm710, %v715, %v714
      %vm717 = vcmp.lt.s32.totalorder %v623, 0
      %v718 = vsub.s32 0, %v623
      %v719 = vsel %vm717, %v718, %v623
      %v720 = vshrl.u32 %v719, 4
      %v721 = vand.u32 %v719, 15
      %v722 = vsub.s32 0, %v721
      %v723 = vsel %vm717, %v722, %v721
      %vm724 = vcmp.lt.s32.totalorder %v624, 0
      %v725 = vsub.s32 0, %v624
      %v726 = vsel %vm724, %v725, %v624
      %v727 = vshrl.u32 %v726, 4
      %v728 = vand.u32 %v726, 15
      %v729 = vsub.s32 0, %v728
      %v730 = vsel %vm724, %v729, %v728
      %vm731 = vcmp.lt.s32.totalorder %v625, 0
      %v732 = vsub.s32 0, %v625
      %v733 = vsel %vm731, %v732, %v625
      %v734 = vshrl.u32 %v733, 4
      %v735 = vand.u32 %v733, 15
      %v736 = vsub.s32 0, %v735
      %v737 = vsel %vm731, %v736, %v735
      %vm738 = vcmp.ne.s32.totalorder %v632, 0
      %vm739 = vcmp.ne.s32.totalorder %v639, 0
      %vm740 = vcmp.ne.s32.totalorder %v646, 0
      %vm741 = vcmp.ne.s32.totalorder %v653, 0
      %vm742 = vcmp.ne.s32.totalorder %v660, 0
      %vm743 = vcmp.ne.s32.totalorder %v667, 0
      %vm744 = vcmp.ne.s32.totalorder %v674, 0
      %vm745 = vcmp.ne.s32.totalorder %v681, 0
      %vm746 = vcmp.ne.s32.totalorder %v688, 0
      %vm747 = vcmp.ne.s32.totalorder %v695, 0
      %vm748 = vcmp.ne.s32.totalorder %v702, 0
      %vm749 = vcmp.ne.s32.totalorder %v709, 0
      %vm750 = vcmp.ne.s32.totalorder %v716, 0
      %vm751 = vcmp.ne.s32.totalorder %v723, 0
      %vm752 = vcmp.ne.s32.totalorder %v730, 0
      %vm753 = vcmp.ne.s32.totalorder %v737, 0
      %vm754 = vcmp.lt.s32.totalorder %v632, 0
      %vm755 = vcmp.lt.s32.totalorder %v639, 0
      %vm756 = vcmp.lt.s32.totalorder %v646, 0
      %vm757 = vcmp.lt.s32.totalorder %v653, 0
      %vm758 = vcmp.lt.s32.totalorder %v660, 0
      %vm759 = vcmp.lt.s32.totalorder %v667, 0
      %vm760 = vcmp.lt.s32.totalorder %v674, 0
      %vm761 = vcmp.lt.s32.totalorder %v681, 0
      %vm762 = vcmp.lt.s32.totalorder %v688, 0
      %vm763 = vcmp.lt.s32.totalorder %v695, 0
      %vm764 = vcmp.lt.s32.totalorder %v702, 0
      %vm765 = vcmp.lt.s32.totalorder %v709, 0
      %vm766 = vcmp.lt.s32.totalorder %v716, 0
      %vm767 = vcmp.lt.s32.totalorder %v723, 0
      %vm768 = vcmp.lt.s32.totalorder %v730, 0
      %vm769 = vcmp.lt.s32.totalorder %v737, 0
      %vm770 = vmand %vm754, %vm738
      %vm771 = vmand %vm755, %vm739
      %vm772 = vmand %vm756, %vm740
      %vm773 = vmand %vm757, %vm741
      %vm774 = vmand %vm758, %vm742
      %vm775 = vmand %vm759, %vm743
      %vm776 = vmand %vm760, %vm744
      %vm777 = vmand %vm761, %vm745
      %vm778 = vmand %vm762, %vm746
      %vm779 = vmand %vm763, %vm747
      %vm780 = vmand %vm764, %vm748
      %vm781 = vmand %vm765, %vm749
      %vm782 = vmand %vm766, %vm750
      %vm783 = vmand %vm767, %vm751
      %vm784 = vmand %vm768, %vm752
      %vm785 = vmand %vm769, %vm753
      %v786 = vadd.s32 %v632, 16
      %v787 = vadd.s32 %v639, 16
      %v788 = vadd.s32 %v646, 16
      %v789 = vadd.s32 %v653, 16
      %v790 = vadd.s32 %v660, 16
      %v791 = vadd.s32 %v667, 16
      %v792 = vadd.s32 %v674, 16
      %v793 = vadd.s32 %v681, 16
      %v794 = vadd.s32 %v688, 16
      %v795 = vadd.s32 %v695, 16
      %v796 = vadd.s32 %v702, 16
      %v797 = vadd.s32 %v709, 16
      %v798 = vadd.s32 %v716, 16
      %v799 = vadd.s32 %v723, 16
      %v800 = vadd.s32 %v730, 16
      %v801 = vadd.s32 %v737, 16
      %v802 = vsel %vm770, %v786, %v632
      %v803 = vsel %vm771, %v787, %v639
      %v804 = vsel %vm772, %v788, %v646
      %v805 = vsel %vm773, %v789, %v653
      %v806 = vsel %vm774, %v790, %v660
      %v807 = vsel %vm775, %v791, %v667
      %v808 = vsel %vm776, %v792, %v674
      %v809 = vsel %vm777, %v793, %v681
      %v810 = vsel %vm778, %v794, %v688
      %v811 = vsel %vm779, %v795, %v695
      %v812 = vsel %vm780, %v796, %v702
      %v813 = vsel %vm781, %v797, %v709
      %v814 = vsel %vm782, %v798, %v716
      %v815 = vsel %vm783, %v799, %v723
      %v816 = vsel %vm784, %v800, %v730
      %v817 = vsel %vm785, %v801, %v737
      %vm818 = vcmp.ge.s32.totalorder %v802, 1
      %vm819 = vcmp.ge.s32.totalorder %v803, 1
      %vm820 = vcmp.ge.s32.totalorder %v804, 1
      %vm821 = vcmp.ge.s32.totalorder %v805, 1
      %vm822 = vcmp.ge.s32.totalorder %v806, 1
      %vm823 = vcmp.ge.s32.totalorder %v807, 1
      %vm824 = vcmp.ge.s32.totalorder %v808, 1
      %vm825 = vcmp.ge.s32.totalorder %v809, 1
      %vm826 = vcmp.ge.s32.totalorder %v810, 1
      %vm827 = vcmp.ge.s32.totalorder %v811, 1
      %vm828 = vcmp.ge.s32.totalorder %v812, 1
      %vm829 = vcmp.ge.s32.totalorder %v813, 1
      %vm830 = vcmp.ge.s32.totalorder %v814, 1
      %vm831 = vcmp.ge.s32.totalorder %v815, 1
      %vm832 = vcmp.ge.s32.totalorder %v816, 1
      %vm833 = vcmp.ge.s32.totalorder %v817, 1
      %vm834 = vcmp.le.s32.totalorder %v802, 14
      %vm835 = vcmp.le.s32.totalorder %v803, 14
      %vm836 = vcmp.le.s32.totalorder %v804, 14
      %vm837 = vcmp.le.s32.totalorder %v805, 14
      %vm838 = vcmp.le.s32.totalorder %v806, 14
      %vm839 = vcmp.le.s32.totalorder %v807, 14
      %vm840 = vcmp.le.s32.totalorder %v808, 14
      %vm841 = vcmp.le.s32.totalorder %v809, 14
      %vm842 = vcmp.le.s32.totalorder %v810, 14
      %vm843 = vcmp.le.s32.totalorder %v811, 14
      %vm844 = vcmp.le.s32.totalorder %v812, 14
      %vm845 = vcmp.le.s32.totalorder %v813, 14
      %vm846 = vcmp.le.s32.totalorder %v814, 14
      %vm847 = vcmp.le.s32.totalorder %v815, 14
      %vm848 = vcmp.le.s32.totalorder %v816, 14
      %vm849 = vcmp.le.s32.totalorder %v817, 14
      %v850 = vld [vmem:[#allocation2] sm:$0x80]
      %v851 = vld [vmem:[#allocation2 + $0x8] sm:$0xff]
      %v852 = vld [vmem:[#allocation2 + $0x10] sm:$0xff]
      %v853 = vld [vmem:[#allocation2 + $0x18] sm:$0xff]
      %v854 = vld [vmem:[#allocation2 + $0x20] sm:$0xff]
      %v855 = vld [vmem:[#allocation2 + $0x28] sm:$0xff]
      %v856 = vld [vmem:[#allocation2 + $0x30] sm:$0xff]
      %v857 = vld [vmem:[#allocation2 + $0x38] sm:$0xff]
      %v858 = vld [vmem:[#allocation2 + $0x40] sm:$0xff]
      %v859 = vsel %vm818, 1, 0
      %v860 = vsel %vm819, 1, 0
      %v861 = vsel %vm820, 1, 0
      %v862 = vsel %vm821, 1, 0
      %v863 = vsel %vm822, 1, 0
      %v864 = vsel %vm823, 1, 0
      %v865 = vsel %vm824, 1, 0
      %v866 = vsel %vm825, 1, 0
      %v867 = vsel %vm826, 1, 0
      %v868 = vsel %vm827, 1, 0
      %v869 = vsel %vm828, 1, 0
      %v870 = vsel %vm829, 1, 0
      %v871 = vsel %vm830, 1, 0
      %v872 = vsel %vm831, 1, 0
      %v873 = vsel %vm832, 1, 0
      %v874 = vsel %vm833, 1, 0
      %vm875 = vcmp.eq.s32.totalorder %v859, 1
      %vm876 = vcmp.eq.s32.totalorder %v860, 1
      %vm877 = vcmp.eq.s32.totalorder %v861, 1
      %vm878 = vcmp.eq.s32.totalorder %v862, 1
      %vm879 = vcmp.eq.s32.totalorder %v863, 1
      %vm880 = vcmp.eq.s32.totalorder %v864, 1
      %vm881 = vcmp.eq.s32.totalorder %v865, 1
      %vm882 = vcmp.eq.s32.totalorder %v866, 1
      %vm883 = vcmp.eq.s32.totalorder %v867, 1
      %vm884 = vcmp.eq.s32.totalorder %v868, 1
      %vm885 = vcmp.eq.s32.totalorder %v869, 1
      %vm886 = vcmp.eq.s32.totalorder %v870, 1
      %vm887 = vcmp.eq.s32.totalorder %v871, 1
      %vm888 = vcmp.eq.s32.totalorder %v872, 1
      %vm889 = vcmp.eq.s32.totalorder %v873, 1
      %vm890 = vcmp.eq.s32.totalorder %v874, 1
      %vm891 = vmpackc.low %vm875, %vm875
      %vm892 = vmpackc.low %vm876, %vm876
      %vm893 = vmpackc.low %vm877, %vm877
      %vm894 = vmpackc.low %vm878, %vm878
      %vm895 = vmpackc.low %vm879, %vm879
      %vm896 = vmpackc.low %vm880, %vm880
      %vm897 = vmpackc.low %vm881, %vm881
      %vm898 = vmpackc.low %vm882, %vm882
      %vm899 = vmpackc.low %vm883, %vm883
      %vm900 = vmpackc.low %vm884, %vm884
      %vm901 = vmpackc.low %vm885, %vm885
      %vm902 = vmpackc.low %vm886, %vm886
      %vm903 = vmpackc.low %vm887, %vm887
      %vm904 = vmpackc.low %vm888, %vm888
      %vm905 = vmpackc.low %vm889, %vm889
      %vm906 = vmpackc.low %vm890, %vm890
      %v907 = vsel %vm891, 65537, 0
      %v908 = vsel %vm892, 65537, 0
      %v909 = vsel %vm893, 65537, 0
      %v910 = vsel %vm894, 65537, 0
      %v911 = vsel %vm895, 65537, 0
      %v912 = vsel %vm896, 65537, 0
      %v913 = vsel %vm897, 65537, 0
      %v914 = vsel %vm898, 65537, 0
      %v915 = vsel %vm899, 65537, 0
      %v916 = vsel %vm900, 65537, 0
      %v917 = vsel %vm901, 65537, 0
      %v918 = vsel %vm902, 65537, 0
      %v919 = vsel %vm903, 65537, 0
      %v920 = vsel %vm904, 65537, 0
      %v921 = vsel %vm905, 65537, 0
      %v922 = vsel %vm906, 65537, 0
      %v923 = vunpack.c.l.b16 %v907
      %v924 = vunpack.c.l.b16 %v908
      %v925 = vunpack.c.l.b16 %v909
      %v926 = vunpack.c.l.b16 %v910
      %v927 = vunpack.c.l.b16 %v911
      %v928 = vunpack.c.l.b16 %v912
      %v929 = vunpack.c.l.b16 %v913
      %v930 = vunpack.c.l.b16 %v914
      %v931 = vunpack.c.l.b16 %v915
      %v932 = vunpack.c.l.b16 %v916
      %v933 = vunpack.c.l.b16 %v917
      %v934 = vunpack.c.l.b16 %v918
      %v935 = vunpack.c.l.b16 %v919
      %v936 = vunpack.c.l.b16 %v920
      %v937 = vunpack.c.l.b16 %v921
      %v938 = vunpack.c.l.b16 %v922
      %v939 = vpack.c.b16 %v924, %v923
      %v940 = vpack.c.b16 %v926, %v925
      %v941 = vpack.c.b16 %v928, %v927
      %v942 = vpack.c.b16 %v930, %v929
      %v943 = vpack.c.b16 %v932, %v931
      %v944 = vpack.c.b16 %v934, %v933
      %v945 = vpack.c.b16 %v936, %v935
      %v946 = vpack.c.b16 %v938, %v937
      %vm947 = vsmask.f32 7424
      %v949 = vshll.u32 %v939, 16
      %v951 = vrot.slane %v949, 1
      %v952 = vshrl.u32 %v939, 16
      %v954 = vor.u32 %v952, %v951
      %v956 = vshll.u32 %v940, 16
      %v958 = vrot.slane %v956, 1
      %v959 = vsel %vm947, %v954, %v958
      %v960 = vshrl.u32 %v940, 16
      %v962 = vor.u32 %v960, %v958
      %v964 = vshll.u32 %v941, 16
      %v966 = vrot.slane %v964, 1
      %v967 = vsel %vm947, %v962, %v966
      %v968 = vshrl.u32 %v941, 16
      %v970 = vor.u32 %v968, %v966
      %v972 = vshll.u32 %v942, 16
      %v974 = vrot.slane %v972, 1
      %v975 = vsel %vm947, %v970, %v974
      %v976 = vshrl.u32 %v942, 16
      %v978 = vor.u32 %v976, %v974
      %v980 = vshll.u32 %v943, 16
      %v982 = vrot.slane %v980, 1
      %v983 = vsel %vm947, %v978, %v982
      %v984 = vshrl.u32 %v943, 16
      %v986 = vor.u32 %v984, %v982
      %v988 = vshll.u32 %v944, 16
      %v990 = vrot.slane %v988, 1
      %v991 = vsel %vm947, %v986, %v990
      %v992 = vshrl.u32 %v944, 16
      %v994 = vor.u32 %v992, %v990
      %v996 = vshll.u32 %v945, 16
      %v998 = vrot.slane %v996, 1
      %v999 = vsel %vm947, %v994, %v998
      %v1000 = vshrl.u32 %v945, 16
      %v1002 = vor.u32 %v1000, %v998
      %v1004 = vshll.u32 %v946, 16
      %v1006 = vrot.slane %v1004, 1
      %v1007 = vsel %vm947, %v1002, %v1006
      %v1008 = vshrl.u32 %v946, 16
      %v1010 = vor.u32 %v1008, %v1006
      %vm1011 = vcmp.ne.s16.totalorder %v951, 0
      %vm1012 = vcmp.ne.s16.totalorder %v959, 0
      %vm1013 = vcmp.ne.s16.totalorder %v967, 0
      %vm1014 = vcmp.ne.s16.totalorder %v975, 0
      %vm1015 = vcmp.ne.s16.totalorder %v983, 0
      %vm1016 = vcmp.ne.s16.totalorder %v991, 0
      %vm1017 = vcmp.ne.s16.totalorder %v999, 0
      %vm1018 = vcmp.ne.s16.totalorder %v1007, 0
      %vm1019 = vcmp.ne.s16.totalorder %v1010, 0
      %v1020 = vsel %vm1011, %v850, 0
      %v1021 = vsel %vm1012, %v851, 0
      %v1022 = vsel %vm1013, %v852, 0
      %v1023 = vsel %vm1014, %v853, 0
      %v1024 = vsel %vm1015, %v854, 0
      %v1025 = vsel %vm1016, %v855, 0
      %v1026 = vsel %vm1017, %v856, 0
      %v1027 = vsel %vm1018, %v857, 0
      %v1028 = vsel %vm1019, %v858, 0
      %vm1029 = vsmask.f32 256
      %v1031 = vshrl.u32 %v1020, 16
      %v1033 = vrot.slane %v1031, 7
      %v1035 = vshrl.u32 %v1021, 16
      %v1037 = vrot.slane %v1035, 7
      %v1038 = vshll.u32 %v1021, 16
      %v1040 = vor.u32 %v1037, %v1038
      %v1041 = vsel %vm1029, %v1033, %v1040
      %v1043 = vshrl.u32 %v1022, 16
      %v1045 = vrot.slane %v1043, 7
      %v1046 = vshll.u32 %v1022, 16
      %v1048 = vor.u32 %v1045, %v1046
      %v1049 = vsel %vm1029, %v1037, %v1048
      %v1051 = vshrl.u32 %v1023, 16
      %v1053 = vrot.slane %v1051, 7
      %v1054 = vshll.u32 %v1023, 16
      %v1056 = vor.u32 %v1053, %v1054
      %v1057 = vsel %vm1029, %v1045, %v1056
      %v1059 = vshrl.u32 %v1024, 16
      %v1061 = vrot.slane %v1059, 7
      %v1062 = vshll.u32 %v1024, 16
      %v1064 = vor.u32 %v1061, %v1062
      %v1065 = vsel %vm1029, %v1053, %v1064
      %v1067 = vshrl.u32 %v1025, 16
      %v1069 = vrot.slane %v1067, 7
      %v1070 = vshll.u32 %v1025, 16
      %v1072 = vor.u32 %v1069, %v1070
      %v1073 = vsel %vm1029, %v1061, %v1072
      %v1075 = vshrl.u32 %v1026, 16
      %v1077 = vrot.slane %v1075, 7
      %v1078 = vshll.u32 %v1026, 16
      %v1080 = vor.u32 %v1077, %v1078
      %v1081 = vsel %vm1029, %v1069, %v1080
      %v1083 = vshrl.u32 %v1027, 16
      %v1085 = vrot.slane %v1083, 7
      %v1086 = vshll.u32 %v1027, 16
      %v1088 = vor.u32 %v1085, %v1086
      %v1089 = vsel %vm1029, %v1077, %v1088
      %v1091 = vshrl.u32 %v1028, 16
      %v1093 = vrot.slane %v1091, 7
      %v1094 = vshll.u32 %v1028, 16
      %v1096 = vor.u32 %v1093, %v1094
      %v1097 = vsel %vm1029, %v1085, %v1096
      %1106 = vst.msk [vmem:[#allocation3] sm:$0xff] %vm584, %v1041
      %1107 = vst.msk [vmem:[#allocation3 + $0x8] sm:$0xff] %vm584, %v1049
      %1108 = vst.msk [vmem:[#allocation3 + $0x10] sm:$0xff] %vm584, %v1057
      %1109 = vst.msk [vmem:[#allocation3 + $0x18] sm:$0xff] %vm584, %v1065
      %1110 = vst.msk [vmem:[#allocation3 + $0x20] sm:$0xff] %vm584, %v1073
      %1111 = vst.msk [vmem:[#allocation3 + $0x28] sm:$0xff] %vm584, %v1081
      %1112 = vst.msk [vmem:[#allocation3 + $0x30] sm:$0xff] %vm584, %v1089
      %1113 = vst.msk [vmem:[#allocation3 + $0x38] sm:$0xff] %vm584, %v1097
      %v1114 = vld [vmem:[#allocation2 + $0x8] sm:$0xff]
      %v1115 = vld [vmem:[#allocation2 + $0x10] sm:$0xff]
      %v1116 = vld [vmem:[#allocation2 + $0x18] sm:$0xff]
      %v1117 = vld [vmem:[#allocation2 + $0x20] sm:$0xff]
      %v1118 = vld [vmem:[#allocation2 + $0x28] sm:$0xff]
      %v1119 = vld [vmem:[#allocation2 + $0x30] sm:$0xff]
      %v1120 = vld [vmem:[#allocation2 + $0x38] sm:$0xff]
      %v1121 = vld [vmem:[#allocation2 + $0x40] sm:$0xff]
      %1130 = vrot.lane.b32.xlu0 %v1114, 8
      %v1131 = vpop.permute.xlu0 %1130
      %1132 = vrot.lane.b32.xlu0 %v1115, 8
      %v1133 = vpop.permute.xlu0 %1132
      %1134 = vrot.lane.b32.xlu0 %v1116, 8
      %v1135 = vpop.permute.xlu0 %1134
      %1136 = vrot.lane.b32.xlu0 %v1117, 8
      %v1137 = vpop.permute.xlu0 %1136
      %1138 = vrot.lane.b32.xlu0 %v1118, 8
      %v1139 = vpop.permute.xlu0 %1138
      %1140 = vrot.lane.b32.xlu0 %v1119, 8
      %v1141 = vpop.permute.xlu0 %1140
      %1142 = vrot.lane.b32.xlu0 %v1120, 8
      %v1143 = vpop.permute.xlu0 %1142
      %1144 = vrot.lane.b32.xlu0 %v1121, 8
      %v1145 = vpop.permute.xlu0 %1144
      %vm1154 = vcmask 130112
      %1155 = vst.msk [vmem:[#allocation3] sm:$0xff] %vm1154, %v1131
      %1156 = vst.msk [vmem:[#allocation3 + $0x8] sm:$0xff] %vm1154, %v1133
      %1157 = vst.msk [vmem:[#allocation3 + $0x10] sm:$0xff] %vm1154, %v1135
      %1158 = vst.msk [vmem:[#allocation3 + $0x18] sm:$0xff] %vm1154, %v1137
      %1159 = vst.msk [vmem:[#allocation3 + $0x20] sm:$0xff] %vm1154, %v1139
      %1160 = vst.msk [vmem:[#allocation3 + $0x28] sm:$0xff] %vm1154, %v1141
      %1161 = vst.msk [vmem:[#allocation3 + $0x30] sm:$0xff] %vm1154, %v1143
      %1162 = vst.msk [vmem:[#allocation3 + $0x38] sm:$0xff] %vm1154, %v1145
      %v1163 = vld [vmem:[#allocation2 + $0x8] sm:$0xff]
      %v1164 = vld [vmem:[#allocation2 + $0x10] sm:$0xff]
      %v1165 = vld [vmem:[#allocation2 + $0x18] sm:$0xff]
      %v1166 = vld [vmem:[#allocation2 + $0x20] sm:$0xff]
      %v1167 = vld [vmem:[#allocation2 + $0x28] sm:$0xff]
      %v1168 = vld [vmem:[#allocation2 + $0x30] sm:$0xff]
      %v1169 = vld [vmem:[#allocation2 + $0x38] sm:$0xff]
      %v1170 = vld [vmem:[#allocation2 + $0x40] sm:$0xff]
      %v1171 = vld [vmem:[#allocation2 + $0x48] sm:$0x1]
      %v1172 = vsel %vm834, 1, 0
      %v1173 = vsel %vm835, 1, 0
      %v1174 = vsel %vm836, 1, 0
      %v1175 = vsel %vm837, 1, 0
      %v1176 = vsel %vm838, 1, 0
      %v1177 = vsel %vm839, 1, 0
      %v1178 = vsel %vm840, 1, 0
      %v1179 = vsel %vm841, 1, 0
      %v1180 = vsel %vm842, 1, 0
      %v1181 = vsel %vm843, 1, 0
      %v1182 = vsel %vm844, 1, 0
      %v1183 = vsel %vm845, 1, 0
      %v1184 = vsel %vm846, 1, 0
      %v1185 = vsel %vm847, 1, 0
      %v1186 = vsel %vm848, 1, 0
      %v1187 = vsel %vm849, 1, 0
      %vm1188 = vcmp.eq.s32.totalorder %v1172, 1
      %vm1189 = vcmp.eq.s32.totalorder %v1173, 1
      %vm1190 = vcmp.eq.s32.totalorder %v1174, 1
      %vm1191 = vcmp.eq.s32.totalorder %v1175, 1
      %vm1192 = vcmp.eq.s32.totalorder %v1176, 1
      %vm1193 = vcmp.eq.s32.totalorder %v1177, 1
      %vm1194 = vcmp.eq.s32.totalorder %v1178, 1
      %vm1195 = vcmp.eq.s32.totalorder %v1179, 1
      %vm1196 = vcmp.eq.s32.totalorder %v1180, 1
      %vm1197 = vcmp.eq.s32.totalorder %v1181, 1
      %vm1198 = vcmp.eq.s32.totalorder %v1182, 1
      %vm1199 = vcmp.eq.s32.totalorder %v1183, 1
      %vm1200 = vcmp.eq.s32.totalorder %v1184, 1
      %vm1201 = vcmp.eq.s32.totalorder %v1185, 1
      %vm1202 = vcmp.eq.s32.totalorder %v1186, 1
      %vm1203 = vcmp.eq.s32.totalorder %v1187, 1
      %vm1204 = vmpackc.low %vm1188, %vm1188
      %vm1205 = vmpackc.low %vm1189, %vm1189
      %vm1206 = vmpackc.low %vm1190, %vm1190
      %vm1207 = vmpackc.low %vm1191, %vm1191
      %vm1208 = vmpackc.low %vm1192, %vm1192
      %vm1209 = vmpackc.low %vm1193, %vm1193
      %vm1210 = vmpackc.low %vm1194, %vm1194
      %vm1211 = vmpackc.low %vm1195, %vm1195
      %vm1212 = vmpackc.low %vm1196, %vm1196
      %vm1213 = vmpackc.low %vm1197, %vm1197
      %vm1214 = vmpackc.low %vm1198, %vm1198
      %vm1215 = vmpackc.low %vm1199, %vm1199
      %vm1216 = vmpackc.low %vm1200, %vm1200
      %vm1217 = vmpackc.low %vm1201, %vm1201
      %vm1218 = vmpackc.low %vm1202, %vm1202
      %vm1219 = vmpackc.low %vm1203, %vm1203
      %v1220 = vsel %vm1204, 65537, 0
      %v1221 = vsel %vm1205, 65537, 0
      %v1222 = vsel %vm1206, 65537, 0
      %v1223 = vsel %vm1207, 65537, 0
      %v1224 = vsel %vm1208, 65537, 0
      %v1225 = vsel %vm1209, 65537, 0
      %v1226 = vsel %vm1210, 65537, 0
      %v1227 = vsel %vm1211, 65537, 0
      %v1228 = vsel %vm1212, 65537, 0
      %v1229 = vsel %vm1213, 65537, 0
      %v1230 = vsel %vm1214, 65537, 0
      %v1231 = vsel %vm1215, 65537, 0
      %v1232 = vsel %vm1216, 65537, 0
      %v1233 = vsel %vm1217, 65537, 0
      %v1234 = vsel %vm1218, 65537, 0
      %v1235 = vsel %vm1219, 65537, 0
      %v1236 = vunpack.c.l.b16 %v1220
      %v1237 = vunpack.c.l.b16 %v1221
      %v1238 = vunpack.c.l.b16 %v1222
      %v1239 = vunpack.c.l.b16 %v1223
      %v1240 = vunpack.c.l.b16 %v1224
      %v1241 = vunpack.c.l.b16 %v1225
      %v1242 = vunpack.c.l.b16 %v1226
      %v1243 = vunpack.c.l.b16 %v1227
      %v1244 = vunpack.c.l.b16 %v1228
      %v1245 = vunpack.c.l.b16 %v1229
      %v1246 = vunpack.c.l.b16 %v1230
      %v1247 = vunpack.c.l.b16 %v1231
      %v1248 = vunpack.c.l.b16 %v1232
      %v1249 = vunpack.c.l.b16 %v1233
      %v1250 = vunpack.c.l.b16 %v1234
      %v1251 = vunpack.c.l.b16 %v1235
      %v1252 = vpack.c.b16 %v1237, %v1236
      %v1253 = vpack.c.b16 %v1239, %v1238
      %v1254 = vpack.c.b16 %v1241, %v1240
      %v1255 = vpack.c.b16 %v1243, %v1242
      %v1256 = vpack.c.b16 %v1245, %v1244
      %v1257 = vpack.c.b16 %v1247, %v1246
      %v1258 = vpack.c.b16 %v1249, %v1248
      %v1259 = vpack.c.b16 %v1251, %v1250
      %v1261 = vshrl.u32 %v1252, 16
      %v1263 = vrot.slane %v1261, 7
      %v1264 = vshll.u32 %v1252, 16
      %v1266 = vor.u32 %v1263, %v1264
      %v1268 = vshrl.u32 %v1253, 16
      %v1270 = vrot.slane %v1268, 7
      %v1271 = vshll.u32 %v1253, 16
      %v1273 = vor.u32 %v1270, %v1271
      %v1274 = vsel %vm1029, %v1263, %v1273
      %v1276 = vshrl.u32 %v1254, 16
      %v1278 = vrot.slane %v1276, 7
      %v1279 = vshll.u32 %v1254, 16
      %v1281 = vor.u32 %v1278, %v1279
      %v1282 = vsel %vm1029, %v1270, %v1281
      %v1284 = vshrl.u32 %v1255, 16
      %v1286 = vrot.slane %v1284, 7
      %v1287 = vshll.u32 %v1255, 16
      %v1289 = vor.u32 %v1286, %v1287
      %v1290 = vsel %vm1029, %v1278, %v1289
      %v1292 = vshrl.u32 %v1256, 16
      %v1294 = vrot.slane %v1292, 7
      %v1295 = vshll.u32 %v1256, 16
      %v1297 = vor.u32 %v1294, %v1295
      %v1298 = vsel %vm1029, %v1286, %v1297
      %v1300 = vshrl.u32 %v1257, 16
      %v1302 = vrot.slane %v1300, 7
      %v1303 = vshll.u32 %v1257, 16
      %v1305 = vor.u32 %v1302, %v1303
      %v1306 = vsel %vm1029, %v1294, %v1305
      %v1308 = vshrl.u32 %v1258, 16
      %v1310 = vrot.slane %v1308, 7
      %v1311 = vshll.u32 %v1258, 16
      %v1313 = vor.u32 %v1310, %v1311
      %v1314 = vsel %vm1029, %v1302, %v1313
      %v1316 = vshrl.u32 %v1259, 16
      %v1318 = vrot.slane %v1316, 7
      %v1319 = vshll.u32 %v1259, 16
      %v1321 = vor.u32 %v1318, %v1319
      %v1322 = vsel %vm1029, %v1310, %v1321
      %vm1323 = vcmp.ne.s16.totalorder %v1266, 0
      %vm1324 = vcmp.ne.s16.totalorder %v1274, 0
      %vm1325 = vcmp.ne.s16.totalorder %v1282, 0
      %vm1326 = vcmp.ne.s16.totalorder %v1290, 0
      %vm1327 = vcmp.ne.s16.totalorder %v1298, 0
      %vm1328 = vcmp.ne.s16.totalorder %v1306, 0
      %vm1329 = vcmp.ne.s16.totalorder %v1314, 0
      %vm1330 = vcmp.ne.s16.totalorder %v1322, 0
      %vm1331 = vcmp.ne.s16.totalorder %v1318, 0
      %v1332 = vsel %vm1323, %v1163, 0
      %v1333 = vsel %vm1324, %v1164, 0
      %v1334 = vsel %vm1325, %v1165, 0
      %v1335 = vsel %vm1326, %v1166, 0
      %v1336 = vsel %vm1327, %v1167, 0
      %v1337 = vsel %vm1328, %v1168, 0
      %v1338 = vsel %vm1329, %v1169, 0
      %v1339 = vsel %vm1330, %v1170, 0
      %v1340 = vsel %vm1331, %v1171, 0
      %v1342 = vshrl.u32 %v1332, 16
      %v1344 = vshll.u32 %v1332, 16
      %v1346 = vrot.slane %v1344, 1
      %v1347 = vor.u32 %v1342, %v1346
      %v1349 = vshll.u32 %v1333, 16
      %v1351 = vrot.slane %v1349, 1
      %v1352 = vsel %vm947, %v1347, %v1351
      %v1353 = vshrl.u32 %v1333, 16
      %v1355 = vor.u32 %v1353, %v1351
      %v1357 = vshll.u32 %v1334, 16
      %v1359 = vrot.slane %v1357, 1
      %v1360 = vsel %vm947, %v1355, %v1359
      %v1361 = vshrl.u32 %v1334, 16
      %v1363 = vor.u32 %v1361, %v1359
      %v1365 = vshll.u32 %v1335, 16
      %v1367 = vrot.slane %v1365, 1
      %v1368 = vsel %vm947, %v1363, %v1367
      %v1369 = vshrl.u32 %v1335, 16
      %v1371 = vor.u32 %v1369, %v1367
      %v1373 = vshll.u32 %v1336, 16
      %v1375 = vrot.slane %v1373, 1
      %v1376 = vsel %vm947, %v1371, %v1375
      %v1377 = vshrl.u32 %v1336, 16
      %v1379 = vor.u32 %v1377, %v1375
      %v1381 = vshll.u32 %v1337, 16
      %v1383 = vrot.slane %v1381, 1
      %v1384 = vsel %vm947, %v1379, %v1383
      %v1385 = vshrl.u32 %v1337, 16
      %v1387 = vor.u32 %v1385, %v1383
      %v1389 = vshll.u32 %v1338, 16
      %v1391 = vrot.slane %v1389, 1
      %v1392 = vsel %vm947, %v1387, %v1391
      %v1393 = vshrl.u32 %v1338, 16
      %v1395 = vor.u32 %v1393, %v1391
      %v1397 = vshll.u32 %v1339, 16
      %v1399 = vrot.slane %v1397, 1
      %v1400 = vsel %vm947, %v1395, %v1399
      %v1401 = vshrl.u32 %v1339, 16
      %v1403 = vor.u32 %v1401, %v1399
      %v1405 = vshll.u32 %v1340, 16
      %v1407 = vrot.slane %v1405, 1
      %v1408 = vsel %vm947, %v1403, %v1407
      %1409 = vrot.lane.b32.xlu0 %v1352, 16
      %v1410 = vpop.permute.xlu0 %1409
      %1411 = vrot.lane.b32.xlu0 %v1360, 16
      %v1412 = vpop.permute.xlu0 %1411
      %1413 = vrot.lane.b32.xlu0 %v1368, 16
      %v1414 = vpop.permute.xlu0 %1413
      %1415 = vrot.lane.b32.xlu0 %v1376, 16
      %v1416 = vpop.permute.xlu0 %1415
      %1417 = vrot.lane.b32.xlu0 %v1384, 16
      %v1418 = vpop.permute.xlu0 %1417
      %1419 = vrot.lane.b32.xlu0 %v1392, 16
      %v1420 = vpop.permute.xlu0 %1419
      %1421 = vrot.lane.b32.xlu0 %v1400, 16
      %v1422 = vpop.permute.xlu0 %1421
      %1423 = vrot.lane.b32.xlu0 %v1408, 16
      %v1424 = vpop.permute.xlu0 %1423
      %vm1433 = vcmask 195712
      %1434 = vst.msk [vmem:[#allocation3] sm:$0xff] %vm1433, %v1410
      %1435 = vst.msk [vmem:[#allocation3 + $0x8] sm:$0xff] %vm1433, %v1412
      %1436 = vst.msk [vmem:[#allocation3 + $0x10] sm:$0xff] %vm1433, %v1414
      %1437 = vst.msk [vmem:[#allocation3 + $0x18] sm:$0xff] %vm1433, %v1416
      %1438 = vst.msk [vmem:[#allocation3 + $0x20] sm:$0xff] %vm1433, %v1418
      %1439 = vst.msk [vmem:[#allocation3 + $0x28] sm:$0xff] %vm1433, %v1420
      %1440 = vst.msk [vmem:[#allocation3 + $0x30] sm:$0xff] %vm1433, %v1422
      %1441 = vst.msk [vmem:[#allocation3 + $0x38] sm:$0xff] %vm1433, %v1424
      %v1442 = vld [vmem:[#allocation3] sm:$0xff]
      %v1443 = vld [vmem:[#allocation3 + $0x8] sm:$0xff]
      %v1444 = vld [vmem:[#allocation3 + $0x10] sm:$0xff]
      %v1445 = vld [vmem:[#allocation3 + $0x18] sm:$0xff]
      %v1446 = vld [vmem:[#allocation3 + $0x20] sm:$0xff]
      %v1447 = vld [vmem:[#allocation3 + $0x28] sm:$0xff]
      %v1448 = vld [vmem:[#allocation3 + $0x30] sm:$0xff]
      %v1449 = vld [vmem:[#allocation3 + $0x38] sm:$0xff]
      %v1450 = vld [vmem:[%s5] sm:$0xf]
      %v1451 = vld [vmem:[%s5 + $0x4] sm:$0xf]
      %v1452 = vld [vmem:[%s5 + $0x8] sm:$0xf]
      %v1453 = vld [vmem:[#allocation2 + $0x8] sm:$0x80]
      %v1454 = vld [vmem:[#allocation2 + $0x10] sm:$0xff]
      %v1455 = vld [vmem:[#allocation2 + $0x18] sm:$0xff]
      %v1456 = vld [vmem:[#allocation2 + $0x20] sm:$0xff]
      %v1457 = vld [vmem:[#allocation2 + $0x28] sm:$0xff]
      %v1458 = vld [vmem:[#allocation2 + $0x30] sm:$0xff]
      %v1459 = vld [vmem:[#allocation2 + $0x38] sm:$0xff]
      %v1460 = vld [vmem:[#allocation2 + $0x40] sm:$0xff]
      %v1461 = vld [vmem:[#allocation2 + $0x48] sm:$0xff]
      %v1462 = vsel %vm1011, %v1453, 0
      %v1463 = vsel %vm1012, %v1454, 0
      %v1464 = vsel %vm1013, %v1455, 0
      %v1465 = vsel %vm1014, %v1456, 0
      %v1466 = vsel %vm1015, %v1457, 0
      %v1467 = vsel %vm1016, %v1458, 0
      %v1468 = vsel %vm1017, %v1459, 0
      %v1469 = vsel %vm1018, %v1460, 0
      %v1470 = vsel %vm1019, %v1461, 0
      %v1472 = vshrl.u32 %v1462, 16
      %v1474 = vrot.slane %v1472, 7
      %v1476 = vshrl.u32 %v1463, 16
      %v1478 = vrot.slane %v1476, 7
      %v1479 = vshll.u32 %v1463, 16
      %v1481 = vor.u32 %v1478, %v1479
      %v1482 = vsel %vm1029, %v1474, %v1481
      %v1484 = vshrl.u32 %v1464, 16
      %v1486 = vrot.slane %v1484, 7
      %v1487 = vshll.u32 %v1464, 16
      %v1489 = vor.u32 %v1486, %v1487
      %v1490 = vsel %vm1029, %v1478, %v1489
      %v1492 = vshrl.u32 %v1465, 16
      %v1494 = vrot.slane %v1492, 7
      %v1495 = vshll.u32 %v1465, 16
      %v1497 = vor.u32 %v1494, %v1495
      %v1498 = vsel %vm1029, %v1486, %v1497
      %v1500 = vshrl.u32 %v1466, 16
      %v1502 = vrot.slane %v1500, 7
      %v1503 = vshll.u32 %v1466, 16
      %v1505 = vor.u32 %v1502, %v1503
      %v1506 = vsel %vm1029, %v1494, %v1505
      %v1508 = vshrl.u32 %v1467, 16
      %v1510 = vrot.slane %v1508, 7
      %v1511 = vshll.u32 %v1467, 16
      %v1513 = vor.u32 %v1510, %v1511
      %v1514 = vsel %vm1029, %v1502, %v1513
      %v1516 = vshrl.u32 %v1468, 16
      %v1518 = vrot.slane %v1516, 7
      %v1519 = vshll.u32 %v1468, 16
      %v1521 = vor.u32 %v1518, %v1519
      %v1522 = vsel %vm1029, %v1510, %v1521
      %v1524 = vshrl.u32 %v1469, 16
      %v1526 = vrot.slane %v1524, 7
      %v1527 = vshll.u32 %v1469, 16
      %v1529 = vor.u32 %v1526, %v1527
      %v1530 = vsel %vm1029, %v1518, %v1529
      %v1532 = vshrl.u32 %v1470, 16
      %v1534 = vrot.slane %v1532, 7
      %v1535 = vshll.u32 %v1470, 16
      %v1537 = vor.u32 %v1534, %v1535
      %v1538 = vsel %vm1029, %v1526, %v1537
      %1547 = vst.msk [vmem:[#allocation3] sm:$0xff] %vm584, %v1482
      %1548 = vst.msk [vmem:[#allocation3 + $0x8] sm:$0xff] %vm584, %v1490
      %1549 = vst.msk [vmem:[#allocation3 + $0x10] sm:$0xff] %vm584, %v1498
      %1550 = vst.msk [vmem:[#allocation3 + $0x18] sm:$0xff] %vm584, %v1506
      %1551 = vst.msk [vmem:[#allocation3 + $0x20] sm:$0xff] %vm584, %v1514
      %1552 = vst.msk [vmem:[#allocation3 + $0x28] sm:$0xff] %vm584, %v1522
      %1553 = vst.msk [vmem:[#allocation3 + $0x30] sm:$0xff] %vm584, %v1530
      %1554 = vst.msk [vmem:[#allocation3 + $0x38] sm:$0xff] %vm584, %v1538
      %v1555 = vld [vmem:[#allocation2 + $0x10] sm:$0xff]
      %v1556 = vld [vmem:[#allocation2 + $0x18] sm:$0xff]
      %v1557 = vld [vmem:[#allocation2 + $0x20] sm:$0xff]
      %v1558 = vld [vmem:[#allocation2 + $0x28] sm:$0xff]
      %v1559 = vld [vmem:[#allocation2 + $0x30] sm:$0xff]
      %v1560 = vld [vmem:[#allocation2 + $0x38] sm:$0xff]
      %v1561 = vld [vmem:[#allocation2 + $0x40] sm:$0xff]
      %v1562 = vld [vmem:[#allocation2 + $0x48] sm:$0xff]
      %1571 = vrot.lane.b32.xlu0 %v1555, 8
      %v1572 = vpop.permute.xlu0 %1571
      %1573 = vrot.lane.b32.xlu0 %v1556, 8
      %v1574 = vpop.permute.xlu0 %1573
      %1575 = vrot.lane.b32.xlu0 %v1557, 8
      %v1576 = vpop.permute.xlu0 %1575
      %1577 = vrot.lane.b32.xlu0 %v1558, 8
      %v1578 = vpop.permute.xlu0 %1577
      %1579 = vrot.lane.b32.xlu0 %v1559, 8
      %v1580 = vpop.permute.xlu0 %1579
      %1581 = vrot.lane.b32.xlu0 %v1560, 8
      %v1582 = vpop.permute.xlu0 %1581
      %1583 = vrot.lane.b32.xlu0 %v1561, 8
      %v1584 = vpop.permute.xlu0 %1583
      %1585 = vrot.lane.b32.xlu0 %v1562, 8
      %v1586 = vpop.permute.xlu0 %1585
      %1595 = vst.msk [vmem:[#allocation3] sm:$0xff] %vm1154, %v1572
      %1596 = vst.msk [vmem:[#allocation3 + $0x8] sm:$0xff] %vm1154, %v1574
      %1597 = vst.msk [vmem:[#allocation3 + $0x10] sm:$0xff] %vm1154, %v1576
      %1598 = vst.msk [vmem:[#allocation3 + $0x18] sm:$0xff] %vm1154, %v1578
      %1599 = vst.msk [vmem:[#allocation3 + $0x20] sm:$0xff] %vm1154, %v1580
      %1600 = vst.msk [vmem:[#allocation3 + $0x28] sm:$0xff] %vm1154, %v1582
      %1601 = vst.msk [vmem:[#allocation3 + $0x30] sm:$0xff] %vm1154, %v1584
      %1602 = vst.msk [vmem:[#allocation3 + $0x38] sm:$0xff] %vm1154, %v1586
      %v1603 = vld [vmem:[#allocation2 + $0x10] sm:$0xff]
      %v1604 = vld [vmem:[#allocation2 + $0x18] sm:$0xff]
      %v1605 = vld [vmem:[#allocation2 + $0x20] sm:$0xff]
      %v1606 = vld [vmem:[#allocation2 + $0x28] sm:$0xff]
      %v1607 = vld [vmem:[#allocation2 + $0x30] sm:$0xff]
      %v1608 = vld [vmem:[#allocation2 + $0x38] sm:$0xff]
      %v1609 = vld [vmem:[#allocation2 + $0x40] sm:$0xff]
      %v1610 = vld [vmem:[#allocation2 + $0x48] sm:$0xff]
      %v1611 = vld [vmem:[#allocation2 + $0x50] sm:$0x1]
      %v1612 = vsel %vm1323, %v1603, 0
      %v1613 = vsel %vm1324, %v1604, 0
      %v1614 = vsel %vm1325, %v1605, 0
      %v1615 = vsel %vm1326, %v1606, 0
      %v1616 = vsel %vm1327, %v1607, 0
      %v1617 = vsel %vm1328, %v1608, 0
      %v1618 = vsel %vm1329, %v1609, 0
      %v1619 = vsel %vm1330, %v1610, 0
      %v1620 = vsel %vm1331, %v1611, 0
      %v1622 = vshrl.u32 %v1612, 16
      %v1624 = vshll.u32 %v1612, 16
      %v1626 = vrot.slane %v1624, 1
      %v1627 = vor.u32 %v1622, %v1626
      %v1629 = vshll.u32 %v1613, 16
      %v1631 = vrot.slane %v1629, 1
      %v1632 = vsel %vm947, %v1627, %v1631
      %v1633 = vshrl.u32 %v1613, 16
      %v1635 = vor.u32 %v1633, %v1631
      %v1637 = vshll.u32 %v1614, 16
      %v1639 = vrot.slane %v1637, 1
      %v1640 = vsel %vm947, %v1635, %v1639
      %v1641 = vshrl.u32 %v1614, 16
      %v1643 = vor.u32 %v1641, %v1639
      %v1645 = vshll.u32 %v1615, 16
      %v1647 = vrot.slane %v1645, 1
      %v1648 = vsel %vm947, %v1643, %v1647
      %v1649 = vshrl.u32 %v1615, 16
      %v1651 = vor.u32 %v1649, %v1647
      %v1653 = vshll.u32 %v1616, 16
      %v1655 = vrot.slane %v1653, 1
      %v1656 = vsel %vm947, %v1651, %v1655
      %v1657 = vshrl.u32 %v1616, 16
      %v1659 = vor.u32 %v1657, %v1655
      %v1661 = vshll.u32 %v1617, 16
      %v1663 = vrot.slane %v1661, 1
      %v1664 = vsel %vm947, %v1659, %v1663
      %v1665 = vshrl.u32 %v1617, 16
      %v1667 = vor.u32 %v1665, %v1663
      %v1669 = vshll.u32 %v1618, 16
      %v1671 = vrot.slane %v1669, 1
      %v1672 = vsel %vm947, %v1667, %v1671
      %v1673 = vshrl.u32 %v1618, 16
      %v1675 = vor.u32 %v1673, %v1671
      %v1677 = vshll.u32 %v1619, 16
      %v1679 = vrot.slane %v1677, 1
      %v1680 = vsel %vm947, %v1675, %v1679
      %v1681 = vshrl.u32 %v1619, 16
      %v1683 = vor.u32 %v1681, %v1679
      %v1685 = vshll.u32 %v1620, 16
      %v1687 = vrot.slane %v1685, 1
      %v1688 = vsel %vm947, %v1683, %v1687
      %1689 = vrot.lane.b32.xlu0 %v1632, 16
      %v1690 = vpop.permute.xlu0 %1689
      %1691 = vrot.lane.b32.xlu0 %v1640, 16
      %v1692 = vpop.permute.xlu0 %1691
      %1693 = vrot.lane.b32.xlu0 %v1648, 16
      %v1694 = vpop.permute.xlu0 %1693
      %1695 = vrot.lane.b32.xlu0 %v1656, 16
      %v1696 = vpop.permute.xlu0 %1695
      %1697 = vrot.lane.b32.xlu0 %v1664, 16
      %v1698 = vpop.permute.xlu0 %1697
      %1699 = vrot.lane.b32.xlu0 %v1672, 16
      %v1700 = vpop.permute.xlu0 %1699
      %1701 = vrot.lane.b32.xlu0 %v1680, 16
      %v1702 = vpop.permute.xlu0 %1701
      %1703 = vrot.lane.b32.xlu0 %v1688, 16
      %v1704 = vpop.permute.xlu0 %1703
      %1713 = vst.msk [vmem:[#allocation3] sm:$0xff] %vm1433, %v1690
      %1714 = vst.msk [vmem:[#allocation3 + $0x8] sm:$0xff] %vm1433, %v1692
      %1715 = vst.msk [vmem:[#allocation3 + $0x10] sm:$0xff] %vm1433, %v1694
      %1716 = vst.msk [vmem:[#allocation3 + $0x18] sm:$0xff] %vm1433, %v1696
      %1717 = vst.msk [vmem:[#allocation3 + $0x20] sm:$0xff] %vm1433, %v1698
      %1718 = vst.msk [vmem:[#allocation3 + $0x28] sm:$0xff] %vm1433, %v1700
      %1719 = vst.msk [vmem:[#allocation3 + $0x30] sm:$0xff] %vm1433, %v1702
      %1720 = vst.msk [vmem:[#allocation3 + $0x38] sm:$0xff] %vm1433, %v1704
      %v1721 = vld [vmem:[#allocation3] sm:$0xff]
      %v1722 = vld [vmem:[#allocation3 + $0x8] sm:$0xff]
      %v1723 = vld [vmem:[#allocation3 + $0x10] sm:$0xff]
      %v1724 = vld [vmem:[#allocation3 + $0x18] sm:$0xff]
      %v1725 = vld [vmem:[#allocation3 + $0x20] sm:$0xff]
      %v1726 = vld [vmem:[#allocation3 + $0x28] sm:$0xff]
      %v1727 = vld [vmem:[#allocation3 + $0x30] sm:$0xff]
      %v1728 = vld [vmem:[#allocation3 + $0x38] sm:$0xff]
      %s1729 = scalar_lea.vmem %s5, 12
      %v1730 = vld [vmem:[%s1729] sm:$0xf]
      %v1731 = vld [vmem:[%s1729 + $0x4] sm:$0xf]
      %v1732 = vld [vmem:[%s1729 + $0x8] sm:$0xf]
      %v1736 = vunpack.c.l.b16 %v1730
      %v1737 = vunpack.c.l.b16 %v1731
      %v1738 = vunpack.c.l.b16 %v1732
      %v1739 = vpack.c.b16 %v1737, %v1736
      %v1740 = vpack.c.b16 %v1738, %v1738
      %vm1742 = vcmask 195584
      %v1744 = vsel %vm1742, %v1721, 0
      %v1747 = vsel %vm1742, %v1722, 0
      %v1750 = vsel %vm1742, %v1723, 0
      %v1753 = vsel %vm1742, %v1724, 0
      %v1756 = vsel %vm1742, %v1725, 0
      %v1759 = vsel %vm1742, %v1726, 0
      %v1762 = vsel %vm1742, %v1727, 0
      %v1765 = vsel %vm1742, %v1728, 0
      %vm1767 = vcmask 1043456
      %v1769 = vsel %vm1767, %v1740, 0
      %1771 = vmatprep.subr.bf16.mxu0 0
      %1772 = vmatpush1.bf16.msra.mxu0 %v1739
      %1773 = vmatprep.subr.bf16.mxu0 0
      %1774 = vmatpush1.bf16.msra.mxu0 %v1769
      %1775 = vmatprep.subr.bf16.mxu0 0
      %1776 = vmatpush1.bf16.msra.mxu0 0
      %1777 = vmatprep.subr.bf16.mxu0 0
      %1778 = vmatpush1.bf16.msra.mxu0 0
      %1779 = vmatprep.subr.bf16.mxu0 0
      %1780 = vmatpush1.bf16.msra.mxu0 0
      %1781 = vmatprep.subr.bf16.mxu0 0
      %1782 = vmatpush1.bf16.msra.mxu0 0
      %1783 = vmatprep.subr.bf16.mxu0 0
      %1784 = vmatpush1.bf16.msra.mxu0 0
      %1785 = vmatprep.subr.bf16.mxu0 0
      %1786 = vmatpush1.bf16.msra.mxu0 0
      %1787 = vmatprep.subr.bf16.mxu0 0
      %1788 = vmatpush1.bf16.msra.mxu0 0
      %1789 = vmatprep.subr.bf16.mxu0 0
      %1790 = vmatpush1.bf16.msra.mxu0 0
      %1791 = vmatprep.subr.bf16.mxu0 0
      %1792 = vmatpush1.bf16.msra.mxu0 0
      %1793 = vmatprep.subr.bf16.mxu0 0
      %1794 = vmatpush1.bf16.msra.mxu0 0
      %1795 = vmatprep.subr.bf16.mxu0 0
      %1796 = vmatpush1.bf16.msra.mxu0 0
      %1797 = vmatprep.subr.bf16.mxu0 0
      %1798 = vmatpush1.bf16.msra.mxu0 0
      %1799 = vmatprep.subr.bf16.mxu0 0
      %1800 = vmatpush1.bf16.msra.mxu0 0
      %1801 = vmatprep.subr.bf16.mxu0 0
      %1802 = vmatpush1.bf16.msra.mxu0 0
      %1803 = vmatprep.mubr.bf16.mxu0 0
      %1804 = vmatmul.mubr.bf16.gmra.mrb[0].mxu0 %v1744
      %v1805 = vpop.f32.mrb[0].mxu0
      %v1806 = vadd.f32 0.0, %v1805
      %v1807 = vpop.f32.mrb[0].mxu0
      %v1808 = vpop.f32.mrb[0].mxu0
      %v1809 = vadd.f32 0.0, %v1808
      %v1810 = vpop.f32.mrb[0].mxu0
      %1811 = vmatprep.mubr.bf16.mxu0 0
      %1812 = vmatmul.mubr.bf16.gmra.mrb[0].mxu0 %v1747
      %v1813 = vpop.f32.mrb[0].mxu0
      %v1814 = vadd.f32 0.0, %v1813
      %v1815 = vpop.f32.mrb[0].mxu0
      %v1816 = vpop.f32.mrb[0].mxu0
      %v1817 = vadd.f32 0.0, %v1816
      %v1818 = vpop.f32.mrb[0].mxu0
      %1819 = vmatprep.mubr.bf16.mxu0 0
      %1820 = vmatmul.mubr.bf16.gmra.mrb[0].mxu0 %v1750
      %v1821 = vpop.f32.mrb[0].mxu0
      %v1822 = vadd.f32 0.0, %v1821
      %v1823 = vpop.f32.mrb[0].mxu0
      %v1824 = vpop.f32.mrb[0].mxu0
      %v1825 = vadd.f32 0.0, %v1824
      %v1826 = vpop.f32.mrb[0].mxu0
      %1827 = vmatprep.mubr.bf16.mxu0 0
      %1828 = vmatmul.mubr.bf16.gmra.mrb[0].mxu0 %v1753
      %v1829 = vpop.f32.mrb[0].mxu0
      %v1830 = vadd.f32 0.0, %v1829
      %v1831 = vpop.f32.mrb[0].mxu0
      %v1832 = vpop.f32.mrb[0].mxu0
      %v1833 = vadd.f32 0.0, %v1832
      %v1834 = vpop.f32.mrb[0].mxu0
      %1835 = vmatprep.mubr.bf16.mxu0 0
      %1836 = vmatmul.mubr.bf16.gmra.mrb[0].mxu0 %v1756
      %v1837 = vpop.f32.mrb[0].mxu0
      %v1838 = vadd.f32 0.0, %v1837
      %v1839 = vpop.f32.mrb[0].mxu0
      %v1840 = vpop.f32.mrb[0].mxu0
      %v1841 = vadd.f32 0.0, %v1840
      %v1842 = vpop.f32.mrb[0].mxu0
      %1843 = vmatprep.mubr.bf16.mxu0 0
      %1844 = vmatmul.mubr.bf16.gmra.mrb[0].mxu0 %v1759
      %v1845 = vpop.f32.mrb[0].mxu0
      %v1846 = vadd.f32 0.0, %v1845
      %v1847 = vpop.f32.mrb[0].mxu0
      %v1848 = vpop.f32.mrb[0].mxu0
      %v1849 = vadd.f32 0.0, %v1848
      %v1850 = vpop.f32.mrb[0].mxu0
      %1851 = vmatprep.mubr.bf16.mxu0 0
      %1852 = vmatmul.mubr.bf16.gmra.mrb[0].mxu0 %v1762
      %v1853 = vpop.f32.mrb[0].mxu0
      %v1854 = vadd.f32 0.0, %v1853
      %v1855 = vpop.f32.mrb[0].mxu0
      %v1856 = vpop.f32.mrb[0].mxu0
      %v1857 = vadd.f32 0.0, %v1856
      %v1858 = vpop.f32.mrb[0].mxu0
      %1859 = vmatprep.mubr.bf16.mxu0 0
      %1860 = vmatmul.mubr.bf16.gmra.mrb[0].mxu0 %v1765
      %v1861 = vpop.f32.mrb[0].mxu0
      %v1862 = vadd.f32 0.0, %v1861
      %v1863 = vpop.f32.mrb[0].mxu0
      %v1864 = vpop.f32.mrb[0].mxu0
      %v1865 = vadd.f32 0.0, %v1864
      %v1866 = vpop.f32.mrb[0].mxu0
      %1867 = vdwg.mxu0
      %v1871 = vunpack.c.l.b16 %v1450
      %v1872 = vunpack.c.l.b16 %v1451
      %v1873 = vunpack.c.l.b16 %v1452
      %v1874 = vpack.c.b16 %v1872, %v1871
      %v1875 = vpack.c.b16 %v1873, %v1873
      %v1878 = vsel %vm1742, %v1442, 0
      %v1881 = vsel %vm1742, %v1443, 0
      %v1884 = vsel %vm1742, %v1444, 0
      %v1887 = vsel %vm1742, %v1445, 0
      %v1890 = vsel %vm1742, %v1446, 0
      %v1893 = vsel %vm1742, %v1447, 0
      %v1896 = vsel %vm1742, %v1448, 0
      %v1899 = vsel %vm1742, %v1449, 0
      %v1902 = vsel %vm1767, %v1875, 0
      %1904 = vmatprep.subr.bf16.mxu0 0
      %1905 = vmatpush1.bf16.msra.mxu0 %v1874
      %1906 = vmatprep.subr.bf16.mxu0 0
      %1907 = vmatpush1.bf16.msra.mxu0 %v1902
      %1908 = vmatprep.subr.bf16.mxu0 0
      %1909 = vmatpush1.bf16.msra.mxu0 0
      %1910 = vmatprep.subr.bf16.mxu0 0
      %1911 = vmatpush1.bf16.msra.mxu0 0
      %1912 = vmatprep.subr.bf16.mxu0 0
      %1913 = vmatpush1.bf16.msra.mxu0 0
      %1914 = vmatprep.subr.bf16.mxu0 0
      %1915 = vmatpush1.bf16.msra.mxu0 0
      %1916 = vmatprep.subr.bf16.mxu0 0
      %1917 = vmatpush1.bf16.msra.mxu0 0
      %1918 = vmatprep.subr.bf16.mxu0 0
      %1919 = vmatpush1.bf16.msra.mxu0 0
      %1920 = vmatprep.subr.bf16.mxu0 0
      %1921 = vmatpush1.bf16.msra.mxu0 0
      %1922 = vmatprep.subr.bf16.mxu0 0
      %1923 = vmatpush1.bf16.msra.mxu0 0
      %1924 = vmatprep.subr.bf16.mxu0 0
      %1925 = vmatpush1.bf16.msra.mxu0 0
      %1926 = vmatprep.subr.bf16.mxu0 0
      %1927 = vmatpush1.bf16.msra.mxu0 0
      %1928 = vmatprep.subr.bf16.mxu0 0
      %1929 = vmatpush1.bf16.msra.mxu0 0
      %1930 = vmatprep.subr.bf16.mxu0 0
      %1931 = vmatpush1.bf16.msra.mxu0 0
      %1932 = vmatprep.subr.bf16.mxu0 0
      %1933 = vmatpush1.bf16.msra.mxu0 0
      %1934 = vmatprep.subr.bf16.mxu0 0
      %1935 = vmatpush1.bf16.msra.mxu0 0
      %1936 = vmatprep.mubr.bf16.mxu0 0
      %1937 = vmatmul.mubr.bf16.gmra.mrb[0].mxu0 %v1878
      %v1938 = vpop.f32.mrb[0].mxu0
      %v1939 = vadd.f32 %v1806, %v1938
      %v1940 = vpop.f32.mrb[0].mxu0
      %v1941 = vpop.f32.mrb[0].mxu0
      %v1942 = vadd.f32 %v1809, %v1941
      %v1943 = vpop.f32.mrb[0].mxu0
      %1944 = vmatprep.mubr.bf16.mxu0 0
      %1945 = vmatmul.mubr.bf16.gmra.mrb[0].mxu0 %v1881
      %v1946 = vpop.f32.mrb[0].mxu0
      %v1947 = vadd.f32 %v1814, %v1946
      %v1948 = vpop.f32.mrb[0].mxu0
      %v1949 = vpop.f32.mrb[0].mxu0
      %v1950 = vadd.f32 %v1817, %v1949
      %v1951 = vpop.f32.mrb[0].mxu0
      %1952 = vmatprep.mubr.bf16.mxu0 0
      %1953 = vmatmul.mubr.bf16.gmra.mrb[0].mxu0 %v1884
      %v1954 = vpop.f32.mrb[0].mxu0
      %v1955 = vadd.f32 %v1822, %v1954
      %v1956 = vpop.f32.mrb[0].mxu0
      %v1957 = vpop.f32.mrb[0].mxu0
      %v1958 = vadd.f32 %v1825, %v1957
      %v1959 = vpop.f32.mrb[0].mxu0
      %1960 = vmatprep.mubr.bf16.mxu0 0
      %1961 = vmatmul.mubr.bf16.gmra.mrb[0].mxu0 %v1887
      %v1962 = vpop.f32.mrb[0].mxu0
      %v1963 = vadd.f32 %v1830, %v1962
      %v1964 = vpop.f32.mrb[0].mxu0
      %v1965 = vpop.f32.mrb[0].mxu0
      %v1966 = vadd.f32 %v1833, %v1965
      %v1967 = vpop.f32.mrb[0].mxu0
      %1968 = vmatprep.mubr.bf16.mxu0 0
      %1969 = vmatmul.mubr.bf16.gmra.mrb[0].mxu0 %v1890
      %v1970 = vpop.f32.mrb[0].mxu0
      %v1971 = vadd.f32 %v1838, %v1970
      %v1972 = vpop.f32.mrb[0].mxu0
      %v1973 = vpop.f32.mrb[0].mxu0
      %v1974 = vadd.f32 %v1841, %v1973
      %v1975 = vpop.f32.mrb[0].mxu0
      %1976 = vmatprep.mubr.bf16.mxu0 0
      %1977 = vmatmul.mubr.bf16.gmra.mrb[0].mxu0 %v1893
      %v1978 = vpop.f32.mrb[0].mxu0
      %v1979 = vadd.f32 %v1846, %v1978
      %v1980 = vpop.f32.mrb[0].mxu0
      %v1981 = vpop.f32.mrb[0].mxu0
      %v1982 = vadd.f32 %v1849, %v1981
      %v1983 = vpop.f32.mrb[0].mxu0
      %1984 = vmatprep.mubr.bf16.mxu0 0
      %1985 = vmatmul.mubr.bf16.gmra.mrb[0].mxu0 %v1896
      %v1986 = vpop.f32.mrb[0].mxu0
      %v1987 = vadd.f32 %v1854, %v1986
      %v1988 = vpop.f32.mrb[0].mxu0
      %v1989 = vpop.f32.mrb[0].mxu0
      %v1990 = vadd.f32 %v1857, %v1989
      %v1991 = vpop.f32.mrb[0].mxu0
      %1992 = vmatprep.mubr.bf16.mxu0 0
      %1993 = vmatmul.mubr.bf16.gmra.mrb[0].mxu0 %v1899
      %v1994 = vpop.f32.mrb[0].mxu0
      %v1995 = vadd.f32 %v1862, %v1994
      %v1996 = vpop.f32.mrb[0].mxu0
      %v1997 = vpop.f32.mrb[0].mxu0
      %v1998 = vadd.f32 %v1865, %v1997
      %v1999 = vpop.f32.mrb[0].mxu0
      %2000 = vdwg.mxu0
      %v2001 = vld [vmem:[#allocation2 + $0x10] sm:$0x80]
      %v2002 = vld [vmem:[#allocation2 + $0x18] sm:$0xff]
      %v2003 = vld [vmem:[#allocation2 + $0x20] sm:$0xff]
      %v2004 = vld [vmem:[#allocation2 + $0x28] sm:$0xff]
      %v2005 = vld [vmem:[#allocation2 + $0x30] sm:$0xff]
      %v2006 = vld [vmem:[#allocation2 + $0x38] sm:$0xff]
      %v2007 = vld [vmem:[#allocation2 + $0x40] sm:$0xff]
      %v2008 = vld [vmem:[#allocation2 + $0x48] sm:$0xff]
      %v2009 = vld [vmem:[#allocation2 + $0x50] sm:$0xff]
      %v2010 = vsel %vm1011, %v2001, 0
      %v2011 = vsel %vm1012, %v2002, 0
      %v2012 = vsel %vm1013, %v2003, 0
      %v2013 = vsel %vm1014, %v2004, 0
      %v2014 = vsel %vm1015, %v2005, 0
      %v2015 = vsel %vm1016, %v2006, 0
      %v2016 = vsel %vm1017, %v2007, 0
      %v2017 = vsel %vm1018, %v2008, 0
      %v2018 = vsel %vm1019, %v2009, 0
      %v2020 = vshrl.u32 %v2010, 16
      %v2022 = vrot.slane %v2020, 7
      %v2024 = vshrl.u32 %v2011, 16
      %v2026 = vrot.slane %v2024, 7
      %v2027 = vshll.u32 %v2011, 16
      %v2029 = vor.u32 %v2026, %v2027
      %v2030 = vsel %vm1029, %v2022, %v2029
      %v2032 = vshrl.u32 %v2012, 16
      %v2034 = vrot.slane %v2032, 7
      %v2035 = vshll.u32 %v2012, 16
      %v2037 = vor.u32 %v2034, %v2035
      %v2038 = vsel %vm1029, %v2026, %v2037
      %v2040 = vshrl.u32 %v2013, 16
      %v2042 = vrot.slane %v2040, 7
      %v2043 = vshll.u32 %v2013, 16
      %v2045 = vor.u32 %v2042, %v2043
      %v2046 = vsel %vm1029, %v2034, %v2045
      %v2048 = vshrl.u32 %v2014, 16
      %v2050 = vrot.slane %v2048, 7
      %v2051 = vshll.u32 %v2014, 16
      %v2053 = vor.u32 %v2050, %v2051
      %v2054 = vsel %vm1029, %v2042, %v2053
      %v2056 = vshrl.u32 %v2015, 16
      %v2058 = vrot.slane %v2056, 7
      %v2059 = vshll.u32 %v2015, 16
      %v2061 = vor.u32 %v2058, %v2059
      %v2062 = vsel %vm1029, %v2050, %v2061
      %v2064 = vshrl.u32 %v2016, 16
      %v2066 = vrot.slane %v2064, 7
      %v2067 = vshll.u32 %v2016, 16
      %v2069 = vor.u32 %v2066, %v2067
      %v2070 = vsel %vm1029, %v2058, %v2069
      %v2072 = vshrl.u32 %v2017, 16
      %v2074 = vrot.slane %v2072, 7
      %v2075 = vshll.u32 %v2017, 16
      %v2077 = vor.u32 %v2074, %v2075
      %v2078 = vsel %vm1029, %v2066, %v2077
      %v2080 = vshrl.u32 %v2018, 16
      %v2082 = vrot.slane %v2080, 7
      %v2083 = vshll.u32 %v2018, 16
      %v2085 = vor.u32 %v2082, %v2083
      %v2086 = vsel %vm1029, %v2074, %v2085
      %2095 = vst.msk [vmem:[#allocation3] sm:$0xff] %vm584, %v2030
      %2096 = vst.msk [vmem:[#allocation3 + $0x8] sm:$0xff] %vm584, %v2038
      %2097 = vst.msk [vmem:[#allocation3 + $0x10] sm:$0xff] %vm584, %v2046
      %2098 = vst.msk [vmem:[#allocation3 + $0x18] sm:$0xff] %vm584, %v2054
      %2099 = vst.msk [vmem:[#allocation3 + $0x20] sm:$0xff] %vm584, %v2062
      %2100 = vst.msk [vmem:[#allocation3 + $0x28] sm:$0xff] %vm584, %v2070
      %2101 = vst.msk [vmem:[#allocation3 + $0x30] sm:$0xff] %vm584, %v2078
      %2102 = vst.msk [vmem:[#allocation3 + $0x38] sm:$0xff] %vm584, %v2086
      %v2103 = vld [vmem:[#allocation2 + $0x18] sm:$0xff]
      %v2104 = vld [vmem:[#allocation2 + $0x20] sm:$0xff]
      %v2105 = vld [vmem:[#allocation2 + $0x28] sm:$0xff]
      %v2106 = vld [vmem:[#allocation2 + $0x30] sm:$0xff]
      %v2107 = vld [vmem:[#allocation2 + $0x38] sm:$0xff]
      %v2108 = vld [vmem:[#allocation2 + $0x40] sm:$0xff]
      %v2109 = vld [vmem:[#allocation2 + $0x48] sm:$0xff]
      %v2110 = vld [vmem:[#allocation2 + $0x50] sm:$0xff]
      %2119 = vrot.lane.b32.xlu0 %v2103, 8
      %v2120 = vpop.permute.xlu0 %2119
      %2121 = vrot.lane.b32.xlu0 %v2104, 8
      %v2122 = vpop.permute.xlu0 %2121
      %2123 = vrot.lane.b32.xlu0 %v2105, 8
      %v2124 = vpop.permute.xlu0 %2123
      %2125 = vrot.lane.b32.xlu0 %v2106, 8
      %v2126 = vpop.permute.xlu0 %2125
      %2127 = vrot.lane.b32.xlu0 %v2107, 8
      %v2128 = vpop.permute.xlu0 %2127
      %2129 = vrot.lane.b32.xlu0 %v2108, 8
      %v2130 = vpop.permute.xlu0 %2129
      %2131 = vrot.lane.b32.xlu0 %v2109, 8
      %v2132 = vpop.permute.xlu0 %2131
      %2133 = vrot.lane.b32.xlu0 %v2110, 8
      %v2134 = vpop.permute.xlu0 %2133
      %2143 = vst.msk [vmem:[#allocation3] sm:$0xff] %vm1154, %v2120
      %2144 = vst.msk [vmem:[#allocation3 + $0x8] sm:$0xff] %vm1154, %v2122
      %2145 = vst.msk [vmem:[#allocation3 + $0x10] sm:$0xff] %vm1154, %v2124
      %2146 = vst.msk [vmem:[#allocation3 + $0x18] sm:$0xff] %vm1154, %v2126
      %2147 = vst.msk [vmem:[#allocation3 + $0x20] sm:$0xff] %vm1154, %v2128
      %2148 = vst.msk [vmem:[#allocation3 + $0x28] sm:$0xff] %vm1154, %v2130
      %2149 = vst.msk [vmem:[#allocation3 + $0x30] sm:$0xff] %vm1154, %v2132
      %2150 = vst.msk [vmem:[#allocation3 + $0x38] sm:$0xff] %vm1154, %v2134
      %v2151 = vld [vmem:[#allocation2 + $0x18] sm:$0xff]
      %v2152 = vld [vmem:[#allocation2 + $0x20] sm:$0xff]
      %v2153 = vld [vmem:[#allocation2 + $0x28] sm:$0xff]
      %v2154 = vld [vmem:[#allocation2 + $0x30] sm:$0xff]
      %v2155 = vld [vmem:[#allocation2 + $0x38] sm:$0xff]
      %v2156 = vld [vmem:[#allocation2 + $0x40] sm:$0xff]
      %v2157 = vld [vmem:[#allocation2 + $0x48] sm:$0xff]
      %v2158 = vld [vmem:[#allocation2 + $0x50] sm:$0xff]
      %v2159 = vld [vmem:[#allocation2 + $0x58] sm:$0x1]
      %v2160 = vsel %vm1323, %v2151, 0
      %v2161 = vsel %vm1324, %v2152, 0
      %v2162 = vsel %vm1325, %v2153, 0
      %v2163 = vsel %vm1326, %v2154, 0
      %v2164 = vsel %vm1327, %v2155, 0
      %v2165 = vsel %vm1328, %v2156, 0
      %v2166 = vsel %vm1329, %v2157, 0
      %v2167 = vsel %vm1330, %v2158, 0
      %v2168 = vsel %vm1331, %v2159, 0
      %v2170 = vshrl.u32 %v2160, 16
      %v2172 = vshll.u32 %v2160, 16
      %v2174 = vrot.slane %v2172, 1
      %v2175 = vor.u32 %v2170, %v2174
      %v2177 = vshll.u32 %v2161, 16
      %v2179 = vrot.slane %v2177, 1
      %v2180 = vsel %vm947, %v2175, %v2179
      %v2181 = vshrl.u32 %v2161, 16
      %v2183 = vor.u32 %v2181, %v2179
      %v2185 = vshll.u32 %v2162, 16
      %v2187 = vrot.slane %v2185, 1
      %v2188 = vsel %vm947, %v2183, %v2187
      %v2189 = vshrl.u32 %v2162, 16
      %v2191 = vor.u32 %v2189, %v2187
      %v2193 = vshll.u32 %v2163, 16
      %v2195 = vrot.slane %v2193, 1
      %v2196 = vsel %vm947, %v2191, %v2195
      %v2197 = vshrl.u32 %v2163, 16
      %v2199 = vor.u32 %v2197, %v2195
      %v2201 = vshll.u32 %v2164, 16
      %v2203 = vrot.slane %v2201, 1
      %v2204 = vsel %vm947, %v2199, %v2203
      %v2205 = vshrl.u32 %v2164, 16
      %v2207 = vor.u32 %v2205, %v2203
      %v2209 = vshll.u32 %v2165, 16
      %v2211 = vrot.slane %v2209, 1
      %v2212 = vsel %vm947, %v2207, %v2211
      %v2213 = vshrl.u32 %v2165, 16
      %v2215 = vor.u32 %v2213, %v2211
      %v2217 = vshll.u32 %v2166, 16
      %v2219 = vrot.slane %v2217, 1
      %v2220 = vsel %vm947, %v2215, %v2219
      %v2221 = vshrl.u32 %v2166, 16
      %v2223 = vor.u32 %v2221, %v2219
      %v2225 = vshll.u32 %v2167, 16
      %v2227 = vrot.slane %v2225, 1
      %v2228 = vsel %vm947, %v2223, %v2227
      %v2229 = vshrl.u32 %v2167, 16
      %v2231 = vor.u32 %v2229, %v2227
      %v2233 = vshll.u32 %v2168, 16
      %v2235 = vrot.slane %v2233, 1
      %v2236 = vsel %vm947, %v2231, %v2235
      %2237 = vrot.lane.b32.xlu0 %v2180, 16
      %v2238 = vpop.permute.xlu0 %2237
      %2239 = vrot.lane.b32.xlu0 %v2188, 16
      %v2240 = vpop.permute.xlu0 %2239
      %2241 = vrot.lane.b32.xlu0 %v2196, 16
      %v2242 = vpop.permute.xlu0 %2241
      %2243 = vrot.lane.b32.xlu0 %v2204, 16
      %v2244 = vpop.permute.xlu0 %2243
      %2245 = vrot.lane.b32.xlu0 %v2212, 16
      %v2246 = vpop.permute.xlu0 %2245
      %2247 = vrot.lane.b32.xlu0 %v2220, 16
      %v2248 = vpop.permute.xlu0 %2247
      %2249 = vrot.lane.b32.xlu0 %v2228, 16
      %v2250 = vpop.permute.xlu0 %2249
      %2251 = vrot.lane.b32.xlu0 %v2236, 16
      %v2252 = vpop.permute.xlu0 %2251
      %2261 = vst.msk [vmem:[#allocation3] sm:$0xff] %vm1433, %v2238
      %2262 = vst.msk [vmem:[#allocation3 + $0x8] sm:$0xff] %vm1433, %v2240
      %2263 = vst.msk [vmem:[#allocation3 + $0x10] sm:$0xff] %vm1433, %v2242
      %2264 = vst.msk [vmem:[#allocation3 + $0x18] sm:$0xff] %vm1433, %v2244
      %2265 = vst.msk [vmem:[#allocation3 + $0x20] sm:$0xff] %vm1433, %v2246
      %2266 = vst.msk [vmem:[#allocation3 + $0x28] sm:$0xff] %vm1433, %v2248
      %2267 = vst.msk [vmem:[#allocation3 + $0x30] sm:$0xff] %vm1433, %v2250
      %2268 = vst.msk [vmem:[#allocation3 + $0x38] sm:$0xff] %vm1433, %v2252
      %v2269 = vld [vmem:[#allocation3] sm:$0xff]
      %v2270 = vld [vmem:[#allocation3 + $0x8] sm:$0xff]
      %v2271 = vld [vmem:[#allocation3 + $0x10] sm:$0xff]
      %v2272 = vld [vmem:[#allocation3 + $0x18] sm:$0xff]
      %v2273 = vld [vmem:[#allocation3 + $0x20] sm:$0xff]
      %v2274 = vld [vmem:[#allocation3 + $0x28] sm:$0xff]
      %v2275 = vld [vmem:[#allocation3 + $0x30] sm:$0xff]
      %v2276 = vld [vmem:[#allocation3 + $0x38] sm:$0xff]
      %s2277 = scalar_lea.vmem %s5, 24
      %v2278 = vld [vmem:[%s2277] sm:$0xf]
      %v2279 = vld [vmem:[%s2277 + $0x4] sm:$0xf]
      %v2280 = vld [vmem:[%s2277 + $0x8] sm:$0xf]
      %v2284 = vunpack.c.l.b16 %v2278
      %v2285 = vunpack.c.l.b16 %v2279
      %v2286 = vunpack.c.l.b16 %v2280
      %v2287 = vpack.c.b16 %v2285, %v2284
      %v2288 = vpack.c.b16 %v2286, %v2286
      %v2291 = vsel %vm1742, %v2269, 0
      %v2294 = vsel %vm1742, %v2270, 0
      %v2297 = vsel %vm1742, %v2271, 0
      %v2300 = vsel %vm1742, %v2272, 0
      %v2303 = vsel %vm1742, %v2273, 0
      %v2306 = vsel %vm1742, %v2274, 0
      %v2309 = vsel %vm1742, %v2275, 0
      %v2312 = vsel %vm1742, %v2276, 0
      %v2315 = vsel %vm1767, %v2288, 0
      %2317 = vmatprep.subr.bf16.mxu0 0
      %2318 = vmatpush1.bf16.msra.mxu0 %v2287
      %2319 = vmatprep.subr.bf16.mxu0 0
      %2320 = vmatpush1.bf16.msra.mxu0 %v2315
      %2321 = vmatprep.subr.bf16.mxu0 0
      %2322 = vmatpush1.bf16.msra.mxu0 0
      %2323 = vmatprep.subr.bf16.mxu0 0
      %2324 = vmatpush1.bf16.msra.mxu0 0
      %2325 = vmatprep.subr.bf16.mxu0 0
      %2326 = vmatpush1.bf16.msra.mxu0 0
      %2327 = vmatprep.subr.bf16.mxu0 0
      %2328 = vmatpush1.bf16.msra.mxu0 0
      %2329 = vmatprep.subr.bf16.mxu0 0
      %2330 = vmatpush1.bf16.msra.mxu0 0
      %2331 = vmatprep.subr.bf16.mxu0 0
      %2332 = vmatpush1.bf16.msra.mxu0 0
      %2333 = vmatprep.subr.bf16.mxu0 0
      %2334 = vmatpush1.bf16.msra.mxu0 0
      %2335 = vmatprep.subr.bf16.mxu0 0
      %2336 = vmatpush1.bf16.msra.mxu0 0
      %2337 = vmatprep.subr.bf16.mxu0 0
      %2338 = vmatpush1.bf16.msra.mxu0 0
      %2339 = vmatprep.subr.bf16.mxu0 0
      %2340 = vmatpush1.bf16.msra.mxu0 0
      %2341 = vmatprep.subr.bf16.mxu0 0
      %2342 = vmatpush1.bf16.msra.mxu0 0
      %2343 = vmatprep.subr.bf16.mxu0 0
      %2344 = vmatpush1.bf16.msra.mxu0 0
      %2345 = vmatprep.subr.bf16.mxu0 0
      %2346 = vmatpush1.bf16.msra.mxu0 0
      %2347 = vmatprep.subr.bf16.mxu0 0
      %2348 = vmatpush1.bf16.msra.mxu0 0
      %2349 = vmatprep.mubr.bf16.mxu0 0
      %2350 = vmatmul.mubr.bf16.gmra.mrb[0].mxu0 %v2291
      %v2351 = vpop.f32.mrb[0].mxu0
      %v2352 = vadd.f32 0.0, %v2351
      %v2353 = vpop.f32.mrb[0].mxu0
      %v2354 = vpop.f32.mrb[0].mxu0
      %v2355 = vadd.f32 0.0, %v2354
      %v2356 = vpop.f32.mrb[0].mxu0
      %2357 = vmatprep.mubr.bf16.mxu0 0
      %2358 = vmatmul.mubr.bf16.gmra.mrb[0].mxu0 %v2294
      %v2359 = vpop.f32.mrb[0].mxu0
      %v2360 = vadd.f32 0.0, %v2359
      %v2361 = vpop.f32.mrb[0].mxu0
      %v2362 = vpop.f32.mrb[0].mxu0
      %v2363 = vadd.f32 0.0, %v2362
      %v2364 = vpop.f32.mrb[0].mxu0
      %2365 = vmatprep.mubr.bf16.mxu0 0
      %2366 = vmatmul.mubr.bf16.gmra.mrb[0].mxu0 %v2297
      %v2367 = vpop.f32.mrb[0].mxu0
      %v2368 = vadd.f32 0.0, %v2367
      %v2369 = vpop.f32.mrb[0].mxu0
      %v2370 = vpop.f32.mrb[0].mxu0
      %v2371 = vadd.f32 0.0, %v2370
      %v2372 = vpop.f32.mrb[0].mxu0
      %2373 = vmatprep.mubr.bf16.mxu0 0
      %2374 = vmatmul.mubr.bf16.gmra.mrb[0].mxu0 %v2300
      %v2375 = vpop.f32.mrb[0].mxu0
      %v2376 = vadd.f32 0.0, %v2375
      %v2377 = vpop.f32.mrb[0].mxu0
      %v2378 = vpop.f32.mrb[0].mxu0
      %v2379 = vadd.f32 0.0, %v2378
      %v2380 = vpop.f32.mrb[0].mxu0
      %2381 = vmatprep.mubr.bf16.mxu0 0
      %2382 = vmatmul.mubr.bf16.gmra.mrb[0].mxu0 %v2303
      %v2383 = vpop.f32.mrb[0].mxu0
      %v2384 = vadd.f32 0.0, %v2383
      %v2385 = vpop.f32.mrb[0].mxu0
      %v2386 = vpop.f32.mrb[0].mxu0
      %v2387 = vadd.f32 0.0, %v2386
      %v2388 = vpop.f32.mrb[0].mxu0
      %2389 = vmatprep.mubr.bf16.mxu0 0
      %2390 = vmatmul.mubr.bf16.gmra.mrb[0].mxu0 %v2306
      %v2391 = vpop.f32.mrb[0].mxu0
      %v2392 = vadd.f32 0.0, %v2391
      %v2393 = vpop.f32.mrb[0].mxu0
      %v2394 = vpop.f32.mrb[0].mxu0
      %v2395 = vadd.f32 0.0, %v2394
      %v2396 = vpop.f32.mrb[0].mxu0
      %2397 = vmatprep.mubr.bf16.mxu0 0
      %2398 = vmatmul.mubr.bf16.gmra.mrb[0].mxu0 %v2309
      %v2399 = vpop.f32.mrb[0].mxu0
      %v2400 = vadd.f32 0.0, %v2399
      %v2401 = vpop.f32.mrb[0].mxu0
      %v2402 = vpop.f32.mrb[0].mxu0
      %v2403 = vadd.f32 0.0, %v2402
      %v2404 = vpop.f32.mrb[0].mxu0
      %2405 = vmatprep.mubr.bf16.mxu0 0
      %2406 = vmatmul.mubr.bf16.gmra.mrb[0].mxu0 %v2312
      %v2407 = vpop.f32.mrb[0].mxu0
      %v2408 = vadd.f32 0.0, %v2407
      %v2409 = vpop.f32.mrb[0].mxu0
      %v2410 = vpop.f32.mrb[0].mxu0
      %v2411 = vadd.f32 0.0, %v2410
      %v2412 = vpop.f32.mrb[0].mxu0
      %2413 = vdwg.mxu0
      %v2414 = vadd.f32 %v1939, %v2352
      %v2415 = vadd.f32 %v1942, %v2355
      %v2416 = vadd.f32 %v1947, %v2360
      %v2417 = vadd.f32 %v1950, %v2363
      %v2418 = vadd.f32 %v1955, %v2368
      %v2419 = vadd.f32 %v1958, %v2371
      %v2420 = vadd.f32 %v1963, %v2376
      %v2421 = vadd.f32 %v1966, %v2379
      %v2422 = vadd.f32 %v1971, %v2384
      %v2423 = vadd.f32 %v1974, %v2387
      %v2424 = vadd.f32 %v1979, %v2392
      %v2425 = vadd.f32 %v1982, %v2395
      %v2426 = vadd.f32 %v1987, %v2400
      %v2427 = vadd.f32 %v1990, %v2403
      %v2428 = vadd.f32 %v1995, %v2408
      %v2429 = vadd.f32 %v1998, %v2411
      %v2430 = vpack.c.bf16 %v2415, %v2414
      %v2431 = vpack.c.bf16 %v2417, %v2416
      %v2432 = vpack.c.bf16 %v2419, %v2418
      %v2433 = vpack.c.bf16 %v2421, %v2420
      %v2434 = vpack.c.bf16 %v2423, %v2422
      %v2435 = vpack.c.bf16 %v2425, %v2424
      %v2436 = vpack.c.bf16 %v2427, %v2426
      %v2437 = vpack.c.bf16 %v2429, %v2428
      %v2446 = vunpack.c.l.b16 %v2430
      %v2447 = vunpack.c.h.b16 %v2430
      %v2448 = vunpack.c.l.b16 %v2431
      %v2449 = vunpack.c.h.b16 %v2431
      %v2450 = vunpack.c.l.b16 %v2432
      %v2451 = vunpack.c.h.b16 %v2432
      %v2452 = vunpack.c.l.b16 %v2433
      %v2453 = vunpack.c.h.b16 %v2433
      %v2454 = vunpack.c.l.b16 %v2434
      %v2455 = vunpack.c.h.b16 %v2434
      %v2456 = vunpack.c.l.b16 %v2435
      %v2457 = vunpack.c.h.b16 %v2435
      %v2458 = vunpack.c.l.b16 %v2436
      %v2459 = vunpack.c.h.b16 %v2436
      %v2460 = vunpack.c.l.b16 %v2437
      %v2461 = vunpack.c.h.b16 %v2437
      %v2462 = vpack.c.b16 %v2446, %v2446
      %v2463 = vpack.c.b16 %v2447, %v2447
      %v2464 = vpack.c.b16 %v2448, %v2448
      %v2465 = vpack.c.b16 %v2449, %v2449
      %v2466 = vpack.c.b16 %v2450, %v2450
      %v2467 = vpack.c.b16 %v2451, %v2451
      %v2468 = vpack.c.b16 %v2452, %v2452
      %v2469 = vpack.c.b16 %v2453, %v2453
      %v2470 = vpack.c.b16 %v2454, %v2454
      %v2471 = vpack.c.b16 %v2455, %v2455
      %v2472 = vpack.c.b16 %v2456, %v2456
      %v2473 = vpack.c.b16 %v2457, %v2457
      %v2474 = vpack.c.b16 %v2458, %v2458
      %v2475 = vpack.c.b16 %v2459, %v2459
      %v2476 = vpack.c.b16 %v2460, %v2460
      %v2477 = vpack.c.b16 %v2461, %v2461
      %2494 = vst [vmem:[%s451] sm:$0xf] %v2462
      %2495 = vst [vmem:[%s451 + $0x4] sm:$0xf] %v2463
      %2496 = vst [vmem:[%s451 + $0x8] sm:$0xf] %v2464
      %2497 = vst [vmem:[%s451 + $0xc] sm:$0xf] %v2465
      %2498 = vst [vmem:[%s451 + $0x10] sm:$0xf] %v2466
      %2499 = vst [vmem:[%s451 + $0x14] sm:$0xf] %v2467
      %2500 = vst [vmem:[%s451 + $0x18] sm:$0xf] %v2468
      %2501 = vst [vmem:[%s451 + $0x1c] sm:$0xf] %v2469
      %2502 = vst [vmem:[%s451 + $0x20] sm:$0xf] %v2470
      %2503 = vst [vmem:[%s451 + $0x24] sm:$0xf] %v2471
      %2504 = vst [vmem:[%s451 + $0x28] sm:$0xf] %v2472
      %2505 = vst [vmem:[%s451 + $0x2c] sm:$0xf] %v2473
      %2506 = vst [vmem:[%s451 + $0x30] sm:$0xf] %v2474
      %2507 = vst [vmem:[%s451 + $0x34] sm:$0xf] %v2475
      %2508 = vst [vmem:[%s451 + $0x38] sm:$0xf] %v2476
      %2509 = vst [vmem:[%s451 + $0x3c] sm:$0xf] %v2477
      %p2510 = scmp.eq.s32.totalorder %s24, 0
      // Predicated region
      $region45: #{double_conv.4} parent=43 // pred_check
        %p2511 = pneg %p2510
      $region46: #{double_conv.4} parent=43 // pred_check_branch
        %2513 = sbr.rel (%p2511) target = $region48
      $region47: #{double_conv.4} parent=43 // pred_region
        %2514 = vst [vmem:[#allocation4] sm:$0x3] 0.0
      $region48: #{double_conv.4} parent=43 // pred_fallthru
        _
      %v2515 = vld [vmem:[#allocation4] sm:$0x1]
      %v2516 = vadd.f32 %v2414, %v2415
      %v2517 = vadd.f32 %v2516, %v2416
      %v2518 = vadd.f32 %v2517, %v2417
      %v2519 = vadd.f32 %v2518, %v2418
      %v2520 = vadd.f32 %v2519, %v2419
      %v2521 = vadd.f32 %v2520, %v2420
      %v2522 = vadd.f32 %v2521, %v2421
      %v2523 = vadd.f32 %v2522, %v2422
      %v2524 = vadd.f32 %v2523, %v2423
      %v2525 = vadd.f32 %v2524, %v2424
      %v2526 = vadd.f32 %v2525, %v2425
      %v2527 = vadd.f32 %v2526, %v2426
      %v2528 = vadd.f32 %v2527, %v2427
      %v2529 = vadd.f32 %v2528, %v2428
      %v2530 = vadd.f32 %v2529, %v2429
      %v2531 = vrot.slane %v2530, 4
      %v2532 = vadd.f32 %v2530, %v2531
      %v2533 = vrot.slane %v2532, 2
      %v2534 = vadd.f32 %v2532, %v2533
      %v2535 = vrot.slane %v2534, 1
      %v2536 = vadd.f32 %v2534, %v2535
      %v2537 = vadd.f32 %v2515, %v2536
      %2538 = vst [vmem:[#allocation4] sm:$0x1] %v2537
      %v2539 = vld [vmem:[#allocation4 + $0x1] sm:$0x1]
      %v2540 = vmul.f32 %v2414, %v2414
      %v2541 = vmul.f32 %v2415, %v2415
      %v2542 = vmul.f32 %v2416, %v2416
      %v2543 = vmul.f32 %v2417, %v2417
      %v2544 = vmul.f32 %v2418, %v2418
      %v2545 = vmul.f32 %v2419, %v2419
      %v2546 = vmul.f32 %v2420, %v2420
      %v2547 = vmul.f32 %v2421, %v2421
      %v2548 = vmul.f32 %v2422, %v2422
      %v2549 = vmul.f32 %v2423, %v2423
      %v2550 = vmul.f32 %v2424, %v2424
      %v2551 = vmul.f32 %v2425, %v2425
      %v2552 = vmul.f32 %v2426, %v2426
      %v2553 = vmul.f32 %v2427, %v2427
      %v2554 = vmul.f32 %v2428, %v2428
      %v2555 = vmul.f32 %v2429, %v2429
      %v2556 = vadd.f32 %v2540, %v2541
      %v2557 = vadd.f32 %v2556, %v2542
      %v2558 = vadd.f32 %v2557, %v2543
      %v2559 = vadd.f32 %v2558, %v2544
      %v2560 = vadd.f32 %v2559, %v2545
      %v2561 = vadd.f32 %v2560, %v2546
      %v2562 = vadd.f32 %v2561, %v2547
      %v2563 = vadd.f32 %v2562, %v2548
      %v2564 = vadd.f32 %v2563, %v2549
      %v2565 = vadd.f32 %v2564, %v2550
      %v2566 = vadd.f32 %v2565, %v2551
      %v2567 = vadd.f32 %v2566, %v2552
      %v2568 = vadd.f32 %v2567, %v2553
      %v2569 = vadd.f32 %v2568, %v2554
      %v2570 = vadd.f32 %v2569, %v2555
      %v2571 = vrot.slane %v2570, 4
      %v2572 = vadd.f32 %v2570, %v2571
      %v2573 = vrot.slane %v2572, 2
      %v2574 = vadd.f32 %v2572, %v2573
      %v2575 = vrot.slane %v2574, 1
      %v2576 = vadd.f32 %v2574, %v2575
      %v2577 = vadd.f32 %v2539, %v2576
      %2578 = vst [vmem:[#allocation4 + $0x1] sm:$0x1] %v2577
      %p2579 = scmp.eq.s32.totalorder %s24, 1
      // Predicated region
      $region49: #{double_conv.4} parent=43 // pred_check
        %p2580 = pneg %p2579
      $region50: #{double_conv.4} parent=43 // pred_check_branch
        %2582 = sbr.rel (%p2580) target = $region52
      $region51: #{double_conv.4} parent=43 // pred_region
        %v2583 = vld [vmem:[#allocation4] sm:$0x3]
        %2584 = vst [vmem:[%s456] sm:$0x3] %v2583
      $region52: #{double_conv.4} parent=43 // pred_fallthru
        _
      %s2585 = smul.u32 16, %s24
      %p2586 = scmp.lt.s32.totalorder %s23, 1
      %s2587 = scalar_select %p2586, %s23, 1
      %p2588 = scmp.lt.s32.totalorder %s2585, 31
      %s2589 = scalar_select %p2588, %s2585, 31
      %s2590 = smul.addr %s2587, 32
      %s2591 = sadd.s32 %s2589, %s2590
      %s2592 = smul.addr %s2591, 4
      %s2593 = scalar_lea.vmem %s6, %s2592
      %p2594 = scmp.lt.s32.totalorder %s23, 1
      %s2595 = scalar_select %p2594, %s23, 1
      %s2596 = smul.addr %s2595, 2
      %s2597 = scalar_lea.vmem %s7, %s2596
      // Predicated region
      $region53: #{double_conv.4} parent=43 // pred_check
        %p2598 = pneg %p214
      $region54: #{double_conv.4} parent=43 // pred_check_branch
        %2600 = sbr.rel (%p2598) target = $region56
      $region55: #{double_conv.4} parent=43 // pred_region
        %s2601 = smul.u32 16, %s24
      $region56: #{double_conv.4} parent=43 // pred_fallthru
        _
      // Predicated region
      $region57: #{double_conv.4} parent=43 // pred_check
        %p2602 = pneg %p240
      $region58: #{double_conv.4} parent=43 // pred_check_branch
        %2604 = sbr.rel (%p2602) target = $region60
      $region59: #{double_conv.4} parent=43 // pred_region
        _
      $region60: #{double_conv.4} parent=43 // pred_fallthru
        _
    $region44: #{double_conv.4} parent=5 // pred_fallthru
      _
    %p2605 = scmp.le.s32.totalorder 2, %s14
    // Predicated region
    $region61: #{double_conv.4} parent=5 // pred_check
      %p2606 = pneg %p2605
    $region62: #{double_conv.4} parent=5 // pred_check_branch
      %2608 = sbr.rel (%p2606) target = $region64
    $region63: #{double_conv.4} parent=5 // pred_region
      %s2609 = ssub.s32 %s14, 2
      // Predicated region
      $region65: #{double_conv.4} parent=63 // pred_check
        %p2610 = pneg %p220
      $region66: #{double_conv.4} parent=63 // pred_check_branch
        %2612 = sbr.rel (%p2610) target = $region68
      $region67: #{double_conv.4} parent=63 // pred_region
        %s2613 = smul.u32 16, %s26
        %p2614 = scmp.lt.s32.totalorder %s25, 1
        %s2615 = scalar_select %p2614, %s25, 1
        %p2616 = scmp.lt.s32.totalorder %s2613, 31
        %s2617 = scalar_select %p2616, %s2613, 31
        %s2618 = smul.addr %s2615, 32
        %s2619 = sadd.s32 %s2617, %s2618
        %s2620 = smul.addr %s2619, 4
        %s2621 = scalar_lea.vmem %s6, %s2620
      $region68: #{double_conv.4} parent=63 // pred_fallthru
        _
      // Predicated region
      $region69: #{double_conv.4} parent=63 // pred_check
        %p2622 = pneg %p246
      $region70: #{double_conv.4} parent=63 // pred_check_branch
        %2624 = sbr.rel (%p2622) target = $region72
      $region71: #{double_conv.4} parent=63 // pred_region
        %p2625 = scmp.lt.s32.totalorder %s25, 1
        %s2626 = scalar_select %p2625, %s25, 1
        %s2627 = smul.addr %s2626, 2
        %s2628 = scalar_lea.vmem %s7, %s2627
      $region72: #{double_conv.4} parent=63 // pred_fallthru
        _
    $region64: #{double_conv.4} parent=5 // pred_fallthru
      _
  $region6: #{double_conv.4} parent=0 // loop_footer
    %s18 = sadd.s32 1, %s14
  $region7: #{double_conv.4} parent=0 // loop_footer_branch
    %13 = sbr.rel target = $region3
  $region8: #{double_conv.4} parent=0 // loop_exit
    _

</llo_original>
